<compile_context>
chip_gen: v7x
topology: tpu7x:2x2x1
jax: 0.10.0
libtpu: 0.0.40
codegen_flags: <defaults>
</compile_context>

<pallas_src>
import functools

import numpy as np
import jax
import jax.numpy as jnp
from jax.experimental import pallas as pl
from jax.experimental.pallas import tpu as pltpu


# ---------------------------------------------------------------------------
# Synthetic hyper-parameters (CONV*_PARAMS / FC*_PARAMS from model.py)
# ---------------------------------------------------------------------------
CONV1_PARAMS = dict(in_channels=4,  out_channels=8,  kernel_size=3, stride=1)
CONV2_PARAMS = dict(in_channels=8,  out_channels=8,  kernel_size=3, stride=1)
CONV3_PARAMS = dict(in_channels=8,  out_channels=16, kernel_size=3, stride=2)
CONV4_PARAMS = dict(in_channels=16, out_channels=16, kernel_size=3, stride=1)
# With a 16x16 input: 16 ->14 ->12 ->5 ->3  =>  flattened features = 16*3*3
FC1_PARAMS = dict(in_features=16 * 3 * 3, out_features=32)
FC2_PARAMS = dict(in_features=32, out_features=10)

INPUT_HW = 16
MAX_BATCH_TILE = 8   # batch tile per grid step (grid shards batch beyond this)


# ---------------------------------------------------------------------------
# In-kernel building blocks
# ---------------------------------------------------------------------------
def _conv_layer(a, bw_ref, b_ref, stride):
    """One conv layer, batched over the batch tile.

    a      : (TB, H_in, Win*Cin) f32 activation (lane axis holds (w, c)).
    bw_ref : (KH, Win*Cin, OW*Cout) bf16 structured weight (column taps and
             column stride folded in).
    b_ref  : (1, OW*Cout) f32 tiled bias row.
    returns (TB, OH, OW*Cout) f32 post-ReLU activation.
    """
    tb, h_in, k = a.shape
    kh = bw_ref.shape[0]
    n = bw_ref.shape[2]
    oh_full = h_in - kh + 1                       # contiguous (row-stride-1) rows
    a16 = a.astype(jnp.bfloat16)
    acc = None
    for ki in range(kh):                          # KH=3 batched dots, M = TB*OH
        xs = a16[:, ki:ki + oh_full, :].reshape(tb * oh_full, k)
        part = jnp.dot(xs, bw_ref[ki], preferred_element_type=jnp.float32)
        acc = part if acc is None else acc + part
    out = jnp.maximum(acc + b_ref[...], 0.0)      # (TB*OH_full, N) f32
    out = out.reshape(tb, oh_full, n)
    if stride != 1:                               # single row-downsample (conv3)
        oh = (h_in - kh) // stride + 1
        out = jnp.concatenate(
            [out[:, r * stride:r * stride + 1, :] for r in range(oh)], axis=1)
    return out


def _fused_forward_kernel(x_ref, bw1_ref, b1_ref, bw2_ref, b2_ref,
                          bw3_ref, b3_ref, bw4_ref, b4_ref,
                          wfc1_ref, bfc1_ref, wfc2_ref, bfc2_ref,
                          o_ref, *, conv_strides):
    # In-kernel NCHW -> (TB, H, Cin*W) relayout (channel-major lane order);
    # conv1's structured weight is built for this layout, so the wrapper needs
    # no separate XLA transpose / cast dispatch.
    xa = x_ref[...]                                              # (TB,C,H,W) f32
    cin = xa.shape[1]
    a = jnp.concatenate([xa[:, c] for c in range(cin)], axis=-1)  # (TB,H,C*W)

    conv_layers = ((bw1_ref, b1_ref), (bw2_ref, b2_ref),
                   (bw3_ref, b3_ref), (bw4_ref, b4_ref))
    for (bw_ref, bias_ref), stride in zip(conv_layers, conv_strides):
        a = _conv_layer(a, bw_ref, bias_ref, stride)             # f32 activations

    # FC1: one batched dot per conv4 output-row position (M = TB each).
    a16 = a.astype(jnp.bfloat16)                                 # (TB, 3, 48)
    acc = None
    for h in range(a16.shape[1]):
        part = jnp.dot(a16[:, h, :], wfc1_ref[h],
                       preferred_element_type=jnp.float32)
        acc = part if acc is None else acc + part
    fc1 = jnp.maximum(acc + bfc1_ref[...], 0.0)                  # (TB, 32) relu5

    # FC2: one batched dot + single batched store into o_ref.
    logits = jnp.dot(fc1.astype(jnp.bfloat16), wfc2_ref[...],
                     preferred_element_type=jnp.float32) + bfc2_ref[...]
    o_ref[...] = logits.astype(o_ref.dtype)                      # (TB, 10)


# ---------------------------------------------------------------------------
# One-time host-side parameter repacking
# ---------------------------------------------------------------------------
def _structured_conv_weight(w, w_in, stride, in_order, out_order):
    """(OC, IC, KH, KW) torch conv weight -> (KH, W_in*IC, OW*OC) so that
    out_row(oy) = sum_ki in_row(stride*oy + ki) @ BW[ki].

    in_order/out_order select the lane layout: 'wc' = w-major, c-fastest;
    'cw' = c-major, w-fastest (used for conv1 whose input comes straight from
    the in-kernel NCHW relayout)."""
    w = np.asarray(w, np.float32)
    oc, ic, kh, kw = w.shape
    ow = (w_in - kw) // stride + 1

    def in_idx(wi, ci):
        return wi * ic + ci if in_order == 'wc' else ci * w_in + wi

    def out_idx(wo, co):
        return wo * oc + co if out_order == 'wc' else co * ow + wo

    bw = np.zeros((kh, w_in * ic, ow * oc), np.float32)
    for ki in range(kh):
        for kj in range(kw):
            for wo in range(ow):
                wi = wo * stride + kj
                for ci in range(ic):
                    for co in range(oc):
                        bw[ki, in_idx(wi, ci), out_idx(wo, co)] += w[co, ci, ki, kj]
    return bw


def prepare_params(params, input_hw=INPUT_HW):
    """Repack weights once: structured conv matrices, tiled bias rows,
    flatten-order-permuted fc1, transposed fc2.  MXU operands cast to bf16."""
    prep = {}
    w_in = input_hw
    convs = (('1', CONV1_PARAMS, params['w1'], params['b1'], 'cw'),
             ('2', CONV2_PARAMS, params['w2'], params['b2'], 'wc'),
             ('3', CONV3_PARAMS, params['w3'], params['b3'], 'wc'),
             ('4', CONV4_PARAMS, params['w4'], params['b4'], 'wc'))
    for name, cfg, w, b, in_order in convs:
        stride, ksz, oc = cfg['stride'], cfg['kernel_size'], cfg['out_channels']
        ow = (w_in - ksz) // stride + 1
        prep['bw' + name] = jnp.asarray(
            _structured_conv_weight(w, w_in, stride, in_order, 'wc'), jnp.bfloat16)
        prep['b' + name] = jnp.asarray(
            np.tile(np.asarray(b, np.float32), ow).reshape(1, ow * oc))
        w_in = ow

    # torch flattens NCHW: feature index = c*H*W + h*W + w.  Kernel's conv4
    # output uses (h, w*C + c).  Permute fc1 columns to the kernel layout.
    c4 = CONV4_PARAMS['out_channels']
    h4 = w4 = w_in
    perm = np.empty(c4 * h4 * w4, np.int32)
    for hh in range(h4):
        for ww in range(w4):
            for cc in range(c4):
                perm[hh * w4 * c4 + ww * c4 + cc] = cc * h4 * w4 + hh * w4 + ww
    fc1_w = np.asarray(params['fc1_w'], np.float32)                 # (out, in)
    prep['wfc1'] = jnp.asarray(
        fc1_w[:, perm].T.reshape(h4, w4 * c4, fc1_w.shape[0]), jnp.bfloat16)
    prep['bfc1'] = jnp.asarray(np.asarray(params['fc1_b'], np.float32).reshape(1, -1))
    prep['wfc2'] = jnp.asarray(np.asarray(params['fc2_w'], np.float32).T, jnp.bfloat16)
    prep['bfc2'] = jnp.asarray(np.asarray(params['fc2_b'], np.float32).reshape(1, -1))
    return prep


# ---------------------------------------------------------------------------
# Forward pass (single fused pallas_call, batch-tiled grid)
# ---------------------------------------------------------------------------
def _full_spec(arr):
    nd = arr.ndim

    def imap(i):
        return (0,) * nd

    return pl.BlockSpec(arr.shape, imap)


@jax.jit
def forward(x_nchw, prep):
    bsz, cin, hin, win = x_nchw.shape
    tb = bsz if bsz <= MAX_BATCH_TILE else MAX_BATCH_TILE
    pad = (-bsz) % tb
    if pad:
        x_nchw = jnp.concatenate(
            [x_nchw, jnp.zeros((pad, cin, hin, win), x_nchw.dtype)], axis=0)
    bp = bsz + pad

    kernel = functools.partial(
        _fused_forward_kernel,
        conv_strides=(CONV1_PARAMS['stride'], CONV2_PARAMS['stride'],
                      CONV3_PARAMS['stride'], CONV4_PARAMS['stride']))

    weights = (prep['bw1'], prep['b1'], prep['bw2'], prep['b2'],
               prep['bw3'], prep['b3'], prep['bw4'], prep['b4'],
               prep['wfc1'], prep['bfc1'], prep['wfc2'], prep['bfc2'])

    out = pl.pallas_call(
        kernel,
        out_shape=jax.ShapeDtypeStruct((bp, FC2_PARAMS['out_features']), jnp.float32),
        grid=(bp // tb,),
        in_specs=[pl.BlockSpec((tb, cin, hin, win), lambda i: (i, 0, 0, 0))]
                 + [_full_spec(w) for w in weights],
        out_specs=pl.BlockSpec((tb, FC2_PARAMS['out_features']), lambda i: (i, 0)),
        compiler_params=pltpu.CompilerParams(dimension_semantics=("parallel",)),
    )(x_nchw, *weights)
    return out if pad == 0 else out[:bsz]


# ---------------------------------------------------------------------------
# Parameter init (deterministic, synthetic) + pure-JAX reference
# ---------------------------------------------------------------------------
def init_params(key):
    def conv_w(k, p):
        return 0.1 * jax.random.normal(
            k, (p['out_channels'], p['in_channels'],
                p['kernel_size'], p['kernel_size']), jnp.float32)

    keys = jax.random.split(key, 12)
    return {
        'w1': conv_w(keys[0], CONV1_PARAMS),
        'b1': 0.1 * jax.random.normal(keys[1], (CONV1_PARAMS['out_channels'],), jnp.float32),
        'w2': conv_w(keys[2], CONV2_PARAMS),
        'b2': 0.1 * jax.random.normal(keys[3], (CONV2_PARAMS['out_channels'],), jnp.float32),
        'w3': conv_w(keys[4], CONV3_PARAMS),
        'b3': 0.1 * jax.random.normal(keys[5], (CONV3_PARAMS['out_channels'],), jnp.float32),
        'w4': conv_w(keys[6], CONV4_PARAMS),
        'b4': 0.1 * jax.random.normal(keys[7], (CONV4_PARAMS['out_channels'],), jnp.float32),
        'fc1_w': 0.1 * jax.random.normal(keys[8], (FC1_PARAMS['out_features'], FC1_PARAMS['in_features']), jnp.float32),
        'fc1_b': 0.1 * jax.random.normal(keys[9], (FC1_PARAMS['out_features'],), jnp.float32),
        'fc2_w': 0.1 * jax.random.normal(keys[10], (FC2_PARAMS['out_features'], FC2_PARAMS['in_features']), jnp.float32),
        'fc2_b': 0.1 * jax.random.normal(keys[11], (FC2_PARAMS['out_features'],), jnp.float32),
    }


def reference_forward(x, params):
    hi = jax.lax.Precision.HIGHEST

    def conv(t, w, b, stride):
        out = jax.lax.conv_general_dilated(
            t, w, window_strides=(stride, stride), padding='VALID',
            dimension_numbers=('NCHW', 'OIHW', 'NCHW'), precision=hi)
        return jnp.maximum(out + b.reshape(1, -1, 1, 1), 0.0)

    t = conv(x, params['w1'], params['b1'], CONV1_PARAMS['stride'])
    t = conv(t, params['w2'], params['b2'], CONV2_PARAMS['stride'])
    t = conv(t, params['w3'], params['b3'], CONV3_PARAMS['stride'])
    t = conv(t, params['w4'], params['b4'], CONV4_PARAMS['stride'])
    t = t.reshape(t.shape[0], -1)
    t = jnp.maximum(jnp.dot(t, params['fc1_w'].T, precision=hi) + params['fc1_b'], 0.0)
    return jnp.dot(t, params['fc2_w'].T, precision=hi) + params['fc2_b']


if __name__ == "__main__":
    key = jax.random.PRNGKey(0)
    k_x, k_p = jax.random.split(key)
    x = jax.random.normal(k_x, (2, 4, 16, 16), jnp.float32)      # NCHW input
    params = init_params(k_p)
    prep = prepare_params(params)

    out = jax.block_until_ready(forward(x, prep))
    ref = jax.block_until_ready(reference_forward(x, params))

    assert out.shape == (2, FC2_PARAMS['out_features'])
    assert bool(jnp.all(jnp.isfinite(out)))
    max_err = float(jnp.max(jnp.abs(out - ref.astype(jnp.float32))))
    assert max_err < 1e-2, f"kernel/reference mismatch: max|diff|={max_err}"
    print("KERNEL_OK")
</pallas_src>

<mosaic_0001>
module attributes {stable_mosaic.version = 11 : i64} {
  func.func @_fused_forward_kernel(%arg0: i32, %arg1: memref<2x4x16x16xf32, #tpu.memory_space<vmem>>, %arg2: memref<3x64x112xbf16, #tpu.memory_space<vmem>>, %arg3: memref<1x112xf32, #tpu.memory_space<vmem>>, %arg4: memref<3x112x96xbf16, #tpu.memory_space<vmem>>, %arg5: memref<1x96xf32, #tpu.memory_space<vmem>>, %arg6: memref<3x96x80xbf16, #tpu.memory_space<vmem>>, %arg7: memref<1x80xf32, #tpu.memory_space<vmem>>, %arg8: memref<3x80x48xbf16, #tpu.memory_space<vmem>>, %arg9: memref<1x48xf32, #tpu.memory_space<vmem>>, %arg10: memref<3x48x32xbf16, #tpu.memory_space<vmem>>, %arg11: memref<1x32xf32, #tpu.memory_space<vmem>>, %arg12: memref<32x10xbf16, #tpu.memory_space<vmem>>, %arg13: memref<1x10xf32, #tpu.memory_space<vmem>>, %arg14: memref<2x10xf32, #tpu.memory_space<vmem>>) attributes {dimension_semantics = [#tpu.dimension_semantics<parallel>], iteration_bounds = array<i64: 1>, scalar_prefetch = 0 : i64, scratch_operands = 0 : i64, tpu.core_type = #tpu.core_type<tc>, window_params = [{transform_indices = @transform_0, window_bounds = array<i64: 2, 4, 16, 16>}, {pipeline_mode = #tpu.pipeline_mode<synchronous>, transform_indices = @transform_1, window_bounds = array<i64: 3, 64, 112>}, {pipeline_mode = #tpu.pipeline_mode<synchronous>, transform_indices = @transform_2, window_bounds = array<i64: 1, 112>}, {pipeline_mode = #tpu.pipeline_mode<synchronous>, transform_indices = @transform_3, window_bounds = array<i64: 3, 112, 96>}, {pipeline_mode = #tpu.pipeline_mode<synchronous>, transform_indices = @transform_4, window_bounds = array<i64: 1, 96>}, {pipeline_mode = #tpu.pipeline_mode<synchronous>, transform_indices = @transform_5, window_bounds = array<i64: 3, 96, 80>}, {pipeline_mode = #tpu.pipeline_mode<synchronous>, transform_indices = @transform_6, window_bounds = array<i64: 1, 80>}, {pipeline_mode = #tpu.pipeline_mode<synchronous>, transform_indices = @transform_7, window_bounds = array<i64: 3, 80, 48>}, {pipeline_mode = #tpu.pipeline_mode<synchronous>, transform_indices = @transform_8, window_bounds = array<i64: 1, 48>}, {pipeline_mode = #tpu.pipeline_mode<synchronous>, transform_indices = @transform_9, window_bounds = array<i64: 3, 48, 32>}, {pipeline_mode = #tpu.pipeline_mode<synchronous>, transform_indices = @transform_10, window_bounds = array<i64: 1, 32>}, {pipeline_mode = #tpu.pipeline_mode<synchronous>, transform_indices = @transform_11, window_bounds = array<i64: 32, 10>}, {pipeline_mode = #tpu.pipeline_mode<synchronous>, transform_indices = @transform_12, window_bounds = array<i64: 1, 10>}, {transform_indices = @transform_13, window_bounds = array<i64: 2, 10>}]} {
    %c0 = arith.constant 0 : index
    %c0_0 = arith.constant 0 : index
    %c0_1 = arith.constant 0 : index
    %c0_2 = arith.constant 0 : index
    %0 = vector.load %arg1[%c0, %c0_0, %c0_1, %c0_2] : memref<2x4x16x16xf32, #tpu.memory_space<vmem>>, vector<2x4x16x16xf32>
    %1 = vector.extract_strided_slice %0 {offsets = [0, 0, 0, 0], sizes = [2, 1, 16, 16], strides = [1, 1, 1, 1]} : vector<2x4x16x16xf32> to vector<2x1x16x16xf32>
    %2 = vector.shape_cast %1 : vector<2x1x16x16xf32> to vector<2x16x16xf32>
    %3 = vector.extract_strided_slice %0 {offsets = [0, 1, 0, 0], sizes = [2, 1, 16, 16], strides = [1, 1, 1, 1]} : vector<2x4x16x16xf32> to vector<2x1x16x16xf32>
    %4 = vector.shape_cast %3 : vector<2x1x16x16xf32> to vector<2x16x16xf32>
    %5 = vector.extract_strided_slice %0 {offsets = [0, 2, 0, 0], sizes = [2, 1, 16, 16], strides = [1, 1, 1, 1]} : vector<2x4x16x16xf32> to vector<2x1x16x16xf32>
    %6 = vector.shape_cast %5 : vector<2x1x16x16xf32> to vector<2x16x16xf32>
    %7 = vector.extract_strided_slice %0 {offsets = [0, 3, 0, 0], sizes = [2, 1, 16, 16], strides = [1, 1, 1, 1]} : vector<2x4x16x16xf32> to vector<2x1x16x16xf32>
    %8 = vector.shape_cast %7 : vector<2x1x16x16xf32> to vector<2x16x16xf32>
    %9 = tpu.concatenate %2, %4, %6, %8 in 2 : vector<2x16x16xf32>, vector<2x16x16xf32>, vector<2x16x16xf32>, vector<2x16x16xf32> -> vector<2x16x64xf32>
    %10 = arith.truncf %9 : vector<2x16x64xf32> to vector<2x16x64xbf16>
    %11 = vector.extract_strided_slice %10 {offsets = [0, 0, 0], sizes = [2, 14, 64], strides = [1, 1, 1]} : vector<2x16x64xbf16> to vector<2x14x64xbf16>
    %12 = vector.shape_cast %11 : vector<2x14x64xbf16> to vector<28x64xbf16>
    %c0_3 = arith.constant 0 : index
    %c0_4 = arith.constant 0 : index
    %c0_5 = arith.constant 0 : index
    %13 = vector.load %arg2[%c0_3, %c0_4, %c0_5] : memref<3x64x112xbf16, #tpu.memory_space<vmem>>, vector<1x64x112xbf16>
    %14 = vector.shape_cast %13 : vector<1x64x112xbf16> to vector<64x112xbf16>
    %cst = arith.constant dense<0.000000e+00> : vector<28x112xf32>
    %15 = tpu.matmul %12, %14, %cst {dimension_numbers = #tpu.dot_dimension_numbers<[1], [0], [0], [1], [0, 0, 1, 1], [], []>} : vector<28x64xbf16>, vector<64x112xbf16>, vector<28x112xf32> -> vector<28x112xf32>
    %16 = vector.extract_strided_slice %10 {offsets = [0, 1, 0], sizes = [2, 14, 64], strides = [1, 1, 1]} : vector<2x16x64xbf16> to vector<2x14x64xbf16>
    %17 = vector.shape_cast %16 : vector<2x14x64xbf16> to vector<28x64xbf16>
    %c1 = arith.constant 1 : index
    %c0_6 = arith.constant 0 : index
    %c0_7 = arith.constant 0 : index
    %18 = vector.load %arg2[%c1, %c0_6, %c0_7] : memref<3x64x112xbf16, #tpu.memory_space<vmem>>, vector<1x64x112xbf16>
    %19 = vector.shape_cast %18 : vector<1x64x112xbf16> to vector<64x112xbf16>
    %cst_8 = arith.constant dense<0.000000e+00> : vector<28x112xf32>
    %20 = tpu.matmul %17, %19, %cst_8 {dimension_numbers = #tpu.dot_dimension_numbers<[1], [0], [0], [1], [0, 0, 1, 1], [], []>} : vector<28x64xbf16>, vector<64x112xbf16>, vector<28x112xf32> -> vector<28x112xf32>
    %21 = arith.addf %15, %20 : vector<28x112xf32>
    %22 = vector.extract_strided_slice %10 {offsets = [0, 2, 0], sizes = [2, 14, 64], strides = [1, 1, 1]} : vector<2x16x64xbf16> to vector<2x14x64xbf16>
    %23 = vector.shape_cast %22 : vector<2x14x64xbf16> to vector<28x64xbf16>
    %c2 = arith.constant 2 : index
    %c0_9 = arith.constant 0 : index
    %c0_10 = arith.constant 0 : index
    %24 = vector.load %arg2[%c2, %c0_9, %c0_10] : memref<3x64x112xbf16, #tpu.memory_space<vmem>>, vector<1x64x112xbf16>
    %25 = vector.shape_cast %24 : vector<1x64x112xbf16> to vector<64x112xbf16>
    %cst_11 = arith.constant dense<0.000000e+00> : vector<28x112xf32>
    %26 = tpu.matmul %23, %25, %cst_11 {dimension_numbers = #tpu.dot_dimension_numbers<[1], [0], [0], [1], [0, 0, 1, 1], [], []>} : vector<28x64xbf16>, vector<64x112xbf16>, vector<28x112xf32> -> vector<28x112xf32>
    %27 = arith.addf %21, %26 : vector<28x112xf32>
    %c0_12 = arith.constant 0 : index
    %c0_13 = arith.constant 0 : index
    %28 = vector.load %arg3[%c0_12, %c0_13] : memref<1x112xf32, #tpu.memory_space<vmem>>, vector<1x112xf32>
    %29 = vector.broadcast %28 : vector<1x112xf32> to vector<28x112xf32>
    %30 = arith.addf %27, %29 : vector<28x112xf32>
    %cst_14 = arith.constant 0.000000e+00 : f32
    %31 = vector.broadcast %cst_14 : f32 to vector<28x112xf32>
    %32 = arith.maximumf %30, %31 : vector<28x112xf32>
    %33 = vector.shape_cast %32 : vector<28x112xf32> to vector<2x14x112xf32>
    %34 = arith.truncf %33 : vector<2x14x112xf32> to vector<2x14x112xbf16>
    %35 = vector.extract_strided_slice %34 {offsets = [0, 0, 0], sizes = [2, 12, 112], strides = [1, 1, 1]} : vector<2x14x112xbf16> to vector<2x12x112xbf16>
    %36 = vector.shape_cast %35 : vector<2x12x112xbf16> to vector<24x112xbf16>
    %c0_15 = arith.constant 0 : index
    %c0_16 = arith.constant 0 : index
    %c0_17 = arith.constant 0 : index
    %37 = vector.load %arg4[%c0_15, %c0_16, %c0_17] : memref<3x112x96xbf16, #tpu.memory_space<vmem>>, vector<1x112x96xbf16>
    %38 = vector.shape_cast %37 : vector<1x112x96xbf16> to vector<112x96xbf16>
    %cst_18 = arith.constant dense<0.000000e+00> : vector<24x96xf32>
    %39 = tpu.matmul %36, %38, %cst_18 {dimension_numbers = #tpu.dot_dimension_numbers<[1], [0], [0], [1], [0, 0, 1, 1], [], []>} : vector<24x112xbf16>, vector<112x96xbf16>, vector<24x96xf32> -> vector<24x96xf32>
    %40 = vector.extract_strided_slice %34 {offsets = [0, 1, 0], sizes = [2, 12, 112], strides = [1, 1, 1]} : vector<2x14x112xbf16> to vector<2x12x112xbf16>
    %41 = vector.shape_cast %40 : vector<2x12x112xbf16> to vector<24x112xbf16>
    %c1_19 = arith.constant 1 : index
    %c0_20 = arith.constant 0 : index
    %c0_21 = arith.constant 0 : index
    %42 = vector.load %arg4[%c1_19, %c0_20, %c0_21] : memref<3x112x96xbf16, #tpu.memory_space<vmem>>, vector<1x112x96xbf16>
    %43 = vector.shape_cast %42 : vector<1x112x96xbf16> to vector<112x96xbf16>
    %cst_22 = arith.constant dense<0.000000e+00> : vector<24x96xf32>
    %44 = tpu.matmul %41, %43, %cst_22 {dimension_numbers = #tpu.dot_dimension_numbers<[1], [0], [0], [1], [0, 0, 1, 1], [], []>} : vector<24x112xbf16>, vector<112x96xbf16>, vector<24x96xf32> -> vector<24x96xf32>
    %45 = arith.addf %39, %44 : vector<24x96xf32>
    %46 = vector.extract_strided_slice %34 {offsets = [0, 2, 0], sizes = [2, 12, 112], strides = [1, 1, 1]} : vector<2x14x112xbf16> to vector<2x12x112xbf16>
    %47 = vector.shape_cast %46 : vector<2x12x112xbf16> to vector<24x112xbf16>
    %c2_23 = arith.constant 2 : index
    %c0_24 = arith.constant 0 : index
    %c0_25 = arith.constant 0 : index
    %48 = vector.load %arg4[%c2_23, %c0_24, %c0_25] : memref<3x112x96xbf16, #tpu.memory_space<vmem>>, vector<1x112x96xbf16>
    %49 = vector.shape_cast %48 : vector<1x112x96xbf16> to vector<112x96xbf16>
    %cst_26 = arith.constant dense<0.000000e+00> : vector<24x96xf32>
    %50 = tpu.matmul %47, %49, %cst_26 {dimension_numbers = #tpu.dot_dimension_numbers<[1], [0], [0], [1], [0, 0, 1, 1], [], []>} : vector<24x112xbf16>, vector<112x96xbf16>, vector<24x96xf32> -> vector<24x96xf32>
    %51 = arith.addf %45, %50 : vector<24x96xf32>
    %c0_27 = arith.constant 0 : index
    %c0_28 = arith.constant 0 : index
    %52 = vector.load %arg5[%c0_27, %c0_28] : memref<1x96xf32, #tpu.memory_space<vmem>>, vector<1x96xf32>
    %53 = vector.broadcast %52 : vector<1x96xf32> to vector<24x96xf32>
    %54 = arith.addf %51, %53 : vector<24x96xf32>
    %cst_29 = arith.constant 0.000000e+00 : f32
    %55 = vector.broadcast %cst_29 : f32 to vector<24x96xf32>
    %56 = arith.maximumf %54, %55 : vector<24x96xf32>
    %57 = vector.shape_cast %56 : vector<24x96xf32> to vector<2x12x96xf32>
    %58 = arith.truncf %57 : vector<2x12x96xf32> to vector<2x12x96xbf16>
    %59 = vector.extract_strided_slice %58 {offsets = [0, 0, 0], sizes = [2, 10, 96], strides = [1, 1, 1]} : vector<2x12x96xbf16> to vector<2x10x96xbf16>
    %60 = vector.shape_cast %59 : vector<2x10x96xbf16> to vector<20x96xbf16>
    %c0_30 = arith.constant 0 : index
    %c0_31 = arith.constant 0 : index
    %c0_32 = arith.constant 0 : index
    %61 = vector.load %arg6[%c0_30, %c0_31, %c0_32] : memref<3x96x80xbf16, #tpu.memory_space<vmem>>, vector<1x96x80xbf16>
    %62 = vector.shape_cast %61 : vector<1x96x80xbf16> to vector<96x80xbf16>
    %cst_33 = arith.constant dense<0.000000e+00> : vector<20x80xf32>
    %63 = tpu.matmul %60, %62, %cst_33 {dimension_numbers = #tpu.dot_dimension_numbers<[1], [0], [0], [1], [0, 0, 1, 1], [], []>} : vector<20x96xbf16>, vector<96x80xbf16>, vector<20x80xf32> -> vector<20x80xf32>
    %64 = vector.extract_strided_slice %58 {offsets = [0, 1, 0], sizes = [2, 10, 96], strides = [1, 1, 1]} : vector<2x12x96xbf16> to vector<2x10x96xbf16>
    %65 = vector.shape_cast %64 : vector<2x10x96xbf16> to vector<20x96xbf16>
    %c1_34 = arith.constant 1 : index
    %c0_35 = arith.constant 0 : index
    %c0_36 = arith.constant 0 : index
    %66 = vector.load %arg6[%c1_34, %c0_35, %c0_36] : memref<3x96x80xbf16, #tpu.memory_space<vmem>>, vector<1x96x80xbf16>
    %67 = vector.shape_cast %66 : vector<1x96x80xbf16> to vector<96x80xbf16>
    %cst_37 = arith.constant dense<0.000000e+00> : vector<20x80xf32>
    %68 = tpu.matmul %65, %67, %cst_37 {dimension_numbers = #tpu.dot_dimension_numbers<[1], [0], [0], [1], [0, 0, 1, 1], [], []>} : vector<20x96xbf16>, vector<96x80xbf16>, vector<20x80xf32> -> vector<20x80xf32>
    %69 = arith.addf %63, %68 : vector<20x80xf32>
    %70 = vector.extract_strided_slice %58 {offsets = [0, 2, 0], sizes = [2, 10, 96], strides = [1, 1, 1]} : vector<2x12x96xbf16> to vector<2x10x96xbf16>
    %71 = vector.shape_cast %70 : vector<2x10x96xbf16> to vector<20x96xbf16>
    %c2_38 = arith.constant 2 : index
    %c0_39 = arith.constant 0 : index
    %c0_40 = arith.constant 0 : index
    %72 = vector.load %arg6[%c2_38, %c0_39, %c0_40] : memref<3x96x80xbf16, #tpu.memory_space<vmem>>, vector<1x96x80xbf16>
    %73 = vector.shape_cast %72 : vector<1x96x80xbf16> to vector<96x80xbf16>
    %cst_41 = arith.constant dense<0.000000e+00> : vector<20x80xf32>
    %74 = tpu.matmul %71, %73, %cst_41 {dimension_numbers = #tpu.dot_dimension_numbers<[1], [0], [0], [1], [0, 0, 1, 1], [], []>} : vector<20x96xbf16>, vector<96x80xbf16>, vector<20x80xf32> -> vector<20x80xf32>
    %75 = arith.addf %69, %74 : vector<20x80xf32>
    %c0_42 = arith.constant 0 : index
    %c0_43 = arith.constant 0 : index
    %76 = vector.load %arg7[%c0_42, %c0_43] : memref<1x80xf32, #tpu.memory_space<vmem>>, vector<1x80xf32>
    %77 = vector.broadcast %76 : vector<1x80xf32> to vector<20x80xf32>
    %78 = arith.addf %75, %77 : vector<20x80xf32>
    %cst_44 = arith.constant 0.000000e+00 : f32
    %79 = vector.broadcast %cst_44 : f32 to vector<20x80xf32>
    %80 = arith.maximumf %78, %79 : vector<20x80xf32>
    %81 = vector.shape_cast %80 : vector<20x80xf32> to vector<2x10x80xf32>
    %82 = vector.extract_strided_slice %81 {offsets = [0, 0, 0], sizes = [2, 1, 80], strides = [1, 1, 1]} : vector<2x10x80xf32> to vector<2x1x80xf32>
    %83 = vector.extract_strided_slice %81 {offsets = [0, 2, 0], sizes = [2, 1, 80], strides = [1, 1, 1]} : vector<2x10x80xf32> to vector<2x1x80xf32>
    %84 = vector.extract_strided_slice %81 {offsets = [0, 4, 0], sizes = [2, 1, 80], strides = [1, 1, 1]} : vector<2x10x80xf32> to vector<2x1x80xf32>
    %85 = vector.extract_strided_slice %81 {offsets = [0, 6, 0], sizes = [2, 1, 80], strides = [1, 1, 1]} : vector<2x10x80xf32> to vector<2x1x80xf32>
    %86 = vector.extract_strided_slice %81 {offsets = [0, 8, 0], sizes = [2, 1, 80], strides = [1, 1, 1]} : vector<2x10x80xf32> to vector<2x1x80xf32>
    %87 = tpu.concatenate %82, %83, %84, %85, %86 in 1 : vector<2x1x80xf32>, vector<2x1x80xf32>, vector<2x1x80xf32>, vector<2x1x80xf32>, vector<2x1x80xf32> -> vector<2x5x80xf32>
    %88 = arith.truncf %87 : vector<2x5x80xf32> to vector<2x5x80xbf16>
    %89 = vector.extract_strided_slice %88 {offsets = [0, 0, 0], sizes = [2, 3, 80], strides = [1, 1, 1]} : vector<2x5x80xbf16> to vector<2x3x80xbf16>
    %90 = vector.shape_cast %89 : vector<2x3x80xbf16> to vector<6x80xbf16>
    %c0_45 = arith.constant 0 : index
    %c0_46 = arith.constant 0 : index
    %c0_47 = arith.constant 0 : index
    %91 = vector.load %arg8[%c0_45, %c0_46, %c0_47] : memref<3x80x48xbf16, #tpu.memory_space<vmem>>, vector<1x80x48xbf16>
    %92 = vector.shape_cast %91 : vector<1x80x48xbf16> to vector<80x48xbf16>
    %cst_48 = arith.constant dense<0.000000e+00> : vector<6x48xf32>
    %93 = tpu.matmul %90, %92, %cst_48 {dimension_numbers = #tpu.dot_dimension_numbers<[1], [0], [0], [1], [0, 0, 1, 1], [], []>} : vector<6x80xbf16>, vector<80x48xbf16>, vector<6x48xf32> -> vector<6x48xf32>
    %94 = vector.extract_strided_slice %88 {offsets = [0, 1, 0], sizes = [2, 3, 80], strides = [1, 1, 1]} : vector<2x5x80xbf16> to vector<2x3x80xbf16>
    %95 = vector.shape_cast %94 : vector<2x3x80xbf16> to vector<6x80xbf16>
    %c1_49 = arith.constant 1 : index
    %c0_50 = arith.constant 0 : index
    %c0_51 = arith.constant 0 : index
    %96 = vector.load %arg8[%c1_49, %c0_50, %c0_51] : memref<3x80x48xbf16, #tpu.memory_space<vmem>>, vector<1x80x48xbf16>
    %97 = vector.shape_cast %96 : vector<1x80x48xbf16> to vector<80x48xbf16>
    %cst_52 = arith.constant dense<0.000000e+00> : vector<6x48xf32>
    %98 = tpu.matmul %95, %97, %cst_52 {dimension_numbers = #tpu.dot_dimension_numbers<[1], [0], [0], [1], [0, 0, 1, 1], [], []>} : vector<6x80xbf16>, vector<80x48xbf16>, vector<6x48xf32> -> vector<6x48xf32>
    %99 = arith.addf %93, %98 : vector<6x48xf32>
    %100 = vector.extract_strided_slice %88 {offsets = [0, 2, 0], sizes = [2, 3, 80], strides = [1, 1, 1]} : vector<2x5x80xbf16> to vector<2x3x80xbf16>
    %101 = vector.shape_cast %100 : vector<2x3x80xbf16> to vector<6x80xbf16>
    %c2_53 = arith.constant 2 : index
    %c0_54 = arith.constant 0 : index
    %c0_55 = arith.constant 0 : index
    %102 = vector.load %arg8[%c2_53, %c0_54, %c0_55] : memref<3x80x48xbf16, #tpu.memory_space<vmem>>, vector<1x80x48xbf16>
    %103 = vector.shape_cast %102 : vector<1x80x48xbf16> to vector<80x48xbf16>
    %cst_56 = arith.constant dense<0.000000e+00> : vector<6x48xf32>
    %104 = tpu.matmul %101, %103, %cst_56 {dimension_numbers = #tpu.dot_dimension_numbers<[1], [0], [0], [1], [0, 0, 1, 1], [], []>} : vector<6x80xbf16>, vector<80x48xbf16>, vector<6x48xf32> -> vector<6x48xf32>
    %105 = arith.addf %99, %104 : vector<6x48xf32>
    %c0_57 = arith.constant 0 : index
    %c0_58 = arith.constant 0 : index
    %106 = vector.load %arg9[%c0_57, %c0_58] : memref<1x48xf32, #tpu.memory_space<vmem>>, vector<1x48xf32>
    %107 = vector.broadcast %106 : vector<1x48xf32> to vector<6x48xf32>
    %108 = arith.addf %105, %107 : vector<6x48xf32>
    %cst_59 = arith.constant 0.000000e+00 : f32
    %109 = vector.broadcast %cst_59 : f32 to vector<6x48xf32>
    %110 = arith.maximumf %108, %109 : vector<6x48xf32>
    %111 = vector.shape_cast %110 : vector<6x48xf32> to vector<2x3x48xf32>
    %112 = arith.truncf %111 : vector<2x3x48xf32> to vector<2x3x48xbf16>
    %113 = vector.extract_strided_slice %112 {offsets = [0, 0, 0], sizes = [2, 1, 48], strides = [1, 1, 1]} : vector<2x3x48xbf16> to vector<2x1x48xbf16>
    %114 = vector.shape_cast %113 : vector<2x1x48xbf16> to vector<2x48xbf16>
    %c0_60 = arith.constant 0 : index
    %c0_61 = arith.constant 0 : index
    %c0_62 = arith.constant 0 : index
    %115 = vector.load %arg10[%c0_60, %c0_61, %c0_62] : memref<3x48x32xbf16, #tpu.memory_space<vmem>>, vector<1x48x32xbf16>
    %116 = vector.shape_cast %115 : vector<1x48x32xbf16> to vector<48x32xbf16>
    %cst_63 = arith.constant dense<0.000000e+00> : vector<2x32xf32>
    %117 = tpu.matmul %114, %116, %cst_63 {dimension_numbers = #tpu.dot_dimension_numbers<[1], [0], [0], [1], [0, 0, 1, 1], [], []>} : vector<2x48xbf16>, vector<48x32xbf16>, vector<2x32xf32> -> vector<2x32xf32>
    %118 = vector.extract_strided_slice %112 {offsets = [0, 1, 0], sizes = [2, 1, 48], strides = [1, 1, 1]} : vector<2x3x48xbf16> to vector<2x1x48xbf16>
    %119 = vector.shape_cast %118 : vector<2x1x48xbf16> to vector<2x48xbf16>
    %c1_64 = arith.constant 1 : index
    %c0_65 = arith.constant 0 : index
    %c0_66 = arith.constant 0 : index
    %120 = vector.load %arg10[%c1_64, %c0_65, %c0_66] : memref<3x48x32xbf16, #tpu.memory_space<vmem>>, vector<1x48x32xbf16>
    %121 = vector.shape_cast %120 : vector<1x48x32xbf16> to vector<48x32xbf16>
    %cst_67 = arith.constant dense<0.000000e+00> : vector<2x32xf32>
    %122 = tpu.matmul %119, %121, %cst_67 {dimension_numbers = #tpu.dot_dimension_numbers<[1], [0], [0], [1], [0, 0, 1, 1], [], []>} : vector<2x48xbf16>, vector<48x32xbf16>, vector<2x32xf32> -> vector<2x32xf32>
    %123 = arith.addf %117, %122 : vector<2x32xf32>
    %124 = vector.extract_strided_slice %112 {offsets = [0, 2, 0], sizes = [2, 1, 48], strides = [1, 1, 1]} : vector<2x3x48xbf16> to vector<2x1x48xbf16>
    %125 = vector.shape_cast %124 : vector<2x1x48xbf16> to vector<2x48xbf16>
    %c2_68 = arith.constant 2 : index
    %c0_69 = arith.constant 0 : index
    %c0_70 = arith.constant 0 : index
    %126 = vector.load %arg10[%c2_68, %c0_69, %c0_70] : memref<3x48x32xbf16, #tpu.memory_space<vmem>>, vector<1x48x32xbf16>
    %127 = vector.shape_cast %126 : vector<1x48x32xbf16> to vector<48x32xbf16>
    %cst_71 = arith.constant dense<0.000000e+00> : vector<2x32xf32>
    %128 = tpu.matmul %125, %127, %cst_71 {dimension_numbers = #tpu.dot_dimension_numbers<[1], [0], [0], [1], [0, 0, 1, 1], [], []>} : vector<2x48xbf16>, vector<48x32xbf16>, vector<2x32xf32> -> vector<2x32xf32>
    %129 = arith.addf %123, %128 : vector<2x32xf32>
    %c0_72 = arith.constant 0 : index
    %c0_73 = arith.constant 0 : index
    %130 = vector.load %arg11[%c0_72, %c0_73] : memref<1x32xf32, #tpu.memory_space<vmem>>, vector<1x32xf32>
    %131 = vector.broadcast %130 : vector<1x32xf32> to vector<2x32xf32>
    %132 = arith.addf %129, %131 : vector<2x32xf32>
    %cst_74 = arith.constant 0.000000e+00 : f32
    %133 = vector.broadcast %cst_74 : f32 to vector<2x32xf32>
    %134 = arith.maximumf %132, %133 : vector<2x32xf32>
    %135 = arith.truncf %134 : vector<2x32xf32> to vector<2x32xbf16>
    %c0_75 = arith.constant 0 : index
    %c0_76 = arith.constant 0 : index
    %136 = vector.load %arg12[%c0_75, %c0_76] : memref<32x10xbf16, #tpu.memory_space<vmem>>, vector<32x10xbf16>
    %cst_77 = arith.constant dense<0.000000e+00> : vector<2x10xf32>
    %137 = tpu.matmul %135, %136, %cst_77 {dimension_numbers = #tpu.dot_dimension_numbers<[1], [0], [0], [1], [0, 0, 1, 1], [], []>} : vector<2x32xbf16>, vector<32x10xbf16>, vector<2x10xf32> -> vector<2x10xf32>
    %c0_78 = arith.constant 0 : index
    %c0_79 = arith.constant 0 : index
    %138 = vector.load %arg13[%c0_78, %c0_79] : memref<1x10xf32, #tpu.memory_space<vmem>>, vector<1x10xf32>
    %139 = vector.broadcast %138 : vector<1x10xf32> to vector<2x10xf32>
    %140 = arith.addf %137, %139 : vector<2x10xf32>
    %c0_80 = arith.constant 0 : index
    %c0_81 = arith.constant 0 : index
    %141 = vector.load %arg14[%c0_80, %c0_81] : memref<2x10xf32, #tpu.memory_space<vmem>>, vector<2x10xf32>
    tpu.vector_store %arg14[%c0_80, %c0_81], %140 {strides = array<i32>} : memref<2x10xf32, #tpu.memory_space<vmem>>, vector<2x10xf32>,
    return
  }
  func.func @transform_0(%arg0: i32) -> (i32, i32, i32, i32) {
    %c0_i32 = arith.constant 0 : i32
    %c0_i32_0 = arith.constant 0 : i32
    %c0_i32_1 = arith.constant 0 : i32
    %c0_i32_2 = arith.constant 0 : i32
    return %arg0, %c0_i32, %c0_i32_0, %c0_i32_1 : i32, i32, i32, i32
  }
  func.func @transform_1(%arg0: i32) -> (i32, i32, i32) {
    %c0_i32 = arith.constant 0 : i32
    %c0_i32_0 = arith.constant 0 : i32
    %c0_i32_1 = arith.constant 0 : i32
    %c0_i32_2 = arith.constant 0 : i32
    return %c0_i32, %c0_i32_0, %c0_i32_1 : i32, i32, i32
  }
  func.func @transform_2(%arg0: i32) -> (i32, i32) {
    %c0_i32 = arith.constant 0 : i32
    %c0_i32_0 = arith.constant 0 : i32
    %c0_i32_1 = arith.constant 0 : i32
    return %c0_i32, %c0_i32_0 : i32, i32
  }
  func.func @transform_3(%arg0: i32) -> (i32, i32, i32) {
    %c0_i32 = arith.constant 0 : i32
    %c0_i32_0 = arith.constant 0 : i32
    %c0_i32_1 = arith.constant 0 : i32
    %c0_i32_2 = arith.constant 0 : i32
    return %c0_i32, %c0_i32_0, %c0_i32_1 : i32, i32, i32
  }
  func.func @transform_4(%arg0: i32) -> (i32, i32) {
    %c0_i32 = arith.constant 0 : i32
    %c0_i32_0 = arith.constant 0 : i32
    %c0_i32_1 = arith.constant 0 : i32
    return %c0_i32, %c0_i32_0 : i32, i32
  }
  func.func @transform_5(%arg0: i32) -> (i32, i32, i32) {
    %c0_i32 = arith.constant 0 : i32
    %c0_i32_0 = arith.constant 0 : i32
    %c0_i32_1 = arith.constant 0 : i32
    %c0_i32_2 = arith.constant 0 : i32
    return %c0_i32, %c0_i32_0, %c0_i32_1 : i32, i32, i32
  }
  func.func @transform_6(%arg0: i32) -> (i32, i32) {
    %c0_i32 = arith.constant 0 : i32
    %c0_i32_0 = arith.constant 0 : i32
    %c0_i32_1 = arith.constant 0 : i32
    return %c0_i32, %c0_i32_0 : i32, i32
  }
  func.func @transform_7(%arg0: i32) -> (i32, i32, i32) {
    %c0_i32 = arith.constant 0 : i32
    %c0_i32_0 = arith.constant 0 : i32
    %c0_i32_1 = arith.constant 0 : i32
    %c0_i32_2 = arith.constant 0 : i32
    return %c0_i32, %c0_i32_0, %c0_i32_1 : i32, i32, i32
  }
  func.func @transform_8(%arg0: i32) -> (i32, i32) {
    %c0_i32 = arith.constant 0 : i32
    %c0_i32_0 = arith.constant 0 : i32
    %c0_i32_1 = arith.constant 0 : i32
    return %c0_i32, %c0_i32_0 : i32, i32
  }
  func.func @transform_9(%arg0: i32) -> (i32, i32, i32) {
    %c0_i32 = arith.constant 0 : i32
    %c0_i32_0 = arith.constant 0 : i32
    %c0_i32_1 = arith.constant 0 : i32
    %c0_i32_2 = arith.constant 0 : i32
    return %c0_i32, %c0_i32_0, %c0_i32_1 : i32, i32, i32
  }
  func.func @transform_10(%arg0: i32) -> (i32, i32) {
    %c0_i32 = arith.constant 0 : i32
    %c0_i32_0 = arith.constant 0 : i32
    %c0_i32_1 = arith.constant 0 : i32
    return %c0_i32, %c0_i32_0 : i32, i32
  }
  func.func @transform_11(%arg0: i32) -> (i32, i32) {
    %c0_i32 = arith.constant 0 : i32
    %c0_i32_0 = arith.constant 0 : i32
    %c0_i32_1 = arith.constant 0 : i32
    return %c0_i32, %c0_i32_0 : i32, i32
  }
  func.func @transform_12(%arg0: i32) -> (i32, i32) {
    %c0_i32 = arith.constant 0 : i32
    %c0_i32_0 = arith.constant 0 : i32
    %c0_i32_1 = arith.constant 0 : i32
    return %c0_i32, %c0_i32_0 : i32, i32
  }
  func.func @transform_13(%arg0: i32) -> (i32, i32) {
    %c0_i32 = arith.constant 0 : i32
    %c0_i32_0 = arith.constant 0 : i32
    return %arg0, %c0_i32 : i32, i32
  }
}

</mosaic_0001>

<llo_original>
// kernel: forward.1
$region0: #{forward.1}
  #allocation0 [shape = 'u32[]', space=smem, size = 0x4, offset = 0x4, fixed_abs, tag = 'smem constant byte address 0x4 - core index']
  #allocation1 [shape = 'u32[144,128]{1,0:T(1,128)}', space=vmem, size = 0x12000, scoped, tag = 'internal scratch']
  %s0 = inlined_call_operand.vmem [shape: f32[2,4,16,16], index: 0, kind: input, shape index: {}]
  %s1 = inlined_call_operand.vmem [shape: bf16[3,64,112], index: 1, kind: input, shape index: {}]
  %s2 = inlined_call_operand.vmem [shape: f32[1,112], index: 2, kind: input, shape index: {}]
  %s3 = inlined_call_operand.vmem [shape: bf16[3,112,96], index: 3, kind: input, shape index: {}]
  %s4 = inlined_call_operand.vmem [shape: f32[1,96], index: 4, kind: input, shape index: {}]
  %s5 = inlined_call_operand.vmem [shape: bf16[3,96,80], index: 5, kind: input, shape index: {}]
  %s6 = inlined_call_operand.vmem [shape: f32[1,80], index: 6, kind: input, shape index: {}]
  %s7 = inlined_call_operand.vmem [shape: bf16[3,80,48], index: 7, kind: input, shape index: {}]
  %s8 = inlined_call_operand.vmem [shape: f32[1,48], index: 8, kind: input, shape index: {}]
  %s9 = inlined_call_operand.vmem [shape: bf16[3,48,32], index: 9, kind: input, shape index: {}]
  %s10 = inlined_call_operand.vmem [shape: f32[1,32], index: 10, kind: input, shape index: {}]
  %s11 = inlined_call_operand.vmem [shape: bf16[32,10], index: 11, kind: input, shape index: {}]
  %s12 = inlined_call_operand.vmem [shape: f32[1,10], index: 12, kind: input, shape index: {}]
  %s13 = inlined_call_operand.hbm [shape: f32[2,10], index: 13, kind: output, shape index: {}]
  %s14 = sld [smem:[#allocation0]]
  $region62: #{forward.1} parent=0
    _
  %s16 = ssub.s32 1, %s14
  %s17 = scalar_select 0, %s16, %s14
  $region1: #{forward.1} parent=0
    #allocation2 [shape = 'u8[1024]{0}', space=vmem, size = 0x400, scoped, tag = 'output window, operand 0, single buffered']
    #allocation3 [shape = 's32[1]{0}', space=sflag, size = 0x4, scoped, tag = 'scoped memory for forward.1']
    %18 = vsyncpa [#allocation3], 0
    // Predicated region
    $region2: #{forward.1} parent=1 // pred_check
      _
    $region3: #{forward.1} parent=1 // pred_check_branch
      %20 = sbr.rel (0) target = $region5
    $region4: #{forward.1} parent=1 // pred_region
      _
    $region5: #{forward.1} parent=1 // pred_fallthru
      _
    // Predicated region
    $region6: #{forward.1} parent=1 // pred_check
      _
    $region7: #{forward.1} parent=1 // pred_check_branch
      %22 = sbr.rel (0) target = $region9
    $region8: #{forward.1} parent=1 // pred_region
      _
    $region9: #{forward.1} parent=1 // pred_fallthru
      _
    // Predicated region
    $region10: #{forward.1} parent=1 // pred_check
      _
    $region11: #{forward.1} parent=1 // pred_check_branch
      %24 = sbr.rel (0) target = $region13
    $region12: #{forward.1} parent=1 // pred_region
      _
    $region13: #{forward.1} parent=1 // pred_fallthru
      _
    // Predicated region
    $region14: #{forward.1} parent=1 // pred_check
      _
    $region15: #{forward.1} parent=1 // pred_check_branch
      %26 = sbr.rel (0) target = $region17
    $region16: #{forward.1} parent=1 // pred_region
      _
    $region17: #{forward.1} parent=1 // pred_fallthru
      _
    // Predicated region
    $region18: #{forward.1} parent=1 // pred_check
      _
    $region19: #{forward.1} parent=1 // pred_check_branch
      %28 = sbr.rel (0) target = $region21
    $region20: #{forward.1} parent=1 // pred_region
      _
    $region21: #{forward.1} parent=1 // pred_fallthru
      _
    // Predicated region
    $region22: #{forward.1} parent=1 // pred_check
      _
    $region23: #{forward.1} parent=1 // pred_check_branch
      %30 = sbr.rel (0) target = $region25
    $region24: #{forward.1} parent=1 // pred_region
      _
    $region25: #{forward.1} parent=1 // pred_fallthru
      _
    // Predicated region
    $region26: #{forward.1} parent=1 // pred_check
      _
    $region27: #{forward.1} parent=1 // pred_check_branch
      %32 = sbr.rel (0) target = $region29
    $region28: #{forward.1} parent=1 // pred_region
      _
    $region29: #{forward.1} parent=1 // pred_fallthru
      _
    // Predicated region
    $region30: #{forward.1} parent=1 // pred_check
      _
    $region31: #{forward.1} parent=1 // pred_check_branch
      %34 = sbr.rel (0) target = $region33
    $region32: #{forward.1} parent=1 // pred_region
      _
    $region33: #{forward.1} parent=1 // pred_fallthru
      _
    // Predicated region
    $region34: #{forward.1} parent=1 // pred_check
      _
    $region35: #{forward.1} parent=1 // pred_check_branch
      %36 = sbr.rel (0) target = $region37
    $region36: #{forward.1} parent=1 // pred_region
      _
    $region37: #{forward.1} parent=1 // pred_fallthru
      _
    // Predicated region
    $region38: #{forward.1} parent=1 // pred_check
      _
    $region39: #{forward.1} parent=1 // pred_check_branch
      %38 = sbr.rel (0) target = $region41
    $region40: #{forward.1} parent=1 // pred_region
      _
    $region41: #{forward.1} parent=1 // pred_fallthru
      _
    // Predicated region
    $region42: #{forward.1} parent=1 // pred_check
      _
    $region43: #{forward.1} parent=1 // pred_check_branch
      %40 = sbr.rel (0) target = $region45
    $region44: #{forward.1} parent=1 // pred_region
      _
    $region45: #{forward.1} parent=1 // pred_fallthru
      _
    // Predicated region
    $region46: #{forward.1} parent=1 // pred_check
      _
    $region47: #{forward.1} parent=1 // pred_check_branch
      %42 = sbr.rel (0) target = $region49
    $region48: #{forward.1} parent=1 // pred_region
      _
    $region49: #{forward.1} parent=1 // pred_fallthru
      _
    // Predicated region
    $region50: #{forward.1} parent=1 // pred_check
      _
    $region51: #{forward.1} parent=1 // pred_check_branch
      %44 = sbr.rel (0) target = $region53
    $region52: #{forward.1} parent=1 // pred_region
      _
    $region53: #{forward.1} parent=1 // pred_fallthru
      _
    %v46 = vld [vmem:[%s0] sm:$0xff]
    %v47 = vld [vmem:[%s0 + $0x8] sm:$0xff]
    %v48 = vld [vmem:[%s0 + $0x10] sm:$0xff]
    %v49 = vld [vmem:[%s0 + $0x18] sm:$0xff]
    %v50 = vld [vmem:[%s0 + $0x20] sm:$0xff]
    %v51 = vld [vmem:[%s0 + $0x28] sm:$0xff]
    %v52 = vld [vmem:[%s0 + $0x30] sm:$0xff]
    %v53 = vld [vmem:[%s0 + $0x38] sm:$0xff]
    %v54 = vld [vmem:[%s0 + $0x40] sm:$0xff]
    %v55 = vld [vmem:[%s0 + $0x48] sm:$0xff]
    %v56 = vld [vmem:[%s0 + $0x50] sm:$0xff]
    %v57 = vld [vmem:[%s0 + $0x58] sm:$0xff]
    %v58 = vld [vmem:[%s0 + $0x60] sm:$0xff]
    %v59 = vld [vmem:[%s0 + $0x68] sm:$0xff]
    %v60 = vld [vmem:[%s0 + $0x70] sm:$0xff]
    %v61 = vld [vmem:[%s0 + $0x78] sm:$0xff]
    %66 = vrot.lane.b32.xlu0 %v48, 16
    %v67 = vpop.permute.xlu0 %66
    %68 = vrot.lane.b32.xlu0 %v49, 16
    %v69 = vpop.permute.xlu0 %68
    %70 = vrot.lane.b32.xlu0 %v56, 16
    %v71 = vpop.permute.xlu0 %70
    %72 = vrot.lane.b32.xlu0 %v57, 16
    %v73 = vpop.permute.xlu0 %72
    %82 = vrot.lane.b32.xlu0 %v50, 32
    %v83 = vpop.permute.xlu0 %82
    %84 = vrot.lane.b32.xlu0 %v51, 32
    %v85 = vpop.permute.xlu0 %84
    %86 = vrot.lane.b32.xlu0 %v58, 32
    %v87 = vpop.permute.xlu0 %86
    %88 = vrot.lane.b32.xlu0 %v59, 32
    %v89 = vpop.permute.xlu0 %88
    %98 = vrot.lane.b32.xlu0 %v52, 48
    %v99 = vpop.permute.xlu0 %98
    %100 = vrot.lane.b32.xlu0 %v53, 48
    %v101 = vpop.permute.xlu0 %100
    %102 = vrot.lane.b32.xlu0 %v60, 48
    %v103 = vpop.permute.xlu0 %102
    %104 = vrot.lane.b32.xlu0 %v61, 48
    %v105 = vpop.permute.xlu0 %104
    %vm110 = vcmask 130048
    %v111 = vsel %vm110, %v46, %v67
    %v112 = vsel %vm110, %v47, %v69
    %v113 = vsel %vm110, %v54, %v71
    %v114 = vsel %vm110, %v55, %v73
    %vm115 = vcmask 261120
    %v116 = vsel %vm115, %v111, %v83
    %v117 = vsel %vm115, %v112, %v85
    %v118 = vsel %vm115, %v113, %v87
    %v119 = vsel %vm115, %v114, %v89
    %vm120 = vcmask 392192
    %v121 = vsel %vm120, %v116, %v99
    %v122 = vsel %vm120, %v117, %v101
    %v123 = vsel %vm120, %v118, %v103
    %v124 = vsel %vm120, %v119, %v105
    %v125 = vpack.c.bf16 %v122, %v121
    %v126 = vpack.c.bf16 %v124, %v123
    %v129 = vcombine.high %v125, %v125
    %v131 = vunpack.c.l.s4 1966171168
    %v132 = vunpack.c.0.s8 %v131
    %v133 = vlaneseq
    %v134 = vshrl.u32 %v133, 7
    %v135 = vsub.s32 %v132, %v134
    %v136 = vrot.slane %v125, %v135
    %v138 = vunpack.c.l.s4 1966171168
    %v139 = vunpack.c.0.s8 %v138
    %v140 = vlaneseq
    %v141 = vshrl.u32 %v140, 7
    %v142 = vsub.s32 %v139, %v141
    %v143 = vrot.slane %v129, %v142
    %v144 = vcombine.high %v136, %v136
    %v145 = vcombine.high %v143, %v143
    %v147 = vunpack.c.l.s4 1966171168
    %v148 = vunpack.c.0.s8 %v147
    %v149 = vlaneseq
    %v150 = vshrl.u32 %v149, 7
    %v151 = vsub.s32 %v148, %v150
    %v152 = vrot.slane %v136, %v151
    %v154 = vunpack.c.l.s4 1966171168
    %v155 = vunpack.c.0.s8 %v154
    %v156 = vlaneseq
    %v157 = vshrl.u32 %v156, 7
    %v158 = vsub.s32 %v155, %v157
    %v159 = vrot.slane %v143, %v158
    %v161 = vunpack.c.l.s4 1966171168
    %v162 = vunpack.c.0.s8 %v161
    %v163 = vlaneseq
    %v164 = vshrl.u32 %v163, 7
    %v165 = vsub.s32 %v162, %v164
    %v166 = vrot.slane %v144, %v165
    %v168 = vunpack.c.l.s4 1966171168
    %v169 = vunpack.c.0.s8 %v168
    %v170 = vlaneseq
    %v171 = vshrl.u32 %v170, 7
    %v172 = vsub.s32 %v169, %v171
    %v173 = vrot.slane %v145, %v172
    %v174 = vcombine.high %v152, %v152
    %v175 = vcombine.high %v159, %v159
    %v176 = vcombine.high %v166, %v166
    %v177 = vcombine.high %v126, %v126
    %v179 = vunpack.c.l.s4 1966171168
    %v180 = vunpack.c.0.s8 %v179
    %v181 = vlaneseq
    %v182 = vshrl.u32 %v181, 7
    %v183 = vsub.s32 %v180, %v182
    %v184 = vrot.slane %v126, %v183
    %v186 = vunpack.c.l.s4 1966171168
    %v187 = vunpack.c.0.s8 %v186
    %v188 = vlaneseq
    %v189 = vshrl.u32 %v188, 7
    %v190 = vsub.s32 %v187, %v189
    %v191 = vrot.slane %v177, %v190
    %v192 = vcombine.high %v184, %v184
    %v193 = vcombine.high %v191, %v191
    %v195 = vunpack.c.l.s4 1966171168
    %v196 = vunpack.c.0.s8 %v195
    %v197 = vlaneseq
    %v198 = vshrl.u32 %v197, 7
    %v199 = vsub.s32 %v196, %v198
    %v200 = vrot.slane %v184, %v199
    %v202 = vunpack.c.l.s4 1966171168
    %v203 = vunpack.c.0.s8 %v202
    %v204 = vlaneseq
    %v205 = vshrl.u32 %v204, 7
    %v206 = vsub.s32 %v203, %v205
    %v207 = vrot.slane %v191, %v206
    %v209 = vunpack.c.l.s4 1966171168
    %v210 = vunpack.c.0.s8 %v209
    %v211 = vlaneseq
    %v212 = vshrl.u32 %v211, 7
    %v213 = vsub.s32 %v210, %v212
    %v214 = vrot.slane %v192, %v213
    %v216 = vunpack.c.l.s4 1966171168
    %v217 = vunpack.c.0.s8 %v216
    %v218 = vlaneseq
    %v219 = vshrl.u32 %v218, 7
    %v220 = vsub.s32 %v217, %v219
    %v221 = vrot.slane %v193, %v220
    %v222 = vcombine.high %v200, %v200
    %v223 = vcombine.high %v207, %v207
    %v224 = vcombine.high %v214, %v214
    %v225 = vld [vmem:[%s1] sm:$0xf]
    %v226 = vld [vmem:[%s1 + $0x4] sm:$0xf]
    %v227 = vld [vmem:[%s1 + $0x8] sm:$0xf]
    %v228 = vld [vmem:[%s1 + $0xc] sm:$0xf]
    %v229 = vld [vmem:[%s1 + $0x10] sm:$0xf]
    %v230 = vld [vmem:[%s1 + $0x14] sm:$0xf]
    %v231 = vld [vmem:[%s1 + $0x18] sm:$0xf]
    %v232 = vld [vmem:[%s1 + $0x1c] sm:$0xf]
    %v233 = vcombine.high %v173, %v173
    %v234 = vcombine.high %v221, %v221
    %vm235 = vsmask.f32 256
    %vm236 = vsmask.f32 1284
    %vm237 = vmor %vm235, %vm236
    %vm238 = vsmask.f32 2312
    %vm239 = vmor %vm237, %vm238
    %vm240 = vsmask.f32 3340
    %vm241 = vmor %vm239, %vm240
    %vm242 = vsmask.f32 4368
    %vm243 = vmor %vm241, %vm242
    %vm244 = vsmask.f32 5396
    %vm245 = vmor %vm243, %vm244
    %vm246 = vsmask.f32 6424
    %vm247 = vmor %vm245, %vm246
    %vm248 = vsmask.f32 7452
    %vm249 = vmor %vm247, %vm248
    %v251 = vshrl.u32 %v152, 16
    %v253 = vrot.slane %v251, 7
    %v254 = vrot.slane %v253, 1
    %v256 = vshll.u32 %v166, 16
    %v258 = vsel %vm249, %v254, %v256
    %v259 = vshrl.u32 %v166, 16
    %v261 = vrot.slane %v259, 7
    %v262 = vrot.slane %v261, 1
    %v264 = vshll.u32 %v174, 16
    %v266 = vsel %vm249, %v262, %v264
    %v267 = vshrl.u32 %v174, 16
    %v269 = vrot.slane %v267, 7
    %v270 = vrot.slane %v269, 1
    %v272 = vshll.u32 %v176, 16
    %v274 = vsel %vm249, %v270, %v272
    %v275 = vshrl.u32 %v176, 16
    %v277 = vrot.slane %v275, 7
    %v278 = vrot.slane %v277, 1
    %v280 = vshll.u32 %v159, 16
    %v282 = vsel %vm249, %v278, %v280
    %v283 = vshrl.u32 %v159, 16
    %v285 = vrot.slane %v283, 7
    %v286 = vrot.slane %v285, 1
    %v288 = vshll.u32 %v173, 16
    %v290 = vsel %vm249, %v286, %v288
    %v291 = vshrl.u32 %v173, 16
    %v293 = vrot.slane %v291, 7
    %v294 = vrot.slane %v293, 1
    %v296 = vshll.u32 %v175, 16
    %v298 = vsel %vm249, %v294, %v296
    %v299 = vshrl.u32 %v175, 16
    %v301 = vrot.slane %v299, 7
    %v302 = vrot.slane %v301, 1
    %v304 = vshll.u32 %v233, 16
    %v306 = vsel %vm249, %v302, %v304
    %v308 = vshrl.u32 %v200, 16
    %v310 = vrot.slane %v308, 7
    %v311 = vrot.slane %v310, 1
    %v313 = vshll.u32 %v214, 16
    %v315 = vsel %vm249, %v311, %v313
    %v316 = vshrl.u32 %v214, 16
    %v318 = vrot.slane %v316, 7
    %v319 = vrot.slane %v318, 1
    %v321 = vshll.u32 %v222, 16
    %v323 = vsel %vm249, %v319, %v321
    %v324 = vshrl.u32 %v222, 16
    %v326 = vrot.slane %v324, 7
    %v327 = vrot.slane %v326, 1
    %v329 = vshll.u32 %v224, 16
    %v331 = vsel %vm249, %v327, %v329
    %v332 = vshrl.u32 %v224, 16
    %v334 = vrot.slane %v332, 7
    %v335 = vrot.slane %v334, 1
    %v337 = vshll.u32 %v207, 16
    %v339 = vsel %vm249, %v335, %v337
    %v340 = vshrl.u32 %v207, 16
    %v342 = vrot.slane %v340, 7
    %v343 = vrot.slane %v342, 1
    %v345 = vshll.u32 %v221, 16
    %v347 = vsel %vm249, %v343, %v345
    %v348 = vshrl.u32 %v221, 16
    %v350 = vrot.slane %v348, 7
    %v351 = vrot.slane %v350, 1
    %v353 = vshll.u32 %v223, 16
    %v355 = vsel %vm249, %v351, %v353
    %v356 = vshrl.u32 %v223, 16
    %v358 = vrot.slane %v356, 7
    %v359 = vrot.slane %v358, 1
    %v361 = vshll.u32 %v234, 16
    %v363 = vsel %vm249, %v359, %v361
    %s364 = scalar_lea.vmem %s1, 32
    %v365 = vld [vmem:[%s364] sm:$0xf]
    %v366 = vld [vmem:[%s364 + $0x4] sm:$0xf]
    %v367 = vld [vmem:[%s364 + $0x8] sm:$0xf]
    %v368 = vld [vmem:[%s364 + $0xc] sm:$0xf]
    %v369 = vld [vmem:[%s364 + $0x10] sm:$0xf]
    %v370 = vld [vmem:[%s364 + $0x14] sm:$0xf]
    %v371 = vld [vmem:[%s364 + $0x18] sm:$0xf]
    %v372 = vld [vmem:[%s364 + $0x1c] sm:$0xf]
    %v373 = vcombine.low %v258, %v266
    %v374 = vcombine.low %v274, %v282
    %v375 = vcombine.low %v290, %v298
    %v376 = vcombine.low %v306, %v315
    %v378 = vunpack.c.l.s4 1966171168
    %v379 = vunpack.c.0.s8 %v378
    %v380 = vlaneseq
    %v381 = vshrl.u32 %v380, 7
    %v382 = vsub.s32 %v379, %v381
    %v383 = vrot.slane %v373, %v382
    %v385 = vunpack.c.l.s4 1966171168
    %v386 = vunpack.c.0.s8 %v385
    %v387 = vlaneseq
    %v388 = vshrl.u32 %v387, 7
    %v389 = vsub.s32 %v386, %v388
    %v390 = vrot.slane %v374, %v389
    %v392 = vunpack.c.l.s4 1966171168
    %v393 = vunpack.c.0.s8 %v392
    %v394 = vlaneseq
    %v395 = vshrl.u32 %v394, 7
    %v396 = vsub.s32 %v393, %v395
    %v397 = vrot.slane %v375, %v396
    %v399 = vunpack.c.l.s4 1966171168
    %v400 = vunpack.c.0.s8 %v399
    %v401 = vlaneseq
    %v402 = vshrl.u32 %v401, 7
    %v403 = vsub.s32 %v400, %v402
    %v404 = vrot.slane %v376, %v403
    %v405 = vcombine.low %v383, %v390
    %v406 = vcombine.low %v397, %v404
    %v408 = vunpack.c.l.s4 1966171168
    %v409 = vunpack.c.0.s8 %v408
    %v410 = vlaneseq
    %v411 = vshrl.u32 %v410, 7
    %v412 = vsub.s32 %v409, %v411
    %v413 = vrot.slane %v405, %v412
    %v415 = vunpack.c.l.s4 1966171168
    %v416 = vunpack.c.0.s8 %v415
    %v417 = vlaneseq
    %v418 = vshrl.u32 %v417, 7
    %v419 = vsub.s32 %v416, %v418
    %v420 = vrot.slane %v406, %v419
    %v421 = vcombine.low %v413, %v420
    %v422 = vcombine.low %v323, %v331
    %v423 = vcombine.low %v339, %v347
    %v424 = vcombine.low %v355, %v363
    %v426 = vunpack.c.l.s4 1966171168
    %v427 = vunpack.c.0.s8 %v426
    %v428 = vlaneseq
    %v429 = vshrl.u32 %v428, 7
    %v430 = vsub.s32 %v427, %v429
    %v431 = vrot.slane %v422, %v430
    %v433 = vunpack.c.l.s4 1966171168
    %v434 = vunpack.c.0.s8 %v433
    %v435 = vlaneseq
    %v436 = vshrl.u32 %v435, 7
    %v437 = vsub.s32 %v434, %v436
    %v438 = vrot.slane %v423, %v437
    %v440 = vunpack.c.l.s4 1966171168
    %v441 = vunpack.c.0.s8 %v440
    %v442 = vlaneseq
    %v443 = vshrl.u32 %v442, 7
    %v444 = vsub.s32 %v441, %v443
    %v445 = vrot.slane %v424, %v444
    %v446 = vcombine.low %v431, %v438
    %v448 = vunpack.c.l.s4 1966171168
    %v449 = vunpack.c.0.s8 %v448
    %v450 = vlaneseq
    %v451 = vshrl.u32 %v450, 7
    %v452 = vsub.s32 %v449, %v451
    %v453 = vrot.slane %v446, %v452
    %v455 = vunpack.c.l.s4 1966171168
    %v456 = vunpack.c.0.s8 %v455
    %v457 = vlaneseq
    %v458 = vshrl.u32 %v457, 7
    %v459 = vsub.s32 %v456, %v458
    %v460 = vrot.slane %v445, %v459
    %v461 = vcombine.low %v453, %v460
    %v470 = vunpack.c.l.b16 %v365
    %v471 = vunpack.c.l.b16 %v366
    %v472 = vunpack.c.l.b16 %v367
    %v473 = vunpack.c.l.b16 %v368
    %v474 = vunpack.c.l.b16 %v369
    %v475 = vunpack.c.l.b16 %v370
    %v476 = vunpack.c.l.b16 %v371
    %v477 = vunpack.c.l.b16 %v372
    %v478 = vpack.c.b16 %v471, %v470
    %v479 = vpack.c.b16 %v473, %v472
    %v480 = vpack.c.b16 %v475, %v474
    %v481 = vpack.c.b16 %v477, %v476
    %vm486 = vcmask 523264
    %v488 = vsel %vm486, %v421, 0
    %v491 = vsel %vm486, %v461, 0
    %493 = vmatprep.subr.bf16.mxu0 0
    %494 = vmatpush1.bf16.msra.mxu0 %v478
    %495 = vmatprep.subr.bf16.mxu0 0
    %496 = vmatpush1.bf16.msra.mxu0 %v479
    %497 = vmatprep.subr.bf16.mxu0 0
    %498 = vmatpush1.bf16.msra.mxu0 %v480
    %499 = vmatprep.subr.bf16.mxu0 0
    %500 = vmatpush1.bf16.msra.mxu0 %v481
    %501 = vmatprep.subr.bf16.mxu0 0
    %502 = vmatpush1.bf16.msra.mxu0 0
    %503 = vmatprep.subr.bf16.mxu0 0
    %504 = vmatpush1.bf16.msra.mxu0 0
    %505 = vmatprep.subr.bf16.mxu0 0
    %506 = vmatpush1.bf16.msra.mxu0 0
    %507 = vmatprep.subr.bf16.mxu0 0
    %508 = vmatpush1.bf16.msra.mxu0 0
    %509 = vmatprep.subr.bf16.mxu0 0
    %510 = vmatpush1.bf16.msra.mxu0 0
    %511 = vmatprep.subr.bf16.mxu0 0
    %512 = vmatpush1.bf16.msra.mxu0 0
    %513 = vmatprep.subr.bf16.mxu0 0
    %514 = vmatpush1.bf16.msra.mxu0 0
    %515 = vmatprep.subr.bf16.mxu0 0
    %516 = vmatpush1.bf16.msra.mxu0 0
    %517 = vmatprep.subr.bf16.mxu0 0
    %518 = vmatpush1.bf16.msra.mxu0 0
    %519 = vmatprep.subr.bf16.mxu0 0
    %520 = vmatpush1.bf16.msra.mxu0 0
    %521 = vmatprep.subr.bf16.mxu0 0
    %522 = vmatpush1.bf16.msra.mxu0 0
    %523 = vmatprep.subr.bf16.mxu0 0
    %524 = vmatpush1.bf16.msra.mxu0 0
    %525 = vmatprep.mubr.bf16.mxu0 0
    %526 = vmatmul.mubr.bf16.gmra.mrb[0].mxu0 %v488
    %v527 = vpop.f32.mrb[0].mxu0
    %v528 = vadd.f32 0.0, %v527
    %v529 = vpop.f32.mrb[0].mxu0
    %v530 = vpop.f32.mrb[0].mxu0
    %v531 = vadd.f32 0.0, %v530
    %v532 = vpop.f32.mrb[0].mxu0
    %533 = vmatprep.mubr.bf16.mxu0 0
    %534 = vmatmul.mubr.bf16.gmra.mrb[0].mxu0 %v491
    %v535 = vpop.f32.mrb[0].mxu0
    %v536 = vadd.f32 0.0, %v535
    %v537 = vpop.f32.mrb[0].mxu0
    %v538 = vpop.f32.mrb[0].mxu0
    %v539 = vadd.f32 0.0, %v538
    %v540 = vpop.f32.mrb[0].mxu0
    %541 = vdwg.mxu0
    %v542 = vcombine.low %v152, %v166
    %v543 = vcombine.low %v174, %v176
    %v544 = vcombine.low %v159, %v173
    %v545 = vcombine.low %v175, %v200
    %v547 = vunpack.c.l.s4 1966171168
    %v548 = vunpack.c.0.s8 %v547
    %v549 = vlaneseq
    %v550 = vshrl.u32 %v549, 7
    %v551 = vsub.s32 %v548, %v550
    %v552 = vrot.slane %v542, %v551
    %v554 = vunpack.c.l.s4 1966171168
    %v555 = vunpack.c.0.s8 %v554
    %v556 = vlaneseq
    %v557 = vshrl.u32 %v556, 7
    %v558 = vsub.s32 %v555, %v557
    %v559 = vrot.slane %v543, %v558
    %v561 = vunpack.c.l.s4 1966171168
    %v562 = vunpack.c.0.s8 %v561
    %v563 = vlaneseq
    %v564 = vshrl.u32 %v563, 7
    %v565 = vsub.s32 %v562, %v564
    %v566 = vrot.slane %v544, %v565
    %v568 = vunpack.c.l.s4 1966171168
    %v569 = vunpack.c.0.s8 %v568
    %v570 = vlaneseq
    %v571 = vshrl.u32 %v570, 7
    %v572 = vsub.s32 %v569, %v571
    %v573 = vrot.slane %v545, %v572
    %v574 = vcombine.low %v552, %v559
    %v575 = vcombine.low %v566, %v573
    %v577 = vunpack.c.l.s4 1966171168
    %v578 = vunpack.c.0.s8 %v577
    %v579 = vlaneseq
    %v580 = vshrl.u32 %v579, 7
    %v581 = vsub.s32 %v578, %v580
    %v582 = vrot.slane %v574, %v581
    %v584 = vunpack.c.l.s4 1966171168
    %v585 = vunpack.c.0.s8 %v584
    %v586 = vlaneseq
    %v587 = vshrl.u32 %v586, 7
    %v588 = vsub.s32 %v585, %v587
    %v589 = vrot.slane %v575, %v588
    %v590 = vcombine.low %v582, %v589
    %v591 = vcombine.low %v214, %v222
    %v592 = vcombine.low %v224, %v207
    %v593 = vcombine.low %v221, %v223
    %v595 = vunpack.c.l.s4 1966171168
    %v596 = vunpack.c.0.s8 %v595
    %v597 = vlaneseq
    %v598 = vshrl.u32 %v597, 7
    %v599 = vsub.s32 %v596, %v598
    %v600 = vrot.slane %v591, %v599
    %v602 = vunpack.c.l.s4 1966171168
    %v603 = vunpack.c.0.s8 %v602
    %v604 = vlaneseq
    %v605 = vshrl.u32 %v604, 7
    %v606 = vsub.s32 %v603, %v605
    %v607 = vrot.slane %v592, %v606
    %v609 = vunpack.c.l.s4 1966171168
    %v610 = vunpack.c.0.s8 %v609
    %v611 = vlaneseq
    %v612 = vshrl.u32 %v611, 7
    %v613 = vsub.s32 %v610, %v612
    %v614 = vrot.slane %v593, %v613
    %v615 = vcombine.low %v600, %v607
    %v617 = vunpack.c.l.s4 1966171168
    %v618 = vunpack.c.0.s8 %v617
    %v619 = vlaneseq
    %v620 = vshrl.u32 %v619, 7
    %v621 = vsub.s32 %v618, %v620
    %v622 = vrot.slane %v615, %v621
    %v624 = vunpack.c.l.s4 1966171168
    %v625 = vunpack.c.0.s8 %v624
    %v626 = vlaneseq
    %v627 = vshrl.u32 %v626, 7
    %v628 = vsub.s32 %v625, %v627
    %v629 = vrot.slane %v614, %v628
    %v630 = vcombine.low %v622, %v629
    %v639 = vunpack.c.l.b16 %v225
    %v640 = vunpack.c.l.b16 %v226
    %v641 = vunpack.c.l.b16 %v227
    %v642 = vunpack.c.l.b16 %v228
    %v643 = vunpack.c.l.b16 %v229
    %v644 = vunpack.c.l.b16 %v230
    %v645 = vunpack.c.l.b16 %v231
    %v646 = vunpack.c.l.b16 %v232
    %v647 = vpack.c.b16 %v640, %v639
    %v648 = vpack.c.b16 %v642, %v641
    %v649 = vpack.c.b16 %v644, %v643
    %v650 = vpack.c.b16 %v646, %v645
    %v656 = vsel %vm486, %v590, 0
    %v659 = vsel %vm486, %v630, 0
    %661 = vmatprep.subr.bf16.mxu0 0
    %662 = vmatpush1.bf16.msra.mxu0 %v647
    %663 = vmatprep.subr.bf16.mxu0 0
    %664 = vmatpush1.bf16.msra.mxu0 %v648
    %665 = vmatprep.subr.bf16.mxu0 0
    %666 = vmatpush1.bf16.msra.mxu0 %v649
    %667 = vmatprep.subr.bf16.mxu0 0
    %668 = vmatpush1.bf16.msra.mxu0 %v650
    %669 = vmatprep.subr.bf16.mxu0 0
    %670 = vmatpush1.bf16.msra.mxu0 0
    %671 = vmatprep.subr.bf16.mxu0 0
    %672 = vmatpush1.bf16.msra.mxu0 0
    %673 = vmatprep.subr.bf16.mxu0 0
    %674 = vmatpush1.bf16.msra.mxu0 0
    %675 = vmatprep.subr.bf16.mxu0 0
    %676 = vmatpush1.bf16.msra.mxu0 0
    %677 = vmatprep.subr.bf16.mxu0 0
    %678 = vmatpush1.bf16.msra.mxu0 0
    %679 = vmatprep.subr.bf16.mxu0 0
    %680 = vmatpush1.bf16.msra.mxu0 0
    %681 = vmatprep.subr.bf16.mxu0 0
    %682 = vmatpush1.bf16.msra.mxu0 0
    %683 = vmatprep.subr.bf16.mxu0 0
    %684 = vmatpush1.bf16.msra.mxu0 0
    %685 = vmatprep.subr.bf16.mxu0 0
    %686 = vmatpush1.bf16.msra.mxu0 0
    %687 = vmatprep.subr.bf16.mxu0 0
    %688 = vmatpush1.bf16.msra.mxu0 0
    %689 = vmatprep.subr.bf16.mxu0 0
    %690 = vmatpush1.bf16.msra.mxu0 0
    %691 = vmatprep.subr.bf16.mxu0 0
    %692 = vmatpush1.bf16.msra.mxu0 0
    %693 = vmatprep.mubr.bf16.mxu0 0
    %694 = vmatmul.mubr.bf16.gmra.mrb[0].mxu0 %v656
    %v695 = vpop.f32.mrb[0].mxu0
    %v696 = vadd.f32 %v528, %v695
    %v697 = vpop.f32.mrb[0].mxu0
    %v698 = vpop.f32.mrb[0].mxu0
    %v699 = vadd.f32 %v531, %v698
    %v700 = vpop.f32.mrb[0].mxu0
    %701 = vmatprep.mubr.bf16.mxu0 0
    %702 = vmatmul.mubr.bf16.gmra.mrb[0].mxu0 %v659
    %v703 = vpop.f32.mrb[0].mxu0
    %v704 = vadd.f32 %v536, %v703
    %v705 = vpop.f32.mrb[0].mxu0
    %v706 = vpop.f32.mrb[0].mxu0
    %v707 = vadd.f32 %v539, %v706
    %v708 = vpop.f32.mrb[0].mxu0
    %709 = vdwg.mxu0
    %s710 = scalar_lea.vmem %s1, 64
    %v711 = vld [vmem:[%s710] sm:$0xf]
    %v712 = vld [vmem:[%s710 + $0x4] sm:$0xf]
    %v713 = vld [vmem:[%s710 + $0x8] sm:$0xf]
    %v714 = vld [vmem:[%s710 + $0xc] sm:$0xf]
    %v715 = vld [vmem:[%s710 + $0x10] sm:$0xf]
    %v716 = vld [vmem:[%s710 + $0x14] sm:$0xf]
    %v717 = vld [vmem:[%s710 + $0x18] sm:$0xf]
    %v718 = vld [vmem:[%s710 + $0x1c] sm:$0xf]
    %v719 = vcombine.low %v166, %v174
    %v720 = vcombine.low %v176, %v159
    %v721 = vcombine.low %v173, %v175
    %v722 = vcombine.low %v233, %v214
    %v724 = vunpack.c.l.s4 1966171168
    %v725 = vunpack.c.0.s8 %v724
    %v726 = vlaneseq
    %v727 = vshrl.u32 %v726, 7
    %v728 = vsub.s32 %v725, %v727
    %v729 = vrot.slane %v719, %v728
    %v731 = vunpack.c.l.s4 1966171168
    %v732 = vunpack.c.0.s8 %v731
    %v733 = vlaneseq
    %v734 = vshrl.u32 %v733, 7
    %v735 = vsub.s32 %v732, %v734
    %v736 = vrot.slane %v720, %v735
    %v738 = vunpack.c.l.s4 1966171168
    %v739 = vunpack.c.0.s8 %v738
    %v740 = vlaneseq
    %v741 = vshrl.u32 %v740, 7
    %v742 = vsub.s32 %v739, %v741
    %v743 = vrot.slane %v721, %v742
    %v745 = vunpack.c.l.s4 1966171168
    %v746 = vunpack.c.0.s8 %v745
    %v747 = vlaneseq
    %v748 = vshrl.u32 %v747, 7
    %v749 = vsub.s32 %v746, %v748
    %v750 = vrot.slane %v722, %v749
    %v751 = vcombine.low %v729, %v736
    %v752 = vcombine.low %v743, %v750
    %v754 = vunpack.c.l.s4 1966171168
    %v755 = vunpack.c.0.s8 %v754
    %v756 = vlaneseq
    %v757 = vshrl.u32 %v756, 7
    %v758 = vsub.s32 %v755, %v757
    %v759 = vrot.slane %v751, %v758
    %v761 = vunpack.c.l.s4 1966171168
    %v762 = vunpack.c.0.s8 %v761
    %v763 = vlaneseq
    %v764 = vshrl.u32 %v763, 7
    %v765 = vsub.s32 %v762, %v764
    %v766 = vrot.slane %v752, %v765
    %v767 = vcombine.low %v759, %v766
    %v768 = vcombine.low %v222, %v224
    %v769 = vcombine.low %v207, %v221
    %v770 = vcombine.low %v223, %v234
    %v772 = vunpack.c.l.s4 1966171168
    %v773 = vunpack.c.0.s8 %v772
    %v774 = vlaneseq
    %v775 = vshrl.u32 %v774, 7
    %v776 = vsub.s32 %v773, %v775
    %v777 = vrot.slane %v768, %v776
    %v779 = vunpack.c.l.s4 1966171168
    %v780 = vunpack.c.0.s8 %v779
    %v781 = vlaneseq
    %v782 = vshrl.u32 %v781, 7
    %v783 = vsub.s32 %v780, %v782
    %v784 = vrot.slane %v769, %v783
    %v786 = vunpack.c.l.s4 1966171168
    %v787 = vunpack.c.0.s8 %v786
    %v788 = vlaneseq
    %v789 = vshrl.u32 %v788, 7
    %v790 = vsub.s32 %v787, %v789
    %v791 = vrot.slane %v770, %v790
    %v792 = vcombine.low %v777, %v784
    %v794 = vunpack.c.l.s4 1966171168
    %v795 = vunpack.c.0.s8 %v794
    %v796 = vlaneseq
    %v797 = vshrl.u32 %v796, 7
    %v798 = vsub.s32 %v795, %v797
    %v799 = vrot.slane %v792, %v798
    %v801 = vunpack.c.l.s4 1966171168
    %v802 = vunpack.c.0.s8 %v801
    %v803 = vlaneseq
    %v804 = vshrl.u32 %v803, 7
    %v805 = vsub.s32 %v802, %v804
    %v806 = vrot.slane %v791, %v805
    %v807 = vcombine.low %v799, %v806
    %v816 = vunpack.c.l.b16 %v711
    %v817 = vunpack.c.l.b16 %v712
    %v818 = vunpack.c.l.b16 %v713
    %v819 = vunpack.c.l.b16 %v714
    %v820 = vunpack.c.l.b16 %v715
    %v821 = vunpack.c.l.b16 %v716
    %v822 = vunpack.c.l.b16 %v717
    %v823 = vunpack.c.l.b16 %v718
    %v824 = vpack.c.b16 %v817, %v816
    %v825 = vpack.c.b16 %v819, %v818
    %v826 = vpack.c.b16 %v821, %v820
    %v827 = vpack.c.b16 %v823, %v822
    %v833 = vsel %vm486, %v767, 0
    %v836 = vsel %vm486, %v807, 0
    %838 = vmatprep.subr.bf16.mxu0 0
    %839 = vmatpush1.bf16.msra.mxu0 %v824
    %840 = vmatprep.subr.bf16.mxu0 0
    %841 = vmatpush1.bf16.msra.mxu0 %v825
    %842 = vmatprep.subr.bf16.mxu0 0
    %843 = vmatpush1.bf16.msra.mxu0 %v826
    %844 = vmatprep.subr.bf16.mxu0 0
    %845 = vmatpush1.bf16.msra.mxu0 %v827
    %846 = vmatprep.subr.bf16.mxu0 0
    %847 = vmatpush1.bf16.msra.mxu0 0
    %848 = vmatprep.subr.bf16.mxu0 0
    %849 = vmatpush1.bf16.msra.mxu0 0
    %850 = vmatprep.subr.bf16.mxu0 0
    %851 = vmatpush1.bf16.msra.mxu0 0
    %852 = vmatprep.subr.bf16.mxu0 0
    %853 = vmatpush1.bf16.msra.mxu0 0
    %854 = vmatprep.subr.bf16.mxu0 0
    %855 = vmatpush1.bf16.msra.mxu0 0
    %856 = vmatprep.subr.bf16.mxu0 0
    %857 = vmatpush1.bf16.msra.mxu0 0
    %858 = vmatprep.subr.bf16.mxu0 0
    %859 = vmatpush1.bf16.msra.mxu0 0
    %860 = vmatprep.subr.bf16.mxu0 0
    %861 = vmatpush1.bf16.msra.mxu0 0
    %862 = vmatprep.subr.bf16.mxu0 0
    %863 = vmatpush1.bf16.msra.mxu0 0
    %864 = vmatprep.subr.bf16.mxu0 0
    %865 = vmatpush1.bf16.msra.mxu0 0
    %866 = vmatprep.subr.bf16.mxu0 0
    %867 = vmatpush1.bf16.msra.mxu0 0
    %868 = vmatprep.subr.bf16.mxu0 0
    %869 = vmatpush1.bf16.msra.mxu0 0
    %870 = vmatprep.mubr.bf16.mxu0 0
    %871 = vmatmul.mubr.bf16.gmra.mrb[0].mxu0 %v833
    %v872 = vpop.f32.mrb[0].mxu0
    %v873 = vadd.f32 0.0, %v872
    %v874 = vpop.f32.mrb[0].mxu0
    %v875 = vpop.f32.mrb[0].mxu0
    %v876 = vadd.f32 0.0, %v875
    %v877 = vpop.f32.mrb[0].mxu0
    %878 = vmatprep.mubr.bf16.mxu0 0
    %879 = vmatmul.mubr.bf16.gmra.mrb[0].mxu0 %v836
    %v880 = vpop.f32.mrb[0].mxu0
    %v881 = vadd.f32 0.0, %v880
    %v882 = vpop.f32.mrb[0].mxu0
    %v883 = vpop.f32.mrb[0].mxu0
    %v884 = vadd.f32 0.0, %v883
    %v885 = vpop.f32.mrb[0].mxu0
    %886 = vdwg.mxu0
    %v887 = vadd.f32 %v696, %v873
    %v888 = vadd.f32 %v699, %v876
    %v889 = vadd.f32 %v704, %v881
    %v890 = vadd.f32 %v707, %v884
    %v891 = vld [vmem:[%s2] sm:$0x1]
    %v893 = vlaneseq
    %v894 = vshrl.u32 %v893, 7
    %v895 = vsub.s32 0, %v894
    %v896 = vrot.slane %v891, %v895
    %v898 = vadd.f32 %v887, %v896
    %v899 = vadd.f32 %v888, %v896
    %v900 = vadd.f32 %v889, %v896
    %v901 = vadd.f32 %v890, %v896
    %v902 = vmax.f32 %v898, 0.0
    %v903 = vmax.f32 %v899, 0.0
    %v904 = vmax.f32 %v900, 0.0
    %v905 = vmax.f32 %v901, 0.0
    %v910 = vcombine.high %v902, %v902
    %v912 = vunpack.c.l.s4 1983009808
    %v913 = vunpack.c.0.s8 %v912
    %v914 = vlaneseq
    %v915 = vshrl.u32 %v914, 7
    %v916 = vsub.s32 %v913, %v915
    %v917 = vrot.slane %v902, %v916
    %v919 = vunpack.c.l.s4 1983009808
    %v920 = vunpack.c.0.s8 %v919
    %v921 = vlaneseq
    %v922 = vshrl.u32 %v921, 7
    %v923 = vsub.s32 %v920, %v922
    %v924 = vrot.slane %v910, %v923
    %v925 = vcombine.high %v917, %v917
    %v926 = vcombine.high %v924, %v924
    %v927 = vcombine.high %v903, %v903
    %v929 = vunpack.c.l.s4 1983009808
    %v930 = vunpack.c.0.s8 %v929
    %v931 = vlaneseq
    %v932 = vshrl.u32 %v931, 7
    %v933 = vsub.s32 %v930, %v932
    %v934 = vrot.slane %v903, %v933
    %v936 = vunpack.c.l.s4 1983009808
    %v937 = vunpack.c.0.s8 %v936
    %v938 = vlaneseq
    %v939 = vshrl.u32 %v938, 7
    %v940 = vsub.s32 %v937, %v939
    %v941 = vrot.slane %v927, %v940
    %v942 = vcombine.high %v934, %v934
    %v943 = vcombine.high %v941, %v941
    %v944 = vcombine.high %v904, %v904
    %v946 = vunpack.c.l.s4 1983009808
    %v947 = vunpack.c.0.s8 %v946
    %v948 = vlaneseq
    %v949 = vshrl.u32 %v948, 7
    %v950 = vsub.s32 %v947, %v949
    %v951 = vrot.slane %v904, %v950
    %v953 = vunpack.c.l.s4 1983009808
    %v954 = vunpack.c.0.s8 %v953
    %v955 = vlaneseq
    %v956 = vshrl.u32 %v955, 7
    %v957 = vsub.s32 %v954, %v956
    %v958 = vrot.slane %v944, %v957
    %v959 = vcombine.high %v951, %v951
    %v960 = vcombine.high %v958, %v958
    %v962 = vunpack.c.l.s4 1983009808
    %v963 = vunpack.c.0.s8 %v962
    %v964 = vlaneseq
    %v965 = vshrl.u32 %v964, 7
    %v966 = vsub.s32 %v963, %v965
    %v967 = vrot.slane %v905, %v966
    %v968 = vcombine.high %v967, %v967
    %v969 = vcombine.low %v917, %v925
    %v970 = vcombine.low %v924, %v926
    %v972 = vunpack.c.l.s4 1983009808
    %v973 = vunpack.c.0.s8 %v972
    %v974 = vlaneseq
    %v975 = vshrl.u32 %v974, 7
    %v976 = vsub.s32 %v973, %v975
    %v977 = vrot.slane %v969, %v976
    %v979 = vunpack.c.l.s4 1983009808
    %v980 = vunpack.c.0.s8 %v979
    %v981 = vlaneseq
    %v982 = vshrl.u32 %v981, 7
    %v983 = vsub.s32 %v980, %v982
    %v984 = vrot.slane %v970, %v983
    %v985 = vcombine.low %v977, %v984
    %v986 = vcombine.low %v934, %v942
    %v988 = vunpack.c.l.s4 1983009808
    %v989 = vunpack.c.0.s8 %v988
    %v990 = vlaneseq
    %v991 = vshrl.u32 %v990, 7
    %v992 = vsub.s32 %v989, %v991
    %v993 = vrot.slane %v986, %v992
    %v995 = vunpack.c.l.s4 1983009808
    %v996 = vunpack.c.0.s8 %v995
    %v997 = vlaneseq
    %v998 = vshrl.u32 %v997, 7
    %v999 = vsub.s32 %v996, %v998
    %v1000 = vrot.slane %v941, %v999
    %v1001 = vcombine.low %v993, %v1000
    %v1002 = vcombine.low %v943, %v951
    %v1003 = vcombine.low %v959, %v958
    %v1005 = vunpack.c.l.s4 1983009808
    %v1006 = vunpack.c.0.s8 %v1005
    %v1007 = vlaneseq
    %v1008 = vshrl.u32 %v1007, 7
    %v1009 = vsub.s32 %v1006, %v1008
    %v1010 = vrot.slane %v1002, %v1009
    %v1012 = vunpack.c.l.s4 1983009808
    %v1013 = vunpack.c.0.s8 %v1012
    %v1014 = vlaneseq
    %v1015 = vshrl.u32 %v1014, 7
    %v1016 = vsub.s32 %v1013, %v1015
    %v1017 = vrot.slane %v1003, %v1016
    %v1018 = vcombine.low %v1010, %v1017
    %v1019 = vcombine.low %v960, %v967
    %v1021 = vunpack.c.l.s4 1983009808
    %v1022 = vunpack.c.0.s8 %v1021
    %v1023 = vlaneseq
    %v1024 = vshrl.u32 %v1023, 7
    %v1025 = vsub.s32 %v1022, %v1024
    %v1026 = vrot.slane %v1019, %v1025
    %v1028 = vunpack.c.l.s4 1983009808
    %v1029 = vunpack.c.0.s8 %v1028
    %v1030 = vlaneseq
    %v1031 = vshrl.u32 %v1030, 7
    %v1032 = vsub.s32 %v1029, %v1031
    %v1033 = vrot.slane %v968, %v1032
    %v1034 = vcombine.low %v1026, %v1033
    %v1039 = vpack.c.bf16 %v1001, %v985
    %v1040 = vpack.c.bf16 %v1034, %v1018
    %v1043 = vcombine.high %v1039, %v1039
    %v1045 = vunpack.c.l.s4 1983009808
    %v1046 = vunpack.c.0.s8 %v1045
    %v1047 = vlaneseq
    %v1048 = vshrl.u32 %v1047, 7
    %v1049 = vsub.s32 %v1046, %v1048
    %v1050 = vrot.slane %v1039, %v1049
    %v1052 = vunpack.c.l.s4 1983009808
    %v1053 = vunpack.c.0.s8 %v1052
    %v1054 = vlaneseq
    %v1055 = vshrl.u32 %v1054, 7
    %v1056 = vsub.s32 %v1053, %v1055
    %v1057 = vrot.slane %v1043, %v1056
    %v1058 = vcombine.high %v1050, %v1050
    %v1059 = vcombine.high %v1040, %v1040
    %v1061 = vunpack.c.l.s4 1983009808
    %v1062 = vunpack.c.0.s8 %v1061
    %v1063 = vlaneseq
    %v1064 = vshrl.u32 %v1063, 7
    %v1065 = vsub.s32 %v1062, %v1064
    %v1066 = vrot.slane %v1040, %v1065
    %v1068 = vunpack.c.l.s4 1983009808
    %v1069 = vunpack.c.0.s8 %v1068
    %v1070 = vlaneseq
    %v1071 = vshrl.u32 %v1070, 7
    %v1072 = vsub.s32 %v1069, %v1071
    %v1073 = vrot.slane %v1059, %v1072
    %v1074 = vcombine.high %v1066, %v1066
    %v1075 = vld [vmem:[%s3] sm:$0xf]
    %v1076 = vld [vmem:[%s3 + $0x4] sm:$0xf]
    %v1077 = vld [vmem:[%s3 + $0x8] sm:$0xf]
    %v1078 = vld [vmem:[%s3 + $0xc] sm:$0xf]
    %v1079 = vld [vmem:[%s3 + $0x10] sm:$0xf]
    %v1080 = vld [vmem:[%s3 + $0x14] sm:$0xf]
    %v1081 = vld [vmem:[%s3 + $0x18] sm:$0xf]
    %v1082 = vld [vmem:[%s3 + $0x1c] sm:$0xf]
    %v1083 = vld [vmem:[%s3 + $0x20] sm:$0xf]
    %v1084 = vld [vmem:[%s3 + $0x24] sm:$0xf]
    %v1085 = vld [vmem:[%s3 + $0x28] sm:$0xf]
    %v1086 = vld [vmem:[%s3 + $0x2c] sm:$0xf]
    %v1087 = vld [vmem:[%s3 + $0x30] sm:$0xf]
    %v1088 = vld [vmem:[%s3 + $0x34] sm:$0xf]
    %v1089 = vcombine.high %v1057, %v1057
    %v1090 = vcombine.high %v1073, %v1073
    %vm1091 = vsmask.f32 1280
    %vm1092 = vsmask.f32 3336
    %vm1093 = vmor %vm1091, %vm1092
    %vm1094 = vsmask.f32 5392
    %vm1095 = vmor %vm1093, %vm1094
    %vm1096 = vsmask.f32 7448
    %vm1097 = vmor %vm1095, %vm1096
    %v1099 = vshrl.u32 %v1050, 16
    %v1101 = vrot.slane %v1099, 6
    %v1102 = vshll.u32 %v1050, 16
    %v1104 = vrot.slane %v1102, 7
    %v1105 = vor.u32 %v1101, %v1104
    %v1106 = vrot.slane %v1105, 2
    %v1108 = vshll.u32 %v1058, 16
    %v1110 = vrot.slane %v1108, 7
    %v1111 = vsel %vm1097, %v1106, %v1110
    %v1112 = vshrl.u32 %v1058, 16
    %v1114 = vrot.slane %v1112, 6
    %v1115 = vor.u32 %v1114, %v1110
    %v1116 = vrot.slane %v1115, 2
    %v1118 = vshll.u32 %v1057, 16
    %v1120 = vrot.slane %v1118, 7
    %v1121 = vsel %vm1097, %v1116, %v1120
    %v1122 = vshrl.u32 %v1057, 16
    %v1124 = vrot.slane %v1122, 6
    %v1125 = vor.u32 %v1124, %v1120
    %v1126 = vrot.slane %v1125, 2
    %v1128 = vshll.u32 %v1089, 16
    %v1130 = vrot.slane %v1128, 7
    %v1131 = vsel %vm1097, %v1126, %v1130
    %v1133 = vshrl.u32 %v1066, 16
    %v1135 = vrot.slane %v1133, 6
    %v1136 = vshll.u32 %v1066, 16
    %v1138 = vrot.slane %v1136, 7
    %v1139 = vor.u32 %v1135, %v1138
    %v1140 = vrot.slane %v1139, 2
    %v1142 = vshll.u32 %v1074, 16
    %v1144 = vrot.slane %v1142, 7
    %v1145 = vsel %vm1097, %v1140, %v1144
    %v1146 = vshrl.u32 %v1074, 16
    %v1148 = vrot.slane %v1146, 6
    %v1149 = vor.u32 %v1148, %v1144
    %v1150 = vrot.slane %v1149, 2
    %v1152 = vshll.u32 %v1073, 16
    %v1154 = vrot.slane %v1152, 7
    %v1155 = vsel %vm1097, %v1150, %v1154
    %v1156 = vshrl.u32 %v1073, 16
    %v1158 = vrot.slane %v1156, 6
    %v1159 = vor.u32 %v1158, %v1154
    %v1160 = vrot.slane %v1159, 2
    %v1162 = vshll.u32 %v1090, 16
    %v1164 = vrot.slane %v1162, 7
    %v1165 = vsel %vm1097, %v1160, %v1164
    %s1166 = scalar_lea.vmem %s3, 56
    %v1167 = vld [vmem:[%s1166] sm:$0xf]
    %v1168 = vld [vmem:[%s1166 + $0x4] sm:$0xf]
    %v1169 = vld [vmem:[%s1166 + $0x8] sm:$0xf]
    %v1170 = vld [vmem:[%s1166 + $0xc] sm:$0xf]
    %v1171 = vld [vmem:[%s1166 + $0x10] sm:$0xf]
    %v1172 = vld [vmem:[%s1166 + $0x14] sm:$0xf]
    %v1173 = vld [vmem:[%s1166 + $0x18] sm:$0xf]
    %v1174 = vld [vmem:[%s1166 + $0x1c] sm:$0xf]
    %v1175 = vld [vmem:[%s1166 + $0x20] sm:$0xf]
    %v1176 = vld [vmem:[%s1166 + $0x24] sm:$0xf]
    %v1177 = vld [vmem:[%s1166 + $0x28] sm:$0xf]
    %v1178 = vld [vmem:[%s1166 + $0x2c] sm:$0xf]
    %v1179 = vld [vmem:[%s1166 + $0x30] sm:$0xf]
    %v1180 = vld [vmem:[%s1166 + $0x34] sm:$0xf]
    %v1181 = vcombine.low %v1111, %v1121
    %v1182 = vcombine.low %v1131, %v1145
    %v1184 = vunpack.c.l.s4 1983009808
    %v1185 = vunpack.c.0.s8 %v1184
    %v1186 = vlaneseq
    %v1187 = vshrl.u32 %v1186, 7
    %v1188 = vsub.s32 %v1185, %v1187
    %v1189 = vrot.slane %v1181, %v1188
    %v1191 = vunpack.c.l.s4 1983009808
    %v1192 = vunpack.c.0.s8 %v1191
    %v1193 = vlaneseq
    %v1194 = vshrl.u32 %v1193, 7
    %v1195 = vsub.s32 %v1192, %v1194
    %v1196 = vrot.slane %v1182, %v1195
    %v1197 = vcombine.low %v1189, %v1196
    %v1198 = vcombine.low %v1155, %v1165
    %v1200 = vunpack.c.l.s4 1983009808
    %v1201 = vunpack.c.0.s8 %v1200
    %v1202 = vlaneseq
    %v1203 = vshrl.u32 %v1202, 7
    %v1204 = vsub.s32 %v1201, %v1203
    %v1205 = vrot.slane %v1198, %v1204
    %v1220 = vunpack.c.l.b16 %v1167
    %v1221 = vunpack.c.l.b16 %v1168
    %v1222 = vunpack.c.l.b16 %v1169
    %v1223 = vunpack.c.l.b16 %v1170
    %v1224 = vunpack.c.l.b16 %v1171
    %v1225 = vunpack.c.l.b16 %v1172
    %v1226 = vunpack.c.l.b16 %v1173
    %v1227 = vunpack.c.l.b16 %v1174
    %v1228 = vunpack.c.l.b16 %v1175
    %v1229 = vunpack.c.l.b16 %v1176
    %v1230 = vunpack.c.l.b16 %v1177
    %v1231 = vunpack.c.l.b16 %v1178
    %v1232 = vunpack.c.l.b16 %v1179
    %v1233 = vunpack.c.l.b16 %v1180
    %v1234 = vpack.c.b16 %v1221, %v1220
    %v1235 = vpack.c.b16 %v1223, %v1222
    %v1236 = vpack.c.b16 %v1225, %v1224
    %v1237 = vpack.c.b16 %v1227, %v1226
    %v1238 = vpack.c.b16 %v1229, %v1228
    %v1239 = vpack.c.b16 %v1231, %v1230
    %v1240 = vpack.c.b16 %v1233, %v1232
    %vm1248 = vcmask 916480
    %v1250 = vsel %vm1248, %v1197, 0
    %v1253 = vsel %vm1248, %v1205, 0
    %1255 = vmatprep.subr.bf16.mxu0 0
    %1256 = vmatpush1.bf16.msra.mxu0 %v1234
    %1257 = vmatprep.subr.bf16.mxu0 0
    %1258 = vmatpush1.bf16.msra.mxu0 %v1235
    %1259 = vmatprep.subr.bf16.mxu0 0
    %1260 = vmatpush1.bf16.msra.mxu0 %v1236
    %1261 = vmatprep.subr.bf16.mxu0 0
    %1262 = vmatpush1.bf16.msra.mxu0 %v1237
    %1263 = vmatprep.subr.bf16.mxu0 0
    %1264 = vmatpush1.bf16.msra.mxu0 %v1238
    %1265 = vmatprep.subr.bf16.mxu0 0
    %1266 = vmatpush1.bf16.msra.mxu0 %v1239
    %1267 = vmatprep.subr.bf16.mxu0 0
    %1268 = vmatpush1.bf16.msra.mxu0 %v1240
    %1269 = vmatprep.subr.bf16.mxu0 0
    %1270 = vmatpush1.bf16.msra.mxu0 0
    %1271 = vmatprep.subr.bf16.mxu0 0
    %1272 = vmatpush1.bf16.msra.mxu0 0
    %1273 = vmatprep.subr.bf16.mxu0 0
    %1274 = vmatpush1.bf16.msra.mxu0 0
    %1275 = vmatprep.subr.bf16.mxu0 0
    %1276 = vmatpush1.bf16.msra.mxu0 0
    %1277 = vmatprep.subr.bf16.mxu0 0
    %1278 = vmatpush1.bf16.msra.mxu0 0
    %1279 = vmatprep.subr.bf16.mxu0 0
    %1280 = vmatpush1.bf16.msra.mxu0 0
    %1281 = vmatprep.subr.bf16.mxu0 0
    %1282 = vmatpush1.bf16.msra.mxu0 0
    %1283 = vmatprep.subr.bf16.mxu0 0
    %1284 = vmatpush1.bf16.msra.mxu0 0
    %1285 = vmatprep.subr.bf16.mxu0 0
    %1286 = vmatpush1.bf16.msra.mxu0 0
    %1287 = vmatprep.mubr.bf16.mxu0 0
    %1288 = vmatmul.mubr.bf16.gmra.mrb[0].mxu0 %v1250
    %v1289 = vpop.f32.mrb[0].mxu0
    %v1290 = vadd.f32 0.0, %v1289
    %v1291 = vpop.f32.mrb[0].mxu0
    %v1292 = vpop.f32.mrb[0].mxu0
    %v1293 = vadd.f32 0.0, %v1292
    %v1294 = vpop.f32.mrb[0].mxu0
    %1295 = vmatprep.mubr.bf16.mxu0 0
    %1296 = vmatmul.mubr.bf16.gmra.mrb[0].mxu0 %v1253
    %v1297 = vpop.f32.mrb[0].mxu0
    %v1298 = vadd.f32 0.0, %v1297
    %v1299 = vpop.f32.mrb[0].mxu0
    %v1300 = vpop.f32.mrb[0].mxu0
    %v1301 = vpop.f32.mrb[0].mxu0
    %1302 = vdwg.mxu0
    %v1303 = vcombine.low %v1050, %v1058
    %v1304 = vcombine.low %v1057, %v1066
    %v1306 = vunpack.c.l.s4 1983009808
    %v1307 = vunpack.c.0.s8 %v1306
    %v1308 = vlaneseq
    %v1309 = vshrl.u32 %v1308, 7
    %v1310 = vsub.s32 %v1307, %v1309
    %v1311 = vrot.slane %v1303, %v1310
    %v1313 = vunpack.c.l.s4 1983009808
    %v1314 = vunpack.c.0.s8 %v1313
    %v1315 = vlaneseq
    %v1316 = vshrl.u32 %v1315, 7
    %v1317 = vsub.s32 %v1314, %v1316
    %v1318 = vrot.slane %v1304, %v1317
    %v1319 = vcombine.low %v1311, %v1318
    %v1320 = vcombine.low %v1074, %v1073
    %v1322 = vunpack.c.l.s4 1983009808
    %v1323 = vunpack.c.0.s8 %v1322
    %v1324 = vlaneseq
    %v1325 = vshrl.u32 %v1324, 7
    %v1326 = vsub.s32 %v1323, %v1325
    %v1327 = vrot.slane %v1320, %v1326
    %v1342 = vunpack.c.l.b16 %v1075
    %v1343 = vunpack.c.l.b16 %v1076
    %v1344 = vunpack.c.l.b16 %v1077
    %v1345 = vunpack.c.l.b16 %v1078
    %v1346 = vunpack.c.l.b16 %v1079
    %v1347 = vunpack.c.l.b16 %v1080
    %v1348 = vunpack.c.l.b16 %v1081
    %v1349 = vunpack.c.l.b16 %v1082
    %v1350 = vunpack.c.l.b16 %v1083
    %v1351 = vunpack.c.l.b16 %v1084
    %v1352 = vunpack.c.l.b16 %v1085
    %v1353 = vunpack.c.l.b16 %v1086
    %v1354 = vunpack.c.l.b16 %v1087
    %v1355 = vunpack.c.l.b16 %v1088
    %v1356 = vpack.c.b16 %v1343, %v1342
    %v1357 = vpack.c.b16 %v1345, %v1344
    %v1358 = vpack.c.b16 %v1347, %v1346
    %v1359 = vpack.c.b16 %v1349, %v1348
    %v1360 = vpack.c.b16 %v1351, %v1350
    %v1361 = vpack.c.b16 %v1353, %v1352
    %v1362 = vpack.c.b16 %v1355, %v1354
    %v1371 = vsel %vm1248, %v1319, 0
    %v1374 = vsel %vm1248, %v1327, 0
    %1376 = vmatprep.subr.bf16.mxu0 0
    %1377 = vmatpush1.bf16.msra.mxu0 %v1356
    %1378 = vmatprep.subr.bf16.mxu0 0
    %1379 = vmatpush1.bf16.msra.mxu0 %v1357
    %1380 = vmatprep.subr.bf16.mxu0 0
    %1381 = vmatpush1.bf16.msra.mxu0 %v1358
    %1382 = vmatprep.subr.bf16.mxu0 0
    %1383 = vmatpush1.bf16.msra.mxu0 %v1359
    %1384 = vmatprep.subr.bf16.mxu0 0
    %1385 = vmatpush1.bf16.msra.mxu0 %v1360
    %1386 = vmatprep.subr.bf16.mxu0 0
    %1387 = vmatpush1.bf16.msra.mxu0 %v1361
    %1388 = vmatprep.subr.bf16.mxu0 0
    %1389 = vmatpush1.bf16.msra.mxu0 %v1362
    %1390 = vmatprep.subr.bf16.mxu0 0
    %1391 = vmatpush1.bf16.msra.mxu0 0
    %1392 = vmatprep.subr.bf16.mxu0 0
    %1393 = vmatpush1.bf16.msra.mxu0 0
    %1394 = vmatprep.subr.bf16.mxu0 0
    %1395 = vmatpush1.bf16.msra.mxu0 0
    %1396 = vmatprep.subr.bf16.mxu0 0
    %1397 = vmatpush1.bf16.msra.mxu0 0
    %1398 = vmatprep.subr.bf16.mxu0 0
    %1399 = vmatpush1.bf16.msra.mxu0 0
    %1400 = vmatprep.subr.bf16.mxu0 0
    %1401 = vmatpush1.bf16.msra.mxu0 0
    %1402 = vmatprep.subr.bf16.mxu0 0
    %1403 = vmatpush1.bf16.msra.mxu0 0
    %1404 = vmatprep.subr.bf16.mxu0 0
    %1405 = vmatpush1.bf16.msra.mxu0 0
    %1406 = vmatprep.subr.bf16.mxu0 0
    %1407 = vmatpush1.bf16.msra.mxu0 0
    %1408 = vmatprep.mubr.bf16.mxu0 0
    %1409 = vmatmul.mubr.bf16.gmra.mrb[0].mxu0 %v1371
    %v1410 = vpop.f32.mrb[0].mxu0
    %v1411 = vadd.f32 %v1290, %v1410
    %v1412 = vpop.f32.mrb[0].mxu0
    %v1413 = vpop.f32.mrb[0].mxu0
    %v1414 = vadd.f32 %v1293, %v1413
    %v1415 = vpop.f32.mrb[0].mxu0
    %1416 = vmatprep.mubr.bf16.mxu0 0
    %1417 = vmatmul.mubr.bf16.gmra.mrb[0].mxu0 %v1374
    %v1418 = vpop.f32.mrb[0].mxu0
    %v1419 = vadd.f32 %v1298, %v1418
    %v1420 = vpop.f32.mrb[0].mxu0
    %v1421 = vpop.f32.mrb[0].mxu0
    %v1422 = vpop.f32.mrb[0].mxu0
    %1423 = vdwg.mxu0
    %vm1424 = vcmask 1040384
    %vm1425 = vcmask 1042434
    %vm1426 = vmor %vm1424, %vm1425
    %vm1427 = vcmask 1044484
    %vm1428 = vmor %vm1426, %vm1427
    %vm1429 = vcmask 1046534
    %vm1430 = vmor %vm1428, %vm1429
    %v1431 = vrot.slane %v1050, 7
    %v1432 = vrot.slane %v1431, 2
    %v1433 = vrot.slane %v1058, 7
    %v1434 = vsel %vm1430, %v1432, %v1433
    %v1435 = vrot.slane %v1433, 2
    %v1436 = vrot.slane %v1057, 7
    %v1437 = vsel %vm1430, %v1435, %v1436
    %v1438 = vrot.slane %v1436, 2
    %v1439 = vrot.slane %v1089, 7
    %v1440 = vsel %vm1430, %v1438, %v1439
    %v1441 = vrot.slane %v1066, 7
    %v1442 = vrot.slane %v1441, 2
    %v1443 = vrot.slane %v1074, 7
    %v1444 = vsel %vm1430, %v1442, %v1443
    %v1445 = vrot.slane %v1443, 2
    %v1446 = vrot.slane %v1073, 7
    %v1447 = vsel %vm1430, %v1445, %v1446
    %v1448 = vrot.slane %v1446, 2
    %v1449 = vrot.slane %v1090, 7
    %v1450 = vsel %vm1430, %v1448, %v1449
    %s1451 = scalar_lea.vmem %s3, 112
    %v1452 = vld [vmem:[%s1451] sm:$0xf]
    %v1453 = vld [vmem:[%s1451 + $0x4] sm:$0xf]
    %v1454 = vld [vmem:[%s1451 + $0x8] sm:$0xf]
    %v1455 = vld [vmem:[%s1451 + $0xc] sm:$0xf]
    %v1456 = vld [vmem:[%s1451 + $0x10] sm:$0xf]
    %v1457 = vld [vmem:[%s1451 + $0x14] sm:$0xf]
    %v1458 = vld [vmem:[%s1451 + $0x18] sm:$0xf]
    %v1459 = vld [vmem:[%s1451 + $0x1c] sm:$0xf]
    %v1460 = vld [vmem:[%s1451 + $0x20] sm:$0xf]
    %v1461 = vld [vmem:[%s1451 + $0x24] sm:$0xf]
    %v1462 = vld [vmem:[%s1451 + $0x28] sm:$0xf]
    %v1463 = vld [vmem:[%s1451 + $0x2c] sm:$0xf]
    %v1464 = vld [vmem:[%s1451 + $0x30] sm:$0xf]
    %v1465 = vld [vmem:[%s1451 + $0x34] sm:$0xf]
    %v1466 = vcombine.low %v1434, %v1437
    %v1467 = vcombine.low %v1440, %v1444
    %v1469 = vunpack.c.l.s4 1983009808
    %v1470 = vunpack.c.0.s8 %v1469
    %v1471 = vlaneseq
    %v1472 = vshrl.u32 %v1471, 7
    %v1473 = vsub.s32 %v1470, %v1472
    %v1474 = vrot.slane %v1466, %v1473
    %v1476 = vunpack.c.l.s4 1983009808
    %v1477 = vunpack.c.0.s8 %v1476
    %v1478 = vlaneseq
    %v1479 = vshrl.u32 %v1478, 7
    %v1480 = vsub.s32 %v1477, %v1479
    %v1481 = vrot.slane %v1467, %v1480
    %v1482 = vcombine.low %v1474, %v1481
    %v1483 = vcombine.low %v1447, %v1450
    %v1485 = vunpack.c.l.s4 1983009808
    %v1486 = vunpack.c.0.s8 %v1485
    %v1487 = vlaneseq
    %v1488 = vshrl.u32 %v1487, 7
    %v1489 = vsub.s32 %v1486, %v1488
    %v1490 = vrot.slane %v1483, %v1489
    %v1505 = vunpack.c.l.b16 %v1452
    %v1506 = vunpack.c.l.b16 %v1453
    %v1507 = vunpack.c.l.b16 %v1454
    %v1508 = vunpack.c.l.b16 %v1455
    %v1509 = vunpack.c.l.b16 %v1456
    %v1510 = vunpack.c.l.b16 %v1457
    %v1511 = vunpack.c.l.b16 %v1458
    %v1512 = vunpack.c.l.b16 %v1459
    %v1513 = vunpack.c.l.b16 %v1460
    %v1514 = vunpack.c.l.b16 %v1461
    %v1515 = vunpack.c.l.b16 %v1462
    %v1516 = vunpack.c.l.b16 %v1463
    %v1517 = vunpack.c.l.b16 %v1464
    %v1518 = vunpack.c.l.b16 %v1465
    %v1519 = vpack.c.b16 %v1506, %v1505
    %v1520 = vpack.c.b16 %v1508, %v1507
    %v1521 = vpack.c.b16 %v1510, %v1509
    %v1522 = vpack.c.b16 %v1512, %v1511
    %v1523 = vpack.c.b16 %v1514, %v1513
    %v1524 = vpack.c.b16 %v1516, %v1515
    %v1525 = vpack.c.b16 %v1518, %v1517
    %v1534 = vsel %vm1248, %v1482, 0
    %v1537 = vsel %vm1248, %v1490, 0
    %1539 = vmatprep.subr.bf16.mxu0 0
    %1540 = vmatpush1.bf16.msra.mxu0 %v1519
    %1541 = vmatprep.subr.bf16.mxu0 0
    %1542 = vmatpush1.bf16.msra.mxu0 %v1520
    %1543 = vmatprep.subr.bf16.mxu0 0
    %1544 = vmatpush1.bf16.msra.mxu0 %v1521
    %1545 = vmatprep.subr.bf16.mxu0 0
    %1546 = vmatpush1.bf16.msra.mxu0 %v1522
    %1547 = vmatprep.subr.bf16.mxu0 0
    %1548 = vmatpush1.bf16.msra.mxu0 %v1523
    %1549 = vmatprep.subr.bf16.mxu0 0
    %1550 = vmatpush1.bf16.msra.mxu0 %v1524
    %1551 = vmatprep.subr.bf16.mxu0 0
    %1552 = vmatpush1.bf16.msra.mxu0 %v1525
    %1553 = vmatprep.subr.bf16.mxu0 0
    %1554 = vmatpush1.bf16.msra.mxu0 0
    %1555 = vmatprep.subr.bf16.mxu0 0
    %1556 = vmatpush1.bf16.msra.mxu0 0
    %1557 = vmatprep.subr.bf16.mxu0 0
    %1558 = vmatpush1.bf16.msra.mxu0 0
    %1559 = vmatprep.subr.bf16.mxu0 0
    %1560 = vmatpush1.bf16.msra.mxu0 0
    %1561 = vmatprep.subr.bf16.mxu0 0
    %1562 = vmatpush1.bf16.msra.mxu0 0
    %1563 = vmatprep.subr.bf16.mxu0 0
    %1564 = vmatpush1.bf16.msra.mxu0 0
    %1565 = vmatprep.subr.bf16.mxu0 0
    %1566 = vmatpush1.bf16.msra.mxu0 0
    %1567 = vmatprep.subr.bf16.mxu0 0
    %1568 = vmatpush1.bf16.msra.mxu0 0
    %1569 = vmatprep.subr.bf16.mxu0 0
    %1570 = vmatpush1.bf16.msra.mxu0 0
    %1571 = vmatprep.mubr.bf16.mxu0 0
    %1572 = vmatmul.mubr.bf16.gmra.mrb[0].mxu0 %v1534
    %v1573 = vpop.f32.mrb[0].mxu0
    %v1574 = vadd.f32 0.0, %v1573
    %v1575 = vpop.f32.mrb[0].mxu0
    %v1576 = vpop.f32.mrb[0].mxu0
    %v1577 = vadd.f32 0.0, %v1576
    %v1578 = vpop.f32.mrb[0].mxu0
    %1579 = vmatprep.mubr.bf16.mxu0 0
    %1580 = vmatmul.mubr.bf16.gmra.mrb[0].mxu0 %v1537
    %v1581 = vpop.f32.mrb[0].mxu0
    %v1582 = vadd.f32 0.0, %v1581
    %v1583 = vpop.f32.mrb[0].mxu0
    %v1584 = vpop.f32.mrb[0].mxu0
    %v1585 = vpop.f32.mrb[0].mxu0
    %1586 = vdwg.mxu0
    %v1587 = vadd.f32 %v1411, %v1574
    %v1588 = vadd.f32 %v1414, %v1577
    %v1589 = vadd.f32 %v1419, %v1582
    %v1590 = vld [vmem:[%s4] sm:$0x1]
    %v1592 = vlaneseq
    %v1593 = vshrl.u32 %v1592, 7
    %v1594 = vsub.s32 0, %v1593
    %v1595 = vrot.slane %v1590, %v1594
    %v1597 = vadd.f32 %v1587, %v1595
    %v1598 = vadd.f32 %v1588, %v1595
    %v1599 = vadd.f32 %v1589, %v1595
    %v1600 = vmax.f32 %v1597, 0.0
    %v1601 = vmax.f32 %v1598, 0.0
    %v1602 = vmax.f32 %v1599, 0.0
    %v1606 = vcombine.high %v1600, %v1600
    %v1607 = vcombine.high %v1601, %v1601
    %v1608 = vcombine.high %v1602, %v1602
    %v1610 = vcombine.low %v1600, %v1606
    %v1611 = vcombine.low %v1607, %v1602
    %v1614 = vpack.c.bf16 %v1601, %v1610
    %v1615 = vpack.c.bf16 %v1608, %v1611
    %v1618 = vcombine.high %v1614, %v1614
    %v1620 = vunpack.c.l.s4 1966171168
    %v1621 = vunpack.c.0.s8 %v1620
    %v1622 = vlaneseq
    %v1623 = vshrl.u32 %v1622, 7
    %v1624 = vsub.s32 %v1621, %v1623
    %v1625 = vrot.slane %v1614, %v1624
    %v1627 = vunpack.c.l.s4 1966171168
    %v1628 = vunpack.c.0.s8 %v1627
    %v1629 = vlaneseq
    %v1630 = vshrl.u32 %v1629, 7
    %v1631 = vsub.s32 %v1628, %v1630
    %v1632 = vrot.slane %v1618, %v1631
    %v1633 = vcombine.high %v1625, %v1625
    %v1635 = vunpack.c.l.s4 1966171168
    %v1636 = vunpack.c.0.s8 %v1635
    %v1637 = vlaneseq
    %v1638 = vshrl.u32 %v1637, 7
    %v1639 = vsub.s32 %v1636, %v1638
    %v1640 = vrot.slane %v1625, %v1639
    %v1642 = vunpack.c.l.s4 1966171168
    %v1643 = vunpack.c.0.s8 %v1642
    %v1644 = vlaneseq
    %v1645 = vshrl.u32 %v1644, 7
    %v1646 = vsub.s32 %v1643, %v1645
    %v1647 = vrot.slane %v1632, %v1646
    %v1649 = vunpack.c.l.s4 1966171168
    %v1650 = vunpack.c.0.s8 %v1649
    %v1651 = vlaneseq
    %v1652 = vshrl.u32 %v1651, 7
    %v1653 = vsub.s32 %v1650, %v1652
    %v1654 = vrot.slane %v1633, %v1653
    %v1655 = vcombine.high %v1640, %v1640
    %v1656 = vcombine.high %v1654, %v1654
    %v1657 = vcombine.high %v1615, %v1615
    %v1659 = vunpack.c.l.s4 1966171168
    %v1660 = vunpack.c.0.s8 %v1659
    %v1661 = vlaneseq
    %v1662 = vshrl.u32 %v1661, 7
    %v1663 = vsub.s32 %v1660, %v1662
    %v1664 = vrot.slane %v1615, %v1663
    %v1666 = vunpack.c.l.s4 1966171168
    %v1667 = vunpack.c.0.s8 %v1666
    %v1668 = vlaneseq
    %v1669 = vshrl.u32 %v1668, 7
    %v1670 = vsub.s32 %v1667, %v1669
    %v1671 = vrot.slane %v1657, %v1670
    %v1672 = vcombine.high %v1664, %v1664
    %v1674 = vunpack.c.l.s4 1966171168
    %v1675 = vunpack.c.0.s8 %v1674
    %v1676 = vlaneseq
    %v1677 = vshrl.u32 %v1676, 7
    %v1678 = vsub.s32 %v1675, %v1677
    %v1679 = vrot.slane %v1664, %v1678
    %v1681 = vunpack.c.l.s4 1966171168
    %v1682 = vunpack.c.0.s8 %v1681
    %v1683 = vlaneseq
    %v1684 = vshrl.u32 %v1683, 7
    %v1685 = vsub.s32 %v1682, %v1684
    %v1686 = vrot.slane %v1671, %v1685
    %v1688 = vunpack.c.l.s4 1966171168
    %v1689 = vunpack.c.0.s8 %v1688
    %v1690 = vlaneseq
    %v1691 = vshrl.u32 %v1690, 7
    %v1692 = vsub.s32 %v1689, %v1691
    %v1693 = vrot.slane %v1672, %v1692
    %v1694 = vcombine.high %v1679, %v1679
    %v1695 = vcombine.high %v1693, %v1693
    %v1696 = vld [vmem:[%s5] sm:$0xf]
    %v1697 = vld [vmem:[%s5 + $0x4] sm:$0xf]
    %v1698 = vld [vmem:[%s5 + $0x8] sm:$0xf]
    %v1699 = vld [vmem:[%s5 + $0xc] sm:$0xf]
    %v1700 = vld [vmem:[%s5 + $0x10] sm:$0xf]
    %v1701 = vld [vmem:[%s5 + $0x14] sm:$0xf]
    %v1702 = vld [vmem:[%s5 + $0x18] sm:$0xf]
    %v1703 = vld [vmem:[%s5 + $0x1c] sm:$0xf]
    %v1704 = vld [vmem:[%s5 + $0x20] sm:$0xf]
    %v1705 = vld [vmem:[%s5 + $0x24] sm:$0xf]
    %v1706 = vld [vmem:[%s5 + $0x28] sm:$0xf]
    %v1707 = vld [vmem:[%s5 + $0x2c] sm:$0xf]
    %v1708 = vcombine.high %v1632, %v1632
    %v1710 = vunpack.c.l.s4 1966171168
    %v1711 = vunpack.c.0.s8 %v1710
    %v1712 = vlaneseq
    %v1713 = vshrl.u32 %v1712, 7
    %v1714 = vsub.s32 %v1711, %v1713
    %v1715 = vrot.slane %v1708, %v1714
    %v1716 = vcombine.high %v1671, %v1671
    %v1718 = vunpack.c.l.s4 1966171168
    %v1719 = vunpack.c.0.s8 %v1718
    %v1720 = vlaneseq
    %v1721 = vshrl.u32 %v1720, 7
    %v1722 = vsub.s32 %v1719, %v1721
    %v1723 = vrot.slane %v1716, %v1722
    %v1725 = vshrl.u32 %v1640, 16
    %v1727 = vrot.slane %v1725, 7
    %v1728 = vrot.slane %v1727, 1
    %v1730 = vshll.u32 %v1654, 16
    %v1732 = vsel %vm249, %v1728, %v1730
    %v1733 = vshrl.u32 %v1654, 16
    %v1735 = vrot.slane %v1733, 7
    %v1736 = vrot.slane %v1735, 1
    %v1738 = vshll.u32 %v1655, 16
    %v1740 = vsel %vm249, %v1736, %v1738
    %v1741 = vshrl.u32 %v1655, 16
    %v1743 = vrot.slane %v1741, 7
    %v1744 = vrot.slane %v1743, 1
    %v1746 = vshll.u32 %v1656, 16
    %v1748 = vsel %vm249, %v1744, %v1746
    %v1749 = vshrl.u32 %v1656, 16
    %v1751 = vrot.slane %v1749, 7
    %v1752 = vrot.slane %v1751, 1
    %v1754 = vshll.u32 %v1647, 16
    %v1756 = vsel %vm249, %v1752, %v1754
    %v1757 = vshrl.u32 %v1647, 16
    %v1759 = vrot.slane %v1757, 7
    %v1760 = vrot.slane %v1759, 1
    %v1762 = vshll.u32 %v1715, 16
    %v1764 = vsel %vm249, %v1760, %v1762
    %v1766 = vshrl.u32 %v1679, 16
    %v1768 = vrot.slane %v1766, 7
    %v1769 = vrot.slane %v1768, 1
    %v1771 = vshll.u32 %v1693, 16
    %v1773 = vsel %vm249, %v1769, %v1771
    %v1774 = vshrl.u32 %v1693, 16
    %v1776 = vrot.slane %v1774, 7
    %v1777 = vrot.slane %v1776, 1
    %v1779 = vshll.u32 %v1694, 16
    %v1781 = vsel %vm249, %v1777, %v1779
    %v1782 = vshrl.u32 %v1694, 16
    %v1784 = vrot.slane %v1782, 7
    %v1785 = vrot.slane %v1784, 1
    %v1787 = vshll.u32 %v1695, 16
    %v1789 = vsel %vm249, %v1785, %v1787
    %v1790 = vshrl.u32 %v1695, 16
    %v1792 = vrot.slane %v1790, 7
    %v1793 = vrot.slane %v1792, 1
    %v1795 = vshll.u32 %v1686, 16
    %v1797 = vsel %vm249, %v1793, %v1795
    %v1798 = vshrl.u32 %v1686, 16
    %v1800 = vrot.slane %v1798, 7
    %v1801 = vrot.slane %v1800, 1
    %v1803 = vshll.u32 %v1723, 16
    %v1805 = vsel %vm249, %v1801, %v1803
    %s1806 = scalar_lea.vmem %s5, 48
    %v1807 = vld [vmem:[%s1806] sm:$0xf]
    %v1808 = vld [vmem:[%s1806 + $0x4] sm:$0xf]
    %v1809 = vld [vmem:[%s1806 + $0x8] sm:$0xf]
    %v1810 = vld [vmem:[%s1806 + $0xc] sm:$0xf]
    %v1811 = vld [vmem:[%s1806 + $0x10] sm:$0xf]
    %v1812 = vld [vmem:[%s1806 + $0x14] sm:$0xf]
    %v1813 = vld [vmem:[%s1806 + $0x18] sm:$0xf]
    %v1814 = vld [vmem:[%s1806 + $0x1c] sm:$0xf]
    %v1815 = vld [vmem:[%s1806 + $0x20] sm:$0xf]
    %v1816 = vld [vmem:[%s1806 + $0x24] sm:$0xf]
    %v1817 = vld [vmem:[%s1806 + $0x28] sm:$0xf]
    %v1818 = vld [vmem:[%s1806 + $0x2c] sm:$0xf]
    %v1819 = vcombine.low %v1732, %v1740
    %v1820 = vcombine.low %v1748, %v1756
    %v1821 = vcombine.low %v1764, %v1773
    %v1822 = vcombine.low %v1781, %v1789
    %v1824 = vunpack.c.l.s4 1966171168
    %v1825 = vunpack.c.0.s8 %v1824
    %v1826 = vlaneseq
    %v1827 = vshrl.u32 %v1826, 7
    %v1828 = vsub.s32 %v1825, %v1827
    %v1829 = vrot.slane %v1819, %v1828
    %v1831 = vunpack.c.l.s4 1966171168
    %v1832 = vunpack.c.0.s8 %v1831
    %v1833 = vlaneseq
    %v1834 = vshrl.u32 %v1833, 7
    %v1835 = vsub.s32 %v1832, %v1834
    %v1836 = vrot.slane %v1820, %v1835
    %v1838 = vunpack.c.l.s4 1966171168
    %v1839 = vunpack.c.0.s8 %v1838
    %v1840 = vlaneseq
    %v1841 = vshrl.u32 %v1840, 7
    %v1842 = vsub.s32 %v1839, %v1841
    %v1843 = vrot.slane %v1821, %v1842
    %v1845 = vunpack.c.l.s4 1966171168
    %v1846 = vunpack.c.0.s8 %v1845
    %v1847 = vlaneseq
    %v1848 = vshrl.u32 %v1847, 7
    %v1849 = vsub.s32 %v1846, %v1848
    %v1850 = vrot.slane %v1822, %v1849
    %v1851 = vcombine.low %v1829, %v1836
    %v1852 = vcombine.low %v1843, %v1850
    %v1854 = vunpack.c.l.s4 1966171168
    %v1855 = vunpack.c.0.s8 %v1854
    %v1856 = vlaneseq
    %v1857 = vshrl.u32 %v1856, 7
    %v1858 = vsub.s32 %v1855, %v1857
    %v1859 = vrot.slane %v1851, %v1858
    %v1861 = vunpack.c.l.s4 1966171168
    %v1862 = vunpack.c.0.s8 %v1861
    %v1863 = vlaneseq
    %v1864 = vshrl.u32 %v1863, 7
    %v1865 = vsub.s32 %v1862, %v1864
    %v1866 = vrot.slane %v1852, %v1865
    %v1867 = vcombine.low %v1859, %v1866
    %v1868 = vcombine.low %v1797, %v1805
    %v1870 = vunpack.c.l.s4 1966171168
    %v1871 = vunpack.c.0.s8 %v1870
    %v1872 = vlaneseq
    %v1873 = vshrl.u32 %v1872, 7
    %v1874 = vsub.s32 %v1871, %v1873
    %v1875 = vrot.slane %v1868, %v1874
    %v1877 = vunpack.c.l.s4 1966171168
    %v1878 = vunpack.c.0.s8 %v1877
    %v1879 = vlaneseq
    %v1880 = vshrl.u32 %v1879, 7
    %v1881 = vsub.s32 %v1878, %v1880
    %v1882 = vrot.slane %v1875, %v1881
    %v1895 = vunpack.c.l.b16 %v1807
    %v1896 = vunpack.c.l.b16 %v1808
    %v1897 = vunpack.c.l.b16 %v1809
    %v1898 = vunpack.c.l.b16 %v1810
    %v1899 = vunpack.c.l.b16 %v1811
    %v1900 = vunpack.c.l.b16 %v1812
    %v1901 = vunpack.c.l.b16 %v1813
    %v1902 = vunpack.c.l.b16 %v1814
    %v1903 = vunpack.c.l.b16 %v1815
    %v1904 = vunpack.c.l.b16 %v1816
    %v1905 = vunpack.c.l.b16 %v1817
    %v1906 = vunpack.c.l.b16 %v1818
    %v1907 = vpack.c.b16 %v1896, %v1895
    %v1908 = vpack.c.b16 %v1898, %v1897
    %v1909 = vpack.c.b16 %v1900, %v1899
    %v1910 = vpack.c.b16 %v1902, %v1901
    %v1911 = vpack.c.b16 %v1904, %v1903
    %v1912 = vpack.c.b16 %v1906, %v1905
    %vm1919 = vcmask 785408
    %v1921 = vsel %vm1919, %v1867, 0
    %v1924 = vsel %vm1919, %v1882, 0
    %1926 = vmatprep.subr.bf16.mxu0 0
    %1927 = vmatpush1.bf16.msra.mxu0 %v1907
    %1928 = vmatprep.subr.bf16.mxu0 0
    %1929 = vmatpush1.bf16.msra.mxu0 %v1908
    %1930 = vmatprep.subr.bf16.mxu0 0
    %1931 = vmatpush1.bf16.msra.mxu0 %v1909
    %1932 = vmatprep.subr.bf16.mxu0 0
    %1933 = vmatpush1.bf16.msra.mxu0 %v1910
    %1934 = vmatprep.subr.bf16.mxu0 0
    %1935 = vmatpush1.bf16.msra.mxu0 %v1911
    %1936 = vmatprep.subr.bf16.mxu0 0
    %1937 = vmatpush1.bf16.msra.mxu0 %v1912
    %1938 = vmatprep.subr.bf16.mxu0 0
    %1939 = vmatpush1.bf16.msra.mxu0 0
    %1940 = vmatprep.subr.bf16.mxu0 0
    %1941 = vmatpush1.bf16.msra.mxu0 0
    %1942 = vmatprep.subr.bf16.mxu0 0
    %1943 = vmatpush1.bf16.msra.mxu0 0
    %1944 = vmatprep.subr.bf16.mxu0 0
    %1945 = vmatpush1.bf16.msra.mxu0 0
    %1946 = vmatprep.subr.bf16.mxu0 0
    %1947 = vmatpush1.bf16.msra.mxu0 0
    %1948 = vmatprep.subr.bf16.mxu0 0
    %1949 = vmatpush1.bf16.msra.mxu0 0
    %1950 = vmatprep.subr.bf16.mxu0 0
    %1951 = vmatpush1.bf16.msra.mxu0 0
    %1952 = vmatprep.subr.bf16.mxu0 0
    %1953 = vmatpush1.bf16.msra.mxu0 0
    %1954 = vmatprep.subr.bf16.mxu0 0
    %1955 = vmatpush1.bf16.msra.mxu0 0
    %1956 = vmatprep.subr.bf16.mxu0 0
    %1957 = vmatpush1.bf16.msra.mxu0 0
    %1958 = vmatprep.mubr.bf16.mxu0 0
    %1959 = vmatmul.mubr.bf16.gmra.mrb[0].mxu0 %v1921
    %v1960 = vpop.f32.mrb[0].mxu0
    %v1961 = vadd.f32 0.0, %v1960
    %v1962 = vpop.f32.mrb[0].mxu0
    %v1963 = vpop.f32.mrb[0].mxu0
    %v1964 = vadd.f32 0.0, %v1963
    %v1965 = vpop.f32.mrb[0].mxu0
    %1966 = vmatprep.mubr.bf16.mxu0 0
    %1967 = vmatmul.mubr.bf16.gmra.mrb[0].mxu0 %v1924
    %v1968 = vpop.f32.mrb[0].mxu0
    %v1969 = vadd.f32 0.0, %v1968
    %v1970 = vpop.f32.mrb[0].mxu0
    %v1971 = vpop.f32.mrb[0].mxu0
    %v1972 = vpop.f32.mrb[0].mxu0
    %1973 = vdwg.mxu0
    %v1974 = vcombine.low %v1640, %v1654
    %v1975 = vcombine.low %v1655, %v1656
    %v1976 = vcombine.low %v1647, %v1679
    %v1977 = vcombine.low %v1693, %v1694
    %v1979 = vunpack.c.l.s4 1966171168
    %v1980 = vunpack.c.0.s8 %v1979
    %v1981 = vlaneseq
    %v1982 = vshrl.u32 %v1981, 7
    %v1983 = vsub.s32 %v1980, %v1982
    %v1984 = vrot.slane %v1974, %v1983
    %v1986 = vunpack.c.l.s4 1966171168
    %v1987 = vunpack.c.0.s8 %v1986
    %v1988 = vlaneseq
    %v1989 = vshrl.u32 %v1988, 7
    %v1990 = vsub.s32 %v1987, %v1989
    %v1991 = vrot.slane %v1975, %v1990
    %v1993 = vunpack.c.l.s4 1966171168
    %v1994 = vunpack.c.0.s8 %v1993
    %v1995 = vlaneseq
    %v1996 = vshrl.u32 %v1995, 7
    %v1997 = vsub.s32 %v1994, %v1996
    %v1998 = vrot.slane %v1976, %v1997
    %v2000 = vunpack.c.l.s4 1966171168
    %v2001 = vunpack.c.0.s8 %v2000
    %v2002 = vlaneseq
    %v2003 = vshrl.u32 %v2002, 7
    %v2004 = vsub.s32 %v2001, %v2003
    %v2005 = vrot.slane %v1977, %v2004
    %v2006 = vcombine.low %v1984, %v1991
    %v2007 = vcombine.low %v1998, %v2005
    %v2009 = vunpack.c.l.s4 1966171168
    %v2010 = vunpack.c.0.s8 %v2009
    %v2011 = vlaneseq
    %v2012 = vshrl.u32 %v2011, 7
    %v2013 = vsub.s32 %v2010, %v2012
    %v2014 = vrot.slane %v2006, %v2013
    %v2016 = vunpack.c.l.s4 1966171168
    %v2017 = vunpack.c.0.s8 %v2016
    %v2018 = vlaneseq
    %v2019 = vshrl.u32 %v2018, 7
    %v2020 = vsub.s32 %v2017, %v2019
    %v2021 = vrot.slane %v2007, %v2020
    %v2022 = vcombine.low %v2014, %v2021
    %v2023 = vcombine.low %v1695, %v1686
    %v2025 = vunpack.c.l.s4 1966171168
    %v2026 = vunpack.c.0.s8 %v2025
    %v2027 = vlaneseq
    %v2028 = vshrl.u32 %v2027, 7
    %v2029 = vsub.s32 %v2026, %v2028
    %v2030 = vrot.slane %v2023, %v2029
    %v2032 = vunpack.c.l.s4 1966171168
    %v2033 = vunpack.c.0.s8 %v2032
    %v2034 = vlaneseq
    %v2035 = vshrl.u32 %v2034, 7
    %v2036 = vsub.s32 %v2033, %v2035
    %v2037 = vrot.slane %v2030, %v2036
    %v2050 = vunpack.c.l.b16 %v1696
    %v2051 = vunpack.c.l.b16 %v1697
    %v2052 = vunpack.c.l.b16 %v1698
    %v2053 = vunpack.c.l.b16 %v1699
    %v2054 = vunpack.c.l.b16 %v1700
    %v2055 = vunpack.c.l.b16 %v1701
    %v2056 = vunpack.c.l.b16 %v1702
    %v2057 = vunpack.c.l.b16 %v1703
    %v2058 = vunpack.c.l.b16 %v1704
    %v2059 = vunpack.c.l.b16 %v1705
    %v2060 = vunpack.c.l.b16 %v1706
    %v2061 = vunpack.c.l.b16 %v1707
    %v2062 = vpack.c.b16 %v2051, %v2050
    %v2063 = vpack.c.b16 %v2053, %v2052
    %v2064 = vpack.c.b16 %v2055, %v2054
    %v2065 = vpack.c.b16 %v2057, %v2056
    %v2066 = vpack.c.b16 %v2059, %v2058
    %v2067 = vpack.c.b16 %v2061, %v2060
    %v2075 = vsel %vm1919, %v2022, 0
    %v2078 = vsel %vm1919, %v2037, 0
    %2080 = vmatprep.subr.bf16.mxu0 0
    %2081 = vmatpush1.bf16.msra.mxu0 %v2062
    %2082 = vmatprep.subr.bf16.mxu0 0
    %2083 = vmatpush1.bf16.msra.mxu0 %v2063
    %2084 = vmatprep.subr.bf16.mxu0 0
    %2085 = vmatpush1.bf16.msra.mxu0 %v2064
    %2086 = vmatprep.subr.bf16.mxu0 0
    %2087 = vmatpush1.bf16.msra.mxu0 %v2065
    %2088 = vmatprep.subr.bf16.mxu0 0
    %2089 = vmatpush1.bf16.msra.mxu0 %v2066
    %2090 = vmatprep.subr.bf16.mxu0 0
    %2091 = vmatpush1.bf16.msra.mxu0 %v2067
    %2092 = vmatprep.subr.bf16.mxu0 0
    %2093 = vmatpush1.bf16.msra.mxu0 0
    %2094 = vmatprep.subr.bf16.mxu0 0
    %2095 = vmatpush1.bf16.msra.mxu0 0
    %2096 = vmatprep.subr.bf16.mxu0 0
    %2097 = vmatpush1.bf16.msra.mxu0 0
    %2098 = vmatprep.subr.bf16.mxu0 0
    %2099 = vmatpush1.bf16.msra.mxu0 0
    %2100 = vmatprep.subr.bf16.mxu0 0
    %2101 = vmatpush1.bf16.msra.mxu0 0
    %2102 = vmatprep.subr.bf16.mxu0 0
    %2103 = vmatpush1.bf16.msra.mxu0 0
    %2104 = vmatprep.subr.bf16.mxu0 0
    %2105 = vmatpush1.bf16.msra.mxu0 0
    %2106 = vmatprep.subr.bf16.mxu0 0
    %2107 = vmatpush1.bf16.msra.mxu0 0
    %2108 = vmatprep.subr.bf16.mxu0 0
    %2109 = vmatpush1.bf16.msra.mxu0 0
    %2110 = vmatprep.subr.bf16.mxu0 0
    %2111 = vmatpush1.bf16.msra.mxu0 0
    %2112 = vmatprep.mubr.bf16.mxu0 0
    %2113 = vmatmul.mubr.bf16.gmra.mrb[0].mxu0 %v2075
    %v2114 = vpop.f32.mrb[0].mxu0
    %v2115 = vadd.f32 %v1961, %v2114
    %v2116 = vpop.f32.mrb[0].mxu0
    %v2117 = vpop.f32.mrb[0].mxu0
    %v2118 = vadd.f32 %v1964, %v2117
    %v2119 = vpop.f32.mrb[0].mxu0
    %2120 = vmatprep.mubr.bf16.mxu0 0
    %2121 = vmatmul.mubr.bf16.gmra.mrb[0].mxu0 %v2078
    %v2122 = vpop.f32.mrb[0].mxu0
    %v2123 = vadd.f32 %v1969, %v2122
    %v2124 = vpop.f32.mrb[0].mxu0
    %v2125 = vpop.f32.mrb[0].mxu0
    %v2126 = vpop.f32.mrb[0].mxu0
    %2127 = vdwg.mxu0
    %s2128 = scalar_lea.vmem %s5, 96
    %v2129 = vld [vmem:[%s2128] sm:$0xf]
    %v2130 = vld [vmem:[%s2128 + $0x4] sm:$0xf]
    %v2131 = vld [vmem:[%s2128 + $0x8] sm:$0xf]
    %v2132 = vld [vmem:[%s2128 + $0xc] sm:$0xf]
    %v2133 = vld [vmem:[%s2128 + $0x10] sm:$0xf]
    %v2134 = vld [vmem:[%s2128 + $0x14] sm:$0xf]
    %v2135 = vld [vmem:[%s2128 + $0x18] sm:$0xf]
    %v2136 = vld [vmem:[%s2128 + $0x1c] sm:$0xf]
    %v2137 = vld [vmem:[%s2128 + $0x20] sm:$0xf]
    %v2138 = vld [vmem:[%s2128 + $0x24] sm:$0xf]
    %v2139 = vld [vmem:[%s2128 + $0x28] sm:$0xf]
    %v2140 = vld [vmem:[%s2128 + $0x2c] sm:$0xf]
    %v2141 = vcombine.low %v1654, %v1655
    %v2142 = vcombine.low %v1656, %v1647
    %v2143 = vcombine.low %v1715, %v1693
    %v2144 = vcombine.low %v1694, %v1695
    %v2146 = vunpack.c.l.s4 1966171168
    %v2147 = vunpack.c.0.s8 %v2146
    %v2148 = vlaneseq
    %v2149 = vshrl.u32 %v2148, 7
    %v2150 = vsub.s32 %v2147, %v2149
    %v2151 = vrot.slane %v2141, %v2150
    %v2153 = vunpack.c.l.s4 1966171168
    %v2154 = vunpack.c.0.s8 %v2153
    %v2155 = vlaneseq
    %v2156 = vshrl.u32 %v2155, 7
    %v2157 = vsub.s32 %v2154, %v2156
    %v2158 = vrot.slane %v2142, %v2157
    %v2160 = vunpack.c.l.s4 1966171168
    %v2161 = vunpack.c.0.s8 %v2160
    %v2162 = vlaneseq
    %v2163 = vshrl.u32 %v2162, 7
    %v2164 = vsub.s32 %v2161, %v2163
    %v2165 = vrot.slane %v2143, %v2164
    %v2167 = vunpack.c.l.s4 1966171168
    %v2168 = vunpack.c.0.s8 %v2167
    %v2169 = vlaneseq
    %v2170 = vshrl.u32 %v2169, 7
    %v2171 = vsub.s32 %v2168, %v2170
    %v2172 = vrot.slane %v2144, %v2171
    %v2173 = vcombine.low %v2151, %v2158
    %v2174 = vcombine.low %v2165, %v2172
    %v2176 = vunpack.c.l.s4 1966171168
    %v2177 = vunpack.c.0.s8 %v2176
    %v2178 = vlaneseq
    %v2179 = vshrl.u32 %v2178, 7
    %v2180 = vsub.s32 %v2177, %v2179
    %v2181 = vrot.slane %v2173, %v2180
    %v2183 = vunpack.c.l.s4 1966171168
    %v2184 = vunpack.c.0.s8 %v2183
    %v2185 = vlaneseq
    %v2186 = vshrl.u32 %v2185, 7
    %v2187 = vsub.s32 %v2184, %v2186
    %v2188 = vrot.slane %v2174, %v2187
    %v2189 = vcombine.low %v2181, %v2188
    %v2190 = vcombine.low %v1686, %v1723
    %v2192 = vunpack.c.l.s4 1966171168
    %v2193 = vunpack.c.0.s8 %v2192
    %v2194 = vlaneseq
    %v2195 = vshrl.u32 %v2194, 7
    %v2196 = vsub.s32 %v2193, %v2195
    %v2197 = vrot.slane %v2190, %v2196
    %v2199 = vunpack.c.l.s4 1966171168
    %v2200 = vunpack.c.0.s8 %v2199
    %v2201 = vlaneseq
    %v2202 = vshrl.u32 %v2201, 7
    %v2203 = vsub.s32 %v2200, %v2202
    %v2204 = vrot.slane %v2197, %v2203
    %v2217 = vunpack.c.l.b16 %v2129
    %v2218 = vunpack.c.l.b16 %v2130
    %v2219 = vunpack.c.l.b16 %v2131
    %v2220 = vunpack.c.l.b16 %v2132
    %v2221 = vunpack.c.l.b16 %v2133
    %v2222 = vunpack.c.l.b16 %v2134
    %v2223 = vunpack.c.l.b16 %v2135
    %v2224 = vunpack.c.l.b16 %v2136
    %v2225 = vunpack.c.l.b16 %v2137
    %v2226 = vunpack.c.l.b16 %v2138
    %v2227 = vunpack.c.l.b16 %v2139
    %v2228 = vunpack.c.l.b16 %v2140
    %v2229 = vpack.c.b16 %v2218, %v2217
    %v2230 = vpack.c.b16 %v2220, %v2219
    %v2231 = vpack.c.b16 %v2222, %v2221
    %v2232 = vpack.c.b16 %v2224, %v2223
    %v2233 = vpack.c.b16 %v2226, %v2225
    %v2234 = vpack.c.b16 %v2228, %v2227
    %v2242 = vsel %vm1919, %v2189, 0
    %v2245 = vsel %vm1919, %v2204, 0
    %2247 = vmatprep.subr.bf16.mxu0 0
    %2248 = vmatpush1.bf16.msra.mxu0 %v2229
    %2249 = vmatprep.subr.bf16.mxu0 0
    %2250 = vmatpush1.bf16.msra.mxu0 %v2230
    %2251 = vmatprep.subr.bf16.mxu0 0
    %2252 = vmatpush1.bf16.msra.mxu0 %v2231
    %2253 = vmatprep.subr.bf16.mxu0 0
    %2254 = vmatpush1.bf16.msra.mxu0 %v2232
    %2255 = vmatprep.subr.bf16.mxu0 0
    %2256 = vmatpush1.bf16.msra.mxu0 %v2233
    %2257 = vmatprep.subr.bf16.mxu0 0
    %2258 = vmatpush1.bf16.msra.mxu0 %v2234
    %2259 = vmatprep.subr.bf16.mxu0 0
    %2260 = vmatpush1.bf16.msra.mxu0 0
    %2261 = vmatprep.subr.bf16.mxu0 0
    %2262 = vmatpush1.bf16.msra.mxu0 0
    %2263 = vmatprep.subr.bf16.mxu0 0
    %2264 = vmatpush1.bf16.msra.mxu0 0
    %2265 = vmatprep.subr.bf16.mxu0 0
    %2266 = vmatpush1.bf16.msra.mxu0 0
    %2267 = vmatprep.subr.bf16.mxu0 0
    %2268 = vmatpush1.bf16.msra.mxu0 0
    %2269 = vmatprep.subr.bf16.mxu0 0
    %2270 = vmatpush1.bf16.msra.mxu0 0
    %2271 = vmatprep.subr.bf16.mxu0 0
    %2272 = vmatpush1.bf16.msra.mxu0 0
    %2273 = vmatprep.subr.bf16.mxu0 0
    %2274 = vmatpush1.bf16.msra.mxu0 0
    %2275 = vmatprep.subr.bf16.mxu0 0
    %2276 = vmatpush1.bf16.msra.mxu0 0
    %2277 = vmatprep.subr.bf16.mxu0 0
    %2278 = vmatpush1.bf16.msra.mxu0 0
    %2279 = vmatprep.mubr.bf16.mxu0 0
    %2280 = vmatmul.mubr.bf16.gmra.mrb[0].mxu0 %v2242
    %v2281 = vpop.f32.mrb[0].mxu0
    %v2282 = vadd.f32 0.0, %v2281
    %v2283 = vpop.f32.mrb[0].mxu0
    %v2284 = vpop.f32.mrb[0].mxu0
    %v2285 = vadd.f32 0.0, %v2284
    %v2286 = vpop.f32.mrb[0].mxu0
    %2287 = vmatprep.mubr.bf16.mxu0 0
    %2288 = vmatmul.mubr.bf16.gmra.mrb[0].mxu0 %v2245
    %v2289 = vpop.f32.mrb[0].mxu0
    %v2290 = vadd.f32 0.0, %v2289
    %v2291 = vpop.f32.mrb[0].mxu0
    %v2292 = vpop.f32.mrb[0].mxu0
    %v2293 = vpop.f32.mrb[0].mxu0
    %2294 = vdwg.mxu0
    %v2295 = vadd.f32 %v2115, %v2282
    %v2296 = vadd.f32 %v2118, %v2285
    %v2297 = vadd.f32 %v2123, %v2290
    %v2298 = vld [vmem:[%s6] sm:$0x1]
    %v2300 = vlaneseq
    %v2301 = vshrl.u32 %v2300, 7
    %v2302 = vsub.s32 0, %v2301
    %v2303 = vrot.slane %v2298, %v2302
    %v2305 = vadd.f32 %v2295, %v2303
    %v2306 = vadd.f32 %v2296, %v2303
    %v2307 = vadd.f32 %v2297, %v2303
    %v2308 = vmax.f32 %v2305, 0.0
    %v2309 = vmax.f32 %v2306, 0.0
    %v2310 = vmax.f32 %v2307, 0.0
    %v2314 = vcombine.high %v2308, %v2308
    %v2316 = vunpack.c.l.s4 1983009808
    %v2317 = vunpack.c.0.s8 %v2316
    %v2318 = vlaneseq
    %v2319 = vshrl.u32 %v2318, 7
    %v2320 = vsub.s32 %v2317, %v2319
    %v2321 = vrot.slane %v2308, %v2320
    %v2323 = vunpack.c.l.s4 1983009808
    %v2324 = vunpack.c.0.s8 %v2323
    %v2325 = vlaneseq
    %v2326 = vshrl.u32 %v2325, 7
    %v2327 = vsub.s32 %v2324, %v2326
    %v2328 = vrot.slane %v2314, %v2327
    %v2329 = vcombine.high %v2321, %v2321
    %v2330 = vcombine.high %v2328, %v2328
    %v2331 = vcombine.high %v2309, %v2309
    %v2333 = vunpack.c.l.s4 1983009808
    %v2334 = vunpack.c.0.s8 %v2333
    %v2335 = vlaneseq
    %v2336 = vshrl.u32 %v2335, 7
    %v2337 = vsub.s32 %v2334, %v2336
    %v2338 = vrot.slane %v2309, %v2337
    %v2340 = vunpack.c.l.s4 1983009808
    %v2341 = vunpack.c.0.s8 %v2340
    %v2342 = vlaneseq
    %v2343 = vshrl.u32 %v2342, 7
    %v2344 = vsub.s32 %v2341, %v2343
    %v2345 = vrot.slane %v2331, %v2344
    %v2346 = vcombine.high %v2338, %v2338
    %v2347 = vcombine.high %v2345, %v2345
    %v2349 = vunpack.c.l.s4 1983009808
    %v2350 = vunpack.c.0.s8 %v2349
    %v2351 = vlaneseq
    %v2352 = vshrl.u32 %v2351, 7
    %v2353 = vsub.s32 %v2350, %v2352
    %v2354 = vrot.slane %v2310, %v2353
    %v2355 = vcombine.high %v2354, %v2354
    %v2358 = vlaneseq
    %v2359 = vshrl.u32 %v2358, 7
    %v2360 = vsub.s32 0, %v2359
    %v2361 = vrot.slane %v2329, %v2360
    %v2362 = vlaneseq
    %v2363 = vshrl.u32 %v2362, 7
    %v2364 = vsub.s32 0, %v2363
    %v2365 = vrot.slane %v2345, %v2364
    %v2368 = vlaneseq
    %v2369 = vshrl.u32 %v2368, 7
    %v2370 = vsub.s32 0, %v2369
    %v2371 = vrot.slane %v2328, %v2370
    %v2372 = vlaneseq
    %v2373 = vshrl.u32 %v2372, 7
    %v2374 = vsub.s32 0, %v2373
    %v2375 = vrot.slane %v2347, %v2374
    %v2378 = vlaneseq
    %v2379 = vshrl.u32 %v2378, 7
    %v2380 = vsub.s32 0, %v2379
    %v2381 = vrot.slane %v2330, %v2380
    %v2382 = vlaneseq
    %v2383 = vshrl.u32 %v2382, 7
    %v2384 = vsub.s32 0, %v2383
    %v2385 = vrot.slane %v2354, %v2384
    %v2388 = vlaneseq
    %v2389 = vshrl.u32 %v2388, 7
    %v2390 = vsub.s32 0, %v2389
    %v2391 = vrot.slane %v2338, %v2390
    %v2392 = vlaneseq
    %v2393 = vshrl.u32 %v2392, 7
    %v2394 = vsub.s32 0, %v2393
    %v2395 = vrot.slane %v2355, %v2394
    %vm2398 = vcmask 1040384
    %v2399 = vsel %vm2398, %v2321, %v2361
    %v2400 = vsel %vm2398, %v2346, %v2365
    %vm2401 = vcmask 1041408
    %v2402 = vsel %vm2401, %v2399, %v2371
    %v2403 = vsel %vm2401, %v2400, %v2375
    %vm2404 = vcmask 1042432
    %v2405 = vsel %vm2404, %v2402, %v2381
    %v2406 = vsel %vm2404, %v2403, %v2385
    %vm2407 = vcmask 1043456
    %v2408 = vsel %vm2407, %v2405, %v2391
    %v2409 = vsel %vm2407, %v2406, %v2395
    %v2410 = vpack.c.bf16 %v2408, %v2408
    %v2411 = vpack.c.bf16 %v2409, %v2409
    %v2415 = vunpack.c.l.s4 1966171168
    %v2416 = vunpack.c.0.s8 %v2415
    %v2417 = vlaneseq
    %v2418 = vshrl.u32 %v2417, 7
    %v2419 = vsub.s32 %v2416, %v2418
    %v2420 = vrot.slane %v2410, %v2419
    %v2421 = vcombine.high %v2420, %v2420
    %v2423 = vunpack.c.l.s4 1966171168
    %v2424 = vunpack.c.0.s8 %v2423
    %v2425 = vlaneseq
    %v2426 = vshrl.u32 %v2425, 7
    %v2427 = vsub.s32 %v2424, %v2426
    %v2428 = vrot.slane %v2420, %v2427
    %v2430 = vunpack.c.l.s4 1966171168
    %v2431 = vunpack.c.0.s8 %v2430
    %v2432 = vlaneseq
    %v2433 = vshrl.u32 %v2432, 7
    %v2434 = vsub.s32 %v2431, %v2433
    %v2435 = vrot.slane %v2421, %v2434
    %v2437 = vunpack.c.l.s4 1966171168
    %v2438 = vunpack.c.0.s8 %v2437
    %v2439 = vlaneseq
    %v2440 = vshrl.u32 %v2439, 7
    %v2441 = vsub.s32 %v2438, %v2440
    %v2442 = vrot.slane %v2411, %v2441
    %v2443 = vcombine.high %v2442, %v2442
    %v2445 = vunpack.c.l.s4 1966171168
    %v2446 = vunpack.c.0.s8 %v2445
    %v2447 = vlaneseq
    %v2448 = vshrl.u32 %v2447, 7
    %v2449 = vsub.s32 %v2446, %v2448
    %v2450 = vrot.slane %v2442, %v2449
    %v2452 = vunpack.c.l.s4 1966171168
    %v2453 = vunpack.c.0.s8 %v2452
    %v2454 = vlaneseq
    %v2455 = vshrl.u32 %v2454, 7
    %v2456 = vsub.s32 %v2453, %v2455
    %v2457 = vrot.slane %v2443, %v2456
    %v2458 = vunpack.i.l.s16 %v2428
    %v2459 = vunpack.i.h.s16 %v2428
    %v2460 = vunpack.i.l.s16 %v2435
    %v2461 = vunpack.i.l.s16 %v2450
    %v2462 = vunpack.i.h.s16 %v2450
    %v2463 = vunpack.i.l.s16 %v2457
    %v2464 = vld [vmem:[%s7] sm:$0xf]
    %v2465 = vld [vmem:[%s7 + $0x4] sm:$0xf]
    %v2466 = vld [vmem:[%s7 + $0x8] sm:$0xf]
    %v2467 = vld [vmem:[%s7 + $0xc] sm:$0xf]
    %v2468 = vld [vmem:[%s7 + $0x10] sm:$0xf]
    %v2469 = vld [vmem:[%s7 + $0x14] sm:$0xf]
    %v2470 = vld [vmem:[%s7 + $0x18] sm:$0xf]
    %v2471 = vld [vmem:[%s7 + $0x1c] sm:$0xf]
    %v2472 = vld [vmem:[%s7 + $0x20] sm:$0xf]
    %v2473 = vld [vmem:[%s7 + $0x24] sm:$0xf]
    %v2474 = vunpack.i.h.s16 %v2435
    %v2475 = vunpack.i.h.s16 %v2457
    %s2476 = scalar_lea.vmem %s7, 40
    %v2477 = vld [vmem:[%s2476] sm:$0xf]
    %v2478 = vld [vmem:[%s2476 + $0x4] sm:$0xf]
    %v2479 = vld [vmem:[%s2476 + $0x8] sm:$0xf]
    %v2480 = vld [vmem:[%s2476 + $0xc] sm:$0xf]
    %v2481 = vld [vmem:[%s2476 + $0x10] sm:$0xf]
    %v2482 = vld [vmem:[%s2476 + $0x14] sm:$0xf]
    %v2483 = vld [vmem:[%s2476 + $0x18] sm:$0xf]
    %v2484 = vld [vmem:[%s2476 + $0x1c] sm:$0xf]
    %v2485 = vld [vmem:[%s2476 + $0x20] sm:$0xf]
    %v2486 = vld [vmem:[%s2476 + $0x24] sm:$0xf]
    %v2487 = vpack.i.b16 %v2460, %v2459
    %v2488 = vpack.i.b16 %v2462, %v2474
    %v2489 = vpack.i.b16 %v2475, %v2463
    %v2490 = vcombine.low %v2487, %v2488
    %v2492 = vunpack.c.l.s4 1966171168
    %v2493 = vunpack.c.0.s8 %v2492
    %v2494 = vlaneseq
    %v2495 = vshrl.u32 %v2494, 7
    %v2496 = vsub.s32 %v2493, %v2495
    %v2497 = vrot.slane %v2490, %v2496
    %v2499 = vunpack.c.l.s4 1966171168
    %v2500 = vunpack.c.0.s8 %v2499
    %v2501 = vlaneseq
    %v2502 = vshrl.u32 %v2501, 7
    %v2503 = vsub.s32 %v2500, %v2502
    %v2504 = vrot.slane %v2489, %v2503
    %v2505 = vcombine.low %v2497, %v2504
    %v2507 = vunpack.c.l.s4 1966171168
    %v2508 = vunpack.c.0.s8 %v2507
    %v2509 = vlaneseq
    %v2510 = vshrl.u32 %v2509, 7
    %v2511 = vsub.s32 %v2508, %v2510
    %v2512 = vrot.slane %v2505, %v2511
    %v2523 = vunpack.c.l.b16 %v2477
    %v2524 = vunpack.c.l.b16 %v2478
    %v2525 = vunpack.c.l.b16 %v2479
    %v2526 = vunpack.c.l.b16 %v2480
    %v2527 = vunpack.c.l.b16 %v2481
    %v2528 = vunpack.c.l.b16 %v2482
    %v2529 = vunpack.c.l.b16 %v2483
    %v2530 = vunpack.c.l.b16 %v2484
    %v2531 = vunpack.c.l.b16 %v2485
    %v2532 = vunpack.c.l.b16 %v2486
    %v2533 = vpack.c.b16 %v2524, %v2523
    %v2534 = vpack.c.b16 %v2526, %v2525
    %v2535 = vpack.c.b16 %v2528, %v2527
    %v2536 = vpack.c.b16 %v2530, %v2529
    %v2537 = vpack.c.b16 %v2532, %v2531
    %vm2543 = vcmask 654336
    %v2545 = vsel %vm2543, %v2512, 0
    %2547 = vmatprep.subr.bf16.mxu0 0
    %2548 = vmatpush1.bf16.msra.mxu0 %v2533
    %2549 = vmatprep.subr.bf16.mxu0 0
    %2550 = vmatpush1.bf16.msra.mxu0 %v2534
    %2551 = vmatprep.subr.bf16.mxu0 0
    %2552 = vmatpush1.bf16.msra.mxu0 %v2535
    %2553 = vmatprep.subr.bf16.mxu0 0
    %2554 = vmatpush1.bf16.msra.mxu0 %v2536
    %2555 = vmatprep.subr.bf16.mxu0 0
    %2556 = vmatpush1.bf16.msra.mxu0 %v2537
    %2557 = vmatprep.subr.bf16.mxu0 0
    %2558 = vmatpush1.bf16.msra.mxu0 0
    %2559 = vmatprep.subr.bf16.mxu0 0
    %2560 = vmatpush1.bf16.msra.mxu0 0
    %2561 = vmatprep.subr.bf16.mxu0 0
    %2562 = vmatpush1.bf16.msra.mxu0 0
    %2563 = vmatprep.subr.bf16.mxu0 0
    %2564 = vmatpush1.bf16.msra.mxu0 0
    %2565 = vmatprep.subr.bf16.mxu0 0
    %2566 = vmatpush1.bf16.msra.mxu0 0
    %2567 = vmatprep.subr.bf16.mxu0 0
    %2568 = vmatpush1.bf16.msra.mxu0 0
    %2569 = vmatprep.subr.bf16.mxu0 0
    %2570 = vmatpush1.bf16.msra.mxu0 0
    %2571 = vmatprep.subr.bf16.mxu0 0
    %2572 = vmatpush1.bf16.msra.mxu0 0
    %2573 = vmatprep.subr.bf16.mxu0 0
    %2574 = vmatpush1.bf16.msra.mxu0 0
    %2575 = vmatprep.subr.bf16.mxu0 0
    %2576 = vmatpush1.bf16.msra.mxu0 0
    %2577 = vmatprep.subr.bf16.mxu0 0
    %2578 = vmatpush1.bf16.msra.mxu0 0
    %2579 = vmatprep.mubr.bf16.mxu0 0
    %2580 = vmatmul.mubr.bf16.gmra.mrb[0].mxu0 %v2545
    %v2581 = vpop.f32.mrb[0].mxu0
    %v2582 = vadd.f32 0.0, %v2581
    %v2583 = vpop.f32.mrb[0].mxu0
    %v2584 = vpop.f32.mrb[0].mxu0
    %v2585 = vpop.f32.mrb[0].mxu0
    %2586 = vdwg.mxu0
    %v2587 = vpack.i.b16 %v2459, %v2458
    %v2588 = vpack.i.b16 %v2461, %v2460
    %v2589 = vpack.i.b16 %v2463, %v2462
    %v2590 = vcombine.low %v2587, %v2588
    %v2592 = vunpack.c.l.s4 1966171168
    %v2593 = vunpack.c.0.s8 %v2592
    %v2594 = vlaneseq
    %v2595 = vshrl.u32 %v2594, 7
    %v2596 = vsub.s32 %v2593, %v2595
    %v2597 = vrot.slane %v2590, %v2596
    %v2599 = vunpack.c.l.s4 1966171168
    %v2600 = vunpack.c.0.s8 %v2599
    %v2601 = vlaneseq
    %v2602 = vshrl.u32 %v2601, 7
    %v2603 = vsub.s32 %v2600, %v2602
    %v2604 = vrot.slane %v2589, %v2603
    %v2605 = vcombine.low %v2597, %v2604
    %v2607 = vunpack.c.l.s4 1966171168
    %v2608 = vunpack.c.0.s8 %v2607
    %v2609 = vlaneseq
    %v2610 = vshrl.u32 %v2609, 7
    %v2611 = vsub.s32 %v2608, %v2610
    %v2612 = vrot.slane %v2605, %v2611
    %v2623 = vunpack.c.l.b16 %v2464
    %v2624 = vunpack.c.l.b16 %v2465
    %v2625 = vunpack.c.l.b16 %v2466
    %v2626 = vunpack.c.l.b16 %v2467
    %v2627 = vunpack.c.l.b16 %v2468
    %v2628 = vunpack.c.l.b16 %v2469
    %v2629 = vunpack.c.l.b16 %v2470
    %v2630 = vunpack.c.l.b16 %v2471
    %v2631 = vunpack.c.l.b16 %v2472
    %v2632 = vunpack.c.l.b16 %v2473
    %v2633 = vpack.c.b16 %v2624, %v2623
    %v2634 = vpack.c.b16 %v2626, %v2625
    %v2635 = vpack.c.b16 %v2628, %v2627
    %v2636 = vpack.c.b16 %v2630, %v2629
    %v2637 = vpack.c.b16 %v2632, %v2631
    %v2644 = vsel %vm2543, %v2612, 0
    %2646 = vmatprep.subr.bf16.mxu0 0
    %2647 = vmatpush1.bf16.msra.mxu0 %v2633
    %2648 = vmatprep.subr.bf16.mxu0 0
    %2649 = vmatpush1.bf16.msra.mxu0 %v2634
    %2650 = vmatprep.subr.bf16.mxu0 0
    %2651 = vmatpush1.bf16.msra.mxu0 %v2635
    %2652 = vmatprep.subr.bf16.mxu0 0
    %2653 = vmatpush1.bf16.msra.mxu0 %v2636
    %2654 = vmatprep.subr.bf16.mxu0 0
    %2655 = vmatpush1.bf16.msra.mxu0 %v2637
    %2656 = vmatprep.subr.bf16.mxu0 0
    %2657 = vmatpush1.bf16.msra.mxu0 0
    %2658 = vmatprep.subr.bf16.mxu0 0
    %2659 = vmatpush1.bf16.msra.mxu0 0
    %2660 = vmatprep.subr.bf16.mxu0 0
    %2661 = vmatpush1.bf16.msra.mxu0 0
    %2662 = vmatprep.subr.bf16.mxu0 0
    %2663 = vmatpush1.bf16.msra.mxu0 0
    %2664 = vmatprep.subr.bf16.mxu0 0
    %2665 = vmatpush1.bf16.msra.mxu0 0
    %2666 = vmatprep.subr.bf16.mxu0 0
    %2667 = vmatpush1.bf16.msra.mxu0 0
    %2668 = vmatprep.subr.bf16.mxu0 0
    %2669 = vmatpush1.bf16.msra.mxu0 0
    %2670 = vmatprep.subr.bf16.mxu0 0
    %2671 = vmatpush1.bf16.msra.mxu0 0
    %2672 = vmatprep.subr.bf16.mxu0 0
    %2673 = vmatpush1.bf16.msra.mxu0 0
    %2674 = vmatprep.subr.bf16.mxu0 0
    %2675 = vmatpush1.bf16.msra.mxu0 0
    %2676 = vmatprep.subr.bf16.mxu0 0
    %2677 = vmatpush1.bf16.msra.mxu0 0
    %2678 = vmatprep.mubr.bf16.mxu0 0
    %2679 = vmatmul.mubr.bf16.gmra.mrb[0].mxu0 %v2644
    %v2680 = vpop.f32.mrb[0].mxu0
    %v2681 = vadd.f32 %v2582, %v2680
    %v2682 = vpop.f32.mrb[0].mxu0
    %v2683 = vpop.f32.mrb[0].mxu0
    %v2684 = vpop.f32.mrb[0].mxu0
    %2685 = vdwg.mxu0
    %v2686 = vcombine.high %v2428, %v2428
    %v2687 = vcombine.high %v2450, %v2450
    %v2688 = vunpack.i.l.s16 %v2686
    %v2689 = vunpack.i.l.s16 %v2687
    %s2690 = scalar_lea.vmem %s7, 80
    %v2691 = vld [vmem:[%s2690] sm:$0xf]
    %v2692 = vld [vmem:[%s2690 + $0x4] sm:$0xf]
    %v2693 = vld [vmem:[%s2690 + $0x8] sm:$0xf]
    %v2694 = vld [vmem:[%s2690 + $0xc] sm:$0xf]
    %v2695 = vld [vmem:[%s2690 + $0x10] sm:$0xf]
    %v2696 = vld [vmem:[%s2690 + $0x14] sm:$0xf]
    %v2697 = vld [vmem:[%s2690 + $0x18] sm:$0xf]
    %v2698 = vld [vmem:[%s2690 + $0x1c] sm:$0xf]
    %v2699 = vld [vmem:[%s2690 + $0x20] sm:$0xf]
    %v2700 = vld [vmem:[%s2690 + $0x24] sm:$0xf]
    %v2701 = vpack.i.b16 %v2474, %v2460
    %v2702 = vpack.i.b16 %v2463, %v2688
    %v2703 = vpack.i.b16 %v2689, %v2475
    %v2704 = vcombine.low %v2701, %v2702
    %v2706 = vunpack.c.l.s4 1966171168
    %v2707 = vunpack.c.0.s8 %v2706
    %v2708 = vlaneseq
    %v2709 = vshrl.u32 %v2708, 7
    %v2710 = vsub.s32 %v2707, %v2709
    %v2711 = vrot.slane %v2704, %v2710
    %v2713 = vunpack.c.l.s4 1966171168
    %v2714 = vunpack.c.0.s8 %v2713
    %v2715 = vlaneseq
    %v2716 = vshrl.u32 %v2715, 7
    %v2717 = vsub.s32 %v2714, %v2716
    %v2718 = vrot.slane %v2703, %v2717
    %v2719 = vcombine.low %v2711, %v2718
    %v2721 = vunpack.c.l.s4 1966171168
    %v2722 = vunpack.c.0.s8 %v2721
    %v2723 = vlaneseq
    %v2724 = vshrl.u32 %v2723, 7
    %v2725 = vsub.s32 %v2722, %v2724
    %v2726 = vrot.slane %v2719, %v2725
    %v2737 = vunpack.c.l.b16 %v2691
    %v2738 = vunpack.c.l.b16 %v2692
    %v2739 = vunpack.c.l.b16 %v2693
    %v2740 = vunpack.c.l.b16 %v2694
    %v2741 = vunpack.c.l.b16 %v2695
    %v2742 = vunpack.c.l.b16 %v2696
    %v2743 = vunpack.c.l.b16 %v2697
    %v2744 = vunpack.c.l.b16 %v2698
    %v2745 = vunpack.c.l.b16 %v2699
    %v2746 = vunpack.c.l.b16 %v2700
    %v2747 = vpack.c.b16 %v2738, %v2737
    %v2748 = vpack.c.b16 %v2740, %v2739
    %v2749 = vpack.c.b16 %v2742, %v2741
    %v2750 = vpack.c.b16 %v2744, %v2743
    %v2751 = vpack.c.b16 %v2746, %v2745
    %v2758 = vsel %vm2543, %v2726, 0
    %2760 = vmatprep.subr.bf16.mxu0 0
    %2761 = vmatpush1.bf16.msra.mxu0 %v2747
    %2762 = vmatprep.subr.bf16.mxu0 0
    %2763 = vmatpush1.bf16.msra.mxu0 %v2748
    %2764 = vmatprep.subr.bf16.mxu0 0
    %2765 = vmatpush1.bf16.msra.mxu0 %v2749
    %2766 = vmatprep.subr.bf16.mxu0 0
    %2767 = vmatpush1.bf16.msra.mxu0 %v2750
    %2768 = vmatprep.subr.bf16.mxu0 0
    %2769 = vmatpush1.bf16.msra.mxu0 %v2751
    %2770 = vmatprep.subr.bf16.mxu0 0
    %2771 = vmatpush1.bf16.msra.mxu0 0
    %2772 = vmatprep.subr.bf16.mxu0 0
    %2773 = vmatpush1.bf16.msra.mxu0 0
    %2774 = vmatprep.subr.bf16.mxu0 0
    %2775 = vmatpush1.bf16.msra.mxu0 0
    %2776 = vmatprep.subr.bf16.mxu0 0
    %2777 = vmatpush1.bf16.msra.mxu0 0
    %2778 = vmatprep.subr.bf16.mxu0 0
    %2779 = vmatpush1.bf16.msra.mxu0 0
    %2780 = vmatprep.subr.bf16.mxu0 0
    %2781 = vmatpush1.bf16.msra.mxu0 0
    %2782 = vmatprep.subr.bf16.mxu0 0
    %2783 = vmatpush1.bf16.msra.mxu0 0
    %2784 = vmatprep.subr.bf16.mxu0 0
    %2785 = vmatpush1.bf16.msra.mxu0 0
    %2786 = vmatprep.subr.bf16.mxu0 0
    %2787 = vmatpush1.bf16.msra.mxu0 0
    %2788 = vmatprep.subr.bf16.mxu0 0
    %2789 = vmatpush1.bf16.msra.mxu0 0
    %2790 = vmatprep.subr.bf16.mxu0 0
    %2791 = vmatpush1.bf16.msra.mxu0 0
    %2792 = vmatprep.mubr.bf16.mxu0 0
    %2793 = vmatmul.mubr.bf16.gmra.mrb[0].mxu0 %v2758
    %v2794 = vpop.f32.mrb[0].mxu0
    %v2795 = vadd.f32 0.0, %v2794
    %v2796 = vpop.f32.mrb[0].mxu0
    %v2797 = vpop.f32.mrb[0].mxu0
    %v2798 = vpop.f32.mrb[0].mxu0
    %2799 = vdwg.mxu0
    %v2800 = vadd.f32 %v2681, %v2795
    %v2801 = vld [vmem:[%s8] sm:$0x1]
    %v2803 = vlaneseq
    %v2804 = vshrl.u32 %v2803, 7
    %v2805 = vsub.s32 0, %v2804
    %v2806 = vrot.slane %v2801, %v2805
    %v2808 = vadd.f32 %v2800, %v2806
    %v2809 = vmax.f32 %v2808, 0.0
    %v2811 = vcombine.high %v2809, %v2809
    %v2813 = vunpack.c.l.s4 1966171168
    %v2814 = vunpack.c.0.s8 %v2813
    %v2815 = vlaneseq
    %v2816 = vshrl.u32 %v2815, 7
    %v2817 = vsub.s32 %v2814, %v2816
    %v2818 = vrot.slane %v2809, %v2817
    %v2820 = vunpack.c.l.s4 1966171168
    %v2821 = vunpack.c.0.s8 %v2820
    %v2822 = vlaneseq
    %v2823 = vshrl.u32 %v2822, 7
    %v2824 = vsub.s32 %v2821, %v2823
    %v2825 = vrot.slane %v2811, %v2824
    %v2826 = vcombine.high %v2818, %v2818
    %v2827 = vcombine.high %v2825, %v2825
    %v2829 = vunpack.c.l.s4 1966171168
    %v2830 = vunpack.c.0.s8 %v2829
    %v2831 = vlaneseq
    %v2832 = vshrl.u32 %v2831, 7
    %v2833 = vsub.s32 %v2830, %v2832
    %v2834 = vrot.slane %v2818, %v2833
    %v2836 = vunpack.c.l.s4 1966171168
    %v2837 = vunpack.c.0.s8 %v2836
    %v2838 = vlaneseq
    %v2839 = vshrl.u32 %v2838, 7
    %v2840 = vsub.s32 %v2837, %v2839
    %v2841 = vrot.slane %v2825, %v2840
    %v2843 = vunpack.c.l.s4 1966171168
    %v2844 = vunpack.c.0.s8 %v2843
    %v2845 = vlaneseq
    %v2846 = vshrl.u32 %v2845, 7
    %v2847 = vsub.s32 %v2844, %v2846
    %v2848 = vrot.slane %v2826, %v2847
    %v2850 = vunpack.c.l.s4 1966171168
    %v2851 = vunpack.c.0.s8 %v2850
    %v2852 = vlaneseq
    %v2853 = vshrl.u32 %v2852, 7
    %v2854 = vsub.s32 %v2851, %v2853
    %v2855 = vrot.slane %v2827, %v2854
    %v2856 = vcombine.high %v2834, %v2834
    %v2857 = vcombine.high %v2848, %v2848
    %v2858 = vcombine.low %v2834, %v2848
    %v2860 = vunpack.c.l.s4 1966171168
    %v2861 = vunpack.c.0.s8 %v2860
    %v2862 = vlaneseq
    %v2863 = vshrl.u32 %v2862, 7
    %v2864 = vsub.s32 %v2861, %v2863
    %v2865 = vrot.slane %v2858, %v2864
    %v2867 = vunpack.c.l.s4 1966171168
    %v2868 = vunpack.c.0.s8 %v2867
    %v2869 = vlaneseq
    %v2870 = vshrl.u32 %v2869, 7
    %v2871 = vsub.s32 %v2868, %v2870
    %v2872 = vrot.slane %v2856, %v2871
    %v2873 = vcombine.low %v2865, %v2872
    %v2875 = vunpack.c.l.s4 1966171168
    %v2876 = vunpack.c.0.s8 %v2875
    %v2877 = vlaneseq
    %v2878 = vshrl.u32 %v2877, 7
    %v2879 = vsub.s32 %v2876, %v2878
    %v2880 = vrot.slane %v2873, %v2879
    %v2881 = vcombine.low %v2857, %v2841
    %v2883 = vunpack.c.l.s4 1966171168
    %v2884 = vunpack.c.0.s8 %v2883
    %v2885 = vlaneseq
    %v2886 = vshrl.u32 %v2885, 7
    %v2887 = vsub.s32 %v2884, %v2886
    %v2888 = vrot.slane %v2881, %v2887
    %v2890 = vunpack.c.l.s4 1966171168
    %v2891 = vunpack.c.0.s8 %v2890
    %v2892 = vlaneseq
    %v2893 = vshrl.u32 %v2892, 7
    %v2894 = vsub.s32 %v2891, %v2893
    %v2895 = vrot.slane %v2855, %v2894
    %v2896 = vcombine.low %v2888, %v2895
    %v2898 = vunpack.c.l.s4 1966171168
    %v2899 = vunpack.c.0.s8 %v2898
    %v2900 = vlaneseq
    %v2901 = vshrl.u32 %v2900, 7
    %v2902 = vsub.s32 %v2899, %v2901
    %v2903 = vrot.slane %v2896, %v2902
    %v2906 = vpack.c.bf16 %v2880, %v2880
    %v2907 = vpack.c.bf16 %v2903, %v2903
    %v2908 = vld [vmem:[%s9] sm:$0xf]
    %v2909 = vld [vmem:[%s9 + $0x4] sm:$0xf]
    %v2910 = vld [vmem:[%s9 + $0x8] sm:$0xf]
    %v2911 = vld [vmem:[%s9 + $0xc] sm:$0xf]
    %v2912 = vld [vmem:[%s9 + $0x10] sm:$0xf]
    %v2913 = vld [vmem:[%s9 + $0x14] sm:$0xf]
    %s2914 = scalar_lea.vmem %s9, 24
    %v2915 = vld [vmem:[%s2914] sm:$0xf]
    %v2916 = vld [vmem:[%s2914 + $0x4] sm:$0xf]
    %v2917 = vld [vmem:[%s2914 + $0x8] sm:$0xf]
    %v2918 = vld [vmem:[%s2914 + $0xc] sm:$0xf]
    %v2919 = vld [vmem:[%s2914 + $0x10] sm:$0xf]
    %v2920 = vld [vmem:[%s2914 + $0x14] sm:$0xf]
    %v2923 = vunpack.c.l.b16 %v2906
    %v2924 = vunpack.c.l.b16 %v2907
    %v2925 = vrot.slane %v2923, 1
    %vm2926 = vcmask 1041409
    %v2927 = vsel %vm2926, %v2924, %v2925
    %v2928 = vpack.c.b16 %v2927, %v2927
    %v2935 = vunpack.c.l.b16 %v2915
    %v2936 = vunpack.c.l.b16 %v2916
    %v2937 = vunpack.c.l.b16 %v2917
    %v2938 = vunpack.c.l.b16 %v2918
    %v2939 = vunpack.c.l.b16 %v2919
    %v2940 = vunpack.c.l.b16 %v2920
    %v2941 = vpack.c.b16 %v2936, %v2935
    %v2942 = vpack.c.b16 %v2938, %v2937
    %v2943 = vpack.c.b16 %v2940, %v2939
    %v2948 = vsel %vm120, %v2928, 0
    %2950 = vmatprep.subr.bf16.mxu0 0
    %2951 = vmatpush1.bf16.msra.mxu0 %v2941
    %2952 = vmatprep.subr.bf16.mxu0 0
    %2953 = vmatpush1.bf16.msra.mxu0 %v2942
    %2954 = vmatprep.subr.bf16.mxu0 0
    %2955 = vmatpush1.bf16.msra.mxu0 %v2943
    %2956 = vmatprep.subr.bf16.mxu0 0
    %2957 = vmatpush1.bf16.msra.mxu0 0
    %2958 = vmatprep.subr.bf16.mxu0 0
    %2959 = vmatpush1.bf16.msra.mxu0 0
    %2960 = vmatprep.subr.bf16.mxu0 0
    %2961 = vmatpush1.bf16.msra.mxu0 0
    %2962 = vmatprep.subr.bf16.mxu0 0
    %2963 = vmatpush1.bf16.msra.mxu0 0
    %2964 = vmatprep.subr.bf16.mxu0 0
    %2965 = vmatpush1.bf16.msra.mxu0 0
    %2966 = vmatprep.subr.bf16.mxu0 0
    %2967 = vmatpush1.bf16.msra.mxu0 0
    %2968 = vmatprep.subr.bf16.mxu0 0
    %2969 = vmatpush1.bf16.msra.mxu0 0
    %2970 = vmatprep.subr.bf16.mxu0 0
    %2971 = vmatpush1.bf16.msra.mxu0 0
    %2972 = vmatprep.subr.bf16.mxu0 0
    %2973 = vmatpush1.bf16.msra.mxu0 0
    %2974 = vmatprep.subr.bf16.mxu0 0
    %2975 = vmatpush1.bf16.msra.mxu0 0
    %2976 = vmatprep.subr.bf16.mxu0 0
    %2977 = vmatpush1.bf16.msra.mxu0 0
    %2978 = vmatprep.subr.bf16.mxu0 0
    %2979 = vmatpush1.bf16.msra.mxu0 0
    %2980 = vmatprep.subr.bf16.mxu0 0
    %2981 = vmatpush1.bf16.msra.mxu0 0
    %2982 = vmatprep.mubr.bf16.mxu0 0
    %2983 = vmatmul.mubr.bf16.gmra.mrb[0].mxu0 %v2948
    %v2984 = vpop.f32.mrb[0].mxu0
    %v2985 = vadd.f32 0.0, %v2984
    %v2986 = vpop.f32.mrb[0].mxu0
    %v2987 = vpop.f32.mrb[0].mxu0
    %v2988 = vpop.f32.mrb[0].mxu0
    %2989 = vdwg.mxu0
    %v2990 = vrot.slane %v2924, 7
    %v2991 = vsel %vm2926, %v2990, %v2923
    %v2992 = vpack.c.b16 %v2991, %v2991
    %v2999 = vunpack.c.l.b16 %v2908
    %v3000 = vunpack.c.l.b16 %v2909
    %v3001 = vunpack.c.l.b16 %v2910
    %v3002 = vunpack.c.l.b16 %v2911
    %v3003 = vunpack.c.l.b16 %v2912
    %v3004 = vunpack.c.l.b16 %v2913
    %v3005 = vpack.c.b16 %v3000, %v2999
    %v3006 = vpack.c.b16 %v3002, %v3001
    %v3007 = vpack.c.b16 %v3004, %v3003
    %v3012 = vsel %vm120, %v2992, 0
    %3014 = vmatprep.subr.bf16.mxu0 0
    %3015 = vmatpush1.bf16.msra.mxu0 %v3005
    %3016 = vmatprep.subr.bf16.mxu0 0
    %3017 = vmatpush1.bf16.msra.mxu0 %v3006
    %3018 = vmatprep.subr.bf16.mxu0 0
    %3019 = vmatpush1.bf16.msra.mxu0 %v3007
    %3020 = vmatprep.subr.bf16.mxu0 0
    %3021 = vmatpush1.bf16.msra.mxu0 0
    %3022 = vmatprep.subr.bf16.mxu0 0
    %3023 = vmatpush1.bf16.msra.mxu0 0
    %3024 = vmatprep.subr.bf16.mxu0 0
    %3025 = vmatpush1.bf16.msra.mxu0 0
    %3026 = vmatprep.subr.bf16.mxu0 0
    %3027 = vmatpush1.bf16.msra.mxu0 0
    %3028 = vmatprep.subr.bf16.mxu0 0
    %3029 = vmatpush1.bf16.msra.mxu0 0
    %3030 = vmatprep.subr.bf16.mxu0 0
    %3031 = vmatpush1.bf16.msra.mxu0 0
    %3032 = vmatprep.subr.bf16.mxu0 0
    %3033 = vmatpush1.bf16.msra.mxu0 0
    %3034 = vmatprep.subr.bf16.mxu0 0
    %3035 = vmatpush1.bf16.msra.mxu0 0
    %3036 = vmatprep.subr.bf16.mxu0 0
    %3037 = vmatpush1.bf16.msra.mxu0 0
    %3038 = vmatprep.subr.bf16.mxu0 0
    %3039 = vmatpush1.bf16.msra.mxu0 0
    %3040 = vmatprep.subr.bf16.mxu0 0
    %3041 = vmatpush1.bf16.msra.mxu0 0
    %3042 = vmatprep.subr.bf16.mxu0 0
    %3043 = vmatpush1.bf16.msra.mxu0 0
    %3044 = vmatprep.subr.bf16.mxu0 0
    %3045 = vmatpush1.bf16.msra.mxu0 0
    %3046 = vmatprep.mubr.bf16.mxu0 0
    %3047 = vmatmul.mubr.bf16.gmra.mrb[0].mxu0 %v3012
    %v3048 = vpop.f32.mrb[0].mxu0
    %v3049 = vadd.f32 %v2985, %v3048
    %v3050 = vpop.f32.mrb[0].mxu0
    %v3051 = vpop.f32.mrb[0].mxu0
    %v3052 = vpop.f32.mrb[0].mxu0
    %3053 = vdwg.mxu0
    %s3054 = scalar_lea.vmem %s9, 48
    %v3055 = vld [vmem:[%s3054] sm:$0xf]
    %v3056 = vld [vmem:[%s3054 + $0x4] sm:$0xf]
    %v3057 = vld [vmem:[%s3054 + $0x8] sm:$0xf]
    %v3058 = vld [vmem:[%s3054 + $0xc] sm:$0xf]
    %v3059 = vld [vmem:[%s3054 + $0x10] sm:$0xf]
    %v3060 = vld [vmem:[%s3054 + $0x14] sm:$0xf]
    %v3061 = vrot.slane %v2923, 2
    %v3062 = vrot.slane %v2924, 1
    %v3063 = vsel %vm2926, %v3062, %v3061
    %v3064 = vpack.c.b16 %v3063, %v3063
    %v3071 = vunpack.c.l.b16 %v3055
    %v3072 = vunpack.c.l.b16 %v3056
    %v3073 = vunpack.c.l.b16 %v3057
    %v3074 = vunpack.c.l.b16 %v3058
    %v3075 = vunpack.c.l.b16 %v3059
    %v3076 = vunpack.c.l.b16 %v3060
    %v3077 = vpack.c.b16 %v3072, %v3071
    %v3078 = vpack.c.b16 %v3074, %v3073
    %v3079 = vpack.c.b16 %v3076, %v3075
    %v3084 = vsel %vm120, %v3064, 0
    %3086 = vmatprep.subr.bf16.mxu0 0
    %3087 = vmatpush1.bf16.msra.mxu0 %v3077
    %3088 = vmatprep.subr.bf16.mxu0 0
    %3089 = vmatpush1.bf16.msra.mxu0 %v3078
    %3090 = vmatprep.subr.bf16.mxu0 0
    %3091 = vmatpush1.bf16.msra.mxu0 %v3079
    %3092 = vmatprep.subr.bf16.mxu0 0
    %3093 = vmatpush1.bf16.msra.mxu0 0
    %3094 = vmatprep.subr.bf16.mxu0 0
    %3095 = vmatpush1.bf16.msra.mxu0 0
    %3096 = vmatprep.subr.bf16.mxu0 0
    %3097 = vmatpush1.bf16.msra.mxu0 0
    %3098 = vmatprep.subr.bf16.mxu0 0
    %3099 = vmatpush1.bf16.msra.mxu0 0
    %3100 = vmatprep.subr.bf16.mxu0 0
    %3101 = vmatpush1.bf16.msra.mxu0 0
    %3102 = vmatprep.subr.bf16.mxu0 0
    %3103 = vmatpush1.bf16.msra.mxu0 0
    %3104 = vmatprep.subr.bf16.mxu0 0
    %3105 = vmatpush1.bf16.msra.mxu0 0
    %3106 = vmatprep.subr.bf16.mxu0 0
    %3107 = vmatpush1.bf16.msra.mxu0 0
    %3108 = vmatprep.subr.bf16.mxu0 0
    %3109 = vmatpush1.bf16.msra.mxu0 0
    %3110 = vmatprep.subr.bf16.mxu0 0
    %3111 = vmatpush1.bf16.msra.mxu0 0
    %3112 = vmatprep.subr.bf16.mxu0 0
    %3113 = vmatpush1.bf16.msra.mxu0 0
    %3114 = vmatprep.subr.bf16.mxu0 0
    %3115 = vmatpush1.bf16.msra.mxu0 0
    %3116 = vmatprep.subr.bf16.mxu0 0
    %3117 = vmatpush1.bf16.msra.mxu0 0
    %3118 = vmatprep.mubr.bf16.mxu0 0
    %3119 = vmatmul.mubr.bf16.gmra.mrb[0].mxu0 %v3084
    %v3120 = vpop.f32.mrb[0].mxu0
    %v3121 = vadd.f32 0.0, %v3120
    %v3122 = vpop.f32.mrb[0].mxu0
    %v3123 = vpop.f32.mrb[0].mxu0
    %v3124 = vpop.f32.mrb[0].mxu0
    %3125 = vdwg.mxu0
    %v3126 = vadd.f32 %v3049, %v3121
    %v3127 = vld [vmem:[%s10] sm:$0x1]
    %v3129 = vlaneseq
    %v3130 = vshrl.u32 %v3129, 7
    %v3131 = vsub.s32 0, %v3130
    %v3132 = vrot.slane %v3127, %v3131
    %v3134 = vadd.f32 %v3126, %v3132
    %v3135 = vmax.f32 %v3134, 0.0
    %v3136 = vpack.c.bf16 %v3135, %v3135
    %v3137 = vld [vmem:[%s11] sm:$0xf]
    %v3138 = vld [vmem:[%s11 + $0x4] sm:$0xf]
    %v3139 = vld [vmem:[%s11 + $0x8] sm:$0xf]
    %v3140 = vld [vmem:[%s11 + $0xc] sm:$0xf]
    %v3141 = vld [vmem:[%s12] sm:$0x1]
    %v3143 = vlaneseq
    %v3144 = vshrl.u32 %v3143, 7
    %v3145 = vsub.s32 0, %v3144
    %v3146 = vrot.slane %v3141, %v3145
    %v3152 = vunpack.c.l.b16 %v3137
    %v3153 = vunpack.c.l.b16 %v3138
    %v3154 = vunpack.c.l.b16 %v3139
    %v3155 = vunpack.c.l.b16 %v3140
    %v3156 = vpack.c.b16 %v3153, %v3152
    %v3157 = vpack.c.b16 %v3155, %v3154
    %v3161 = vsel %vm115, %v3136, 0
    %3163 = vmatprep.subr.bf16.mxu0 0
    %3164 = vmatpush1.bf16.msra.mxu0 %v3156
    %3165 = vmatprep.subr.bf16.mxu0 0
    %3166 = vmatpush1.bf16.msra.mxu0 %v3157
    %3167 = vmatprep.subr.bf16.mxu0 0
    %3168 = vmatpush1.bf16.msra.mxu0 0
    %3169 = vmatprep.subr.bf16.mxu0 0
    %3170 = vmatpush1.bf16.msra.mxu0 0
    %3171 = vmatprep.subr.bf16.mxu0 0
    %3172 = vmatpush1.bf16.msra.mxu0 0
    %3173 = vmatprep.subr.bf16.mxu0 0
    %3174 = vmatpush1.bf16.msra.mxu0 0
    %3175 = vmatprep.subr.bf16.mxu0 0
    %3176 = vmatpush1.bf16.msra.mxu0 0
    %3177 = vmatprep.subr.bf16.mxu0 0
    %3178 = vmatpush1.bf16.msra.mxu0 0
    %3179 = vmatprep.subr.bf16.mxu0 0
    %3180 = vmatpush1.bf16.msra.mxu0 0
    %3181 = vmatprep.subr.bf16.mxu0 0
    %3182 = vmatpush1.bf16.msra.mxu0 0
    %3183 = vmatprep.subr.bf16.mxu0 0
    %3184 = vmatpush1.bf16.msra.mxu0 0
    %3185 = vmatprep.subr.bf16.mxu0 0
    %3186 = vmatpush1.bf16.msra.mxu0 0
    %3187 = vmatprep.subr.bf16.mxu0 0
    %3188 = vmatpush1.bf16.msra.mxu0 0
    %3189 = vmatprep.subr.bf16.mxu0 0
    %3190 = vmatpush1.bf16.msra.mxu0 0
    %3191 = vmatprep.subr.bf16.mxu0 0
    %3192 = vmatpush1.bf16.msra.mxu0 0
    %3193 = vmatprep.subr.bf16.mxu0 0
    %3194 = vmatpush1.bf16.msra.mxu0 0
    %3195 = vmatprep.mubr.bf16.mxu0 0
    %3196 = vmatmul.mubr.bf16.gmra.mrb[0].mxu0 %v3161
    %v3197 = vpop.f32.mrb[0].mxu0
    %v3198 = vadd.f32 %v3146, %v3197
    %v3199 = vpop.f32.mrb[0].mxu0
    %v3200 = vpop.f32.mrb[0].mxu0
    %v3201 = vpop.f32.mrb[0].mxu0
    %3202 = vdwg.mxu0
    %vm3203 = vcmask 74752
    %3204 = vst.msk [vmem:[#allocation2] sm:$0x3] %vm3203, %v3198
    // Predicated region
    $region54: #{forward.1} parent=1 // pred_check
      _
    $region55: #{forward.1} parent=1 // pred_check_branch
      %3206 = sbr.rel (0) target = $region57
    $region56: #{forward.1} parent=1 // pred_region
      %s3208 = ssub.s32 32, 32
      %3209 = vsyncadd [#allocation3], %s3208
      %s3211 = sshll.u32 [#allocation2], 4
      %s3212 = int_to_ptr.vmem [resolvable:$true] %s3211
      %3214 = dma.vmem_to_hbm [thread:$0]  %s3212, 32, %s13, [#allocation3]
    $region57: #{forward.1} parent=1 // pred_fallthru
      _
    // Predicated region
    $region58: #{forward.1} parent=1 // pred_check
      _
    $region59: #{forward.1} parent=1 // pred_check_branch
      %3216 = sbr.rel (0) target = $region61
    $region60: #{forward.1} parent=1 // pred_region
      %3217 = dma.done [#allocation3], 32
    $region61: #{forward.1} parent=1 // pred_fallthru
      _
    %3218 = vsyncpa [#allocation3], 1

</llo_original>
